<compile_context>
chip_gen: v7x
topology: tpu7x:2x2x1
jax: 0.10.0
libtpu: 0.0.40
codegen_flags: <defaults>
</compile_context>

<pallas_src>
import functools

import jax
import jax.numpy as jnp
from jax.experimental import pallas as pl
from jax.experimental.pallas import tpu as pltpu


_LANE = 128          # lane width: gate slices / output stores are lane-aligned
_SUBLANE = 8         # f32 sublane tiling
_VMEM_BUDGET = 40 << 20   # fits v7x's 64 MiB physical VMEM with headroom


def _round_up(x, m):
    return -(-x // m) * m


def _tensorcores_per_chip():
    """Best-effort TensorCore count; fall back to 1 (conservative & correct)."""
    try:
        info = pltpu.get_tpu_info()
        for attr in ("tensorcore_count", "num_tensorcores", "num_cores",
                     "core_count"):
            v = getattr(info, attr, None)
            if isinstance(v, int) and v > 0:
                return int(v)
    except Exception:
        pass
    return 1


def _lstm_layer_kernel(x_ref, wih_ref, whh_ref, b_ref, out_ref,
                       h_sc, c_sc, gx_sc):
    """One LSTM layer over one (batch-block, time-block) grid step.

    x_ref   : (T_blk, B_blk, D)    f32  layer input for this block (time-major)
    wih_ref : (D, 4*Hp)            f32  input->gates weights (pre-transposed)
    whh_ref : (Hp, 4*Hp)           f32  hidden->gates weights (pre-transposed)
    b_ref   : (1, 4*Hp)            f32  combined bias b_ih + b_hh
    out_ref : (T_blk, B_blk, Hp)   f32  hidden outputs for this block
    h_sc/c_sc : (B_blk, Hp)        f32  carried state across time blocks
    gx_sc   : (T_blk*B_blk, 4*Hp)  f32  staged input projection (VMEM only)
    """
    t_blk, b_blk, d_in = x_ref.shape
    h_pad = h_sc.shape[-1]

    @pl.when(pl.program_id(1) == 0)   # first time-block of this batch-block
    def _():
        h_sc[...] = jnp.zeros_like(h_sc)
        c_sc[...] = jnp.zeros_like(c_sc)

    # Fused input projection: ONE big MXU matmul per time block.  The gates
    # slab stays in VMEM scratch -> no (S, B, 4H) HBM round trip.
    x2 = x_ref[...].reshape(t_blk * b_blk, d_in)
    gx_sc[...] = jnp.dot(x2, wih_ref[...],
                         preferred_element_type=jnp.float32) + b_ref[...]

    whh = whh_ref[...]   # hoisted out of the time loop

    def step(t, carry):
        h, c = carry
        row0 = pl.multiple_of(t * b_blk, _SUBLANE)
        # Only the true recurrence stays on the serial chain: one small matmul.
        gates = gx_sc[pl.ds(row0, b_blk), :] + jnp.dot(
            h, whh, preferred_element_type=jnp.float32)   # (B, 4Hp), order i,f,g,o
        i_g = jax.nn.sigmoid(gates[:, 0 * h_pad:1 * h_pad])   # lane-aligned slices
        f_g = jax.nn.sigmoid(gates[:, 1 * h_pad:2 * h_pad])
        g_g = jnp.tanh(gates[:, 2 * h_pad:3 * h_pad])
        o_g = jax.nn.sigmoid(gates[:, 3 * h_pad:4 * h_pad])
        c_new = f_g * c + i_g * g_g
        h_new = o_g * jnp.tanh(c_new)
        out_ref[t] = h_new.astype(out_ref.dtype)
        return (h_new, c_new)

    # Unroll vs vreg pressure: a live (B, 4Hp) f32 gates value per unrolled
    # iteration spills for large Hp (only 64 vregs on all generations).
    if t_blk <= _SUBLANE:
        unroll = True
    elif h_pad <= 256:
        unroll = 8
    elif h_pad <= 512:
        unroll = 4
    else:
        unroll = 2
    h_fin, c_fin = jax.lax.fori_loop(
        0, t_blk, step, (h_sc[...], c_sc[...]), unroll=unroll)
    h_sc[...] = h_fin
    c_sc[...] = c_fin


def _lstm_layer(x_tm, w_ih_t, w_hh_t, bias, *, t_blk, b_blk, vmem_limit):
    """Run one LSTM layer over the whole padded (time-major) sequence."""
    seq_p, batch_p, d_in = x_tm.shape
    h_pad, four_h = w_hh_t.shape
    n_t = seq_p // t_blk
    n_b = batch_p // b_blk

    return pl.pallas_call(
        _lstm_layer_kernel,
        out_shape=jax.ShapeDtypeStruct((seq_p, batch_p, h_pad), jnp.float32),
        grid_spec=pltpu.PrefetchScalarGridSpec(
            num_scalar_prefetch=0,
            grid=(n_b, n_t),
            in_specs=[
                pl.BlockSpec((t_blk, b_blk, d_in), lambda b, t: (t, b, 0)),
                # Grid-invariant weights/bias: constant index_map => fetched
                # once.  TODO(synk): single-buffer them (pl.Buffered(1)) to
                # halve their VMEM footprint once that path is verified.
                pl.BlockSpec((d_in, four_h), lambda b, t: (0, 0)),
                pl.BlockSpec((h_pad, four_h), lambda b, t: (0, 0)),
                pl.BlockSpec((1, four_h), lambda b, t: (0, 0)),
            ],
            out_specs=pl.BlockSpec((t_blk, b_blk, h_pad), lambda b, t: (t, b, 0)),
            scratch_shapes=[
                pltpu.VMEM((b_blk, h_pad), jnp.float32),             # h carry
                pltpu.VMEM((b_blk, h_pad), jnp.float32),             # c carry
                pltpu.VMEM((t_blk * b_blk, four_h), jnp.float32),    # staged gates
            ],
        ),
        compiler_params=pltpu.CompilerParams(
            # batch blocks are independent (megacore-parallel on v7x);
            # time blocks are strictly sequential (h/c carried in scratch).
            dimension_semantics=("parallel", "arbitrary"),
            vmem_limit_bytes=vmem_limit,
        ),
    )(x_tm, w_ih_t, w_hh_t, bias)


def _vmem_plan(seq, b_blk, d_max, h_pad):
    """Pick t_blk from a generation-safe VMEM budget; return (t_blk, limit)."""
    four_h = 4 * h_pad
    # per-timestep bytes: double-buffered x block + double-buffered out block
    # + staged-gates scratch (all f32)
    per_t = 4 * b_blk * (2 * d_max + 2 * h_pad + four_h)
    # fixed bytes: weights/bias (double-buffered by default) + h/c carries
    fixed = 4 * (2 * d_max * four_h + 2 * h_pad * four_h
                 + 2 * four_h + 2 * b_blk * h_pad)
    t_cap = (_VMEM_BUDGET - fixed) // per_t if _VMEM_BUDGET > fixed else _SUBLANE
    t_cap = max(_SUBLANE, int(t_cap))
    seq_r = _round_up(seq, _SUBLANE)
    t_blk = int(min(t_cap, 256, seq_r))
    t_blk = max(_SUBLANE, (t_blk // _SUBLANE) * _SUBLANE)
    need = fixed + per_t * t_blk
    vmem_limit = int(min(max(need + (4 << 20), 16 << 20), 96 << 20))
    return t_blk, vmem_limit


@functools.partial(jax.jit, static_argnames=("embedding_dim",))
def encoder_forward(x_bsf, kernel_params, *, embedding_dim):
    """x_bsf: (B, S, input_dim) f32.
    Returns (hidden[-1], activations) = ((B, H), (B, S, H)) like PyTorch."""
    batch, seq, _ = x_bsf.shape
    h_pad = kernel_params[0]["w_hh_t"].shape[0]
    d_max = max(int(p["w_ih_t"].shape[0]) for p in kernel_params)

    # ---- batch padding / batch-block choice -------------------------------
    batch_p = _round_up(batch, _SUBLANE)
    n_b = 1
    if _tensorcores_per_chip() >= 2 and batch_p >= 16:
        # v7x: split the batch across the two TensorCores (parallel grid axis).
        batch_p = _round_up(batch_p, 2 * _SUBLANE)
        n_b = 2
    b_blk = batch_p // n_b

    # ---- VMEM-budget-driven time block -------------------------------------
    t_blk, vmem_limit = _vmem_plan(seq, b_blk, d_max, h_pad)
    seq_p = _round_up(seq, t_blk)

    # batch-first -> time-major once; pad batch/time with zeros (harmless:
    # only h[:seq, :batch, :H] is ever read back).
    x_tm = jnp.transpose(x_bsf.astype(jnp.float32), (1, 0, 2))
    x_tm = jnp.pad(x_tm, ((0, seq_p - seq), (0, batch_p - batch), (0, 0)))

    h = x_tm
    for layer in kernel_params:
        h = _lstm_layer(h, layer["w_ih_t"], layer["w_hh_t"], layer["bias"],
                        t_blk=t_blk, b_blk=b_blk, vmem_limit=vmem_limit)

    activations = jnp.transpose(h[:seq, :batch, :embedding_dim], (1, 0, 2))
    hidden_last = activations[:, -1, :]
    return hidden_last, activations


# --------------------------- parameter handling -----------------------------

def init_encoder_params(key, input_dim, embedding_dim, lstm_layers):
    """PyTorch nn.LSTM-style init: U(-1/sqrt(H), 1/sqrt(H)); raw layout."""
    bound = 1.0 / float(embedding_dim) ** 0.5
    raw = []
    for layer in range(lstm_layers):
        d_in = input_dim if layer == 0 else embedding_dim
        key, k1, k2, k3, k4 = jax.random.split(key, 5)
        raw.append({
            "w_ih": jax.random.uniform(k1, (4 * embedding_dim, d_in),
                                       jnp.float32, -bound, bound),
            "w_hh": jax.random.uniform(k2, (4 * embedding_dim, embedding_dim),
                                       jnp.float32, -bound, bound),
            "b_ih": jax.random.uniform(k3, (4 * embedding_dim,),
                                       jnp.float32, -bound, bound),
            "b_hh": jax.random.uniform(k4, (4 * embedding_dim,),
                                       jnp.float32, -bound, bound),
        })
    return raw


def _pad_gate_rows(w, h_dim, h_pad):
    """(4*h, ...) -> (4*h_pad, ...) zero-padding each of the 4 gate blocks."""
    w4 = w.reshape(4, h_dim, *w.shape[1:])
    pad = [(0, 0), (0, h_pad - h_dim)] + [(0, 0)] * (w.ndim - 1)
    return jnp.pad(w4, pad).reshape(4 * h_pad, *w.shape[1:])


def prepare_kernel_params(raw_params, embedding_dim):
    """Pad to lane-aligned H and pre-transpose so x @ W / h @ W hit the MXU.

    Padded gate columns have zero weights/bias, so the padded h/c columns stay
    exactly zero forever and the zero-padded W rows make them inert.
    """
    h_dim = embedding_dim
    h_pad = _round_up(max(h_dim, _LANE), _LANE)
    out = []
    for li, p in enumerate(raw_params):
        w_ih = _pad_gate_rows(p["w_ih"], h_dim, h_pad)            # (4Hp, d_in)
        w_hh = _pad_gate_rows(p["w_hh"], h_dim, h_pad)            # (4Hp, H)
        w_hh = jnp.pad(w_hh, ((0, 0), (0, h_pad - h_dim)))        # (4Hp, Hp)
        if li > 0:
            w_ih = jnp.pad(w_ih, ((0, 0), (0, h_pad - h_dim)))    # prev h is padded
        bias = _pad_gate_rows(p["b_ih"] + p["b_hh"], h_dim, h_pad)
        out.append({
            # f32 storage so every dot is F32xF32=F32 (backend-safe) and close
            # to the PyTorch f32 reference.
            "w_ih_t": w_ih.T.astype(jnp.float32),                 # (d_in[_pad], 4Hp)
            "w_hh_t": w_hh.T.astype(jnp.float32),                 # (Hp, 4Hp)
            "bias": bias.reshape(1, 4 * h_pad).astype(jnp.float32),
        })
    return out


# ------------------------------ reference -----------------------------------

def encoder_reference(x, raw_params):
    """Pure-JAX f32 reference with PyTorch nn.LSTM semantics (eval mode)."""
    batch, seq, _ = x.shape
    h_dim = raw_params[0]["w_hh"].shape[1]
    layer_in = x.astype(jnp.float32)
    for p in raw_params:
        bias = p["b_ih"] + p["b_hh"]
        h = jnp.zeros((batch, h_dim), jnp.float32)
        c = jnp.zeros((batch, h_dim), jnp.float32)
        outs = []
        for t in range(seq):
            gates = layer_in[:, t, :] @ p["w_ih"].T + h @ p["w_hh"].T + bias
            i_g = jax.nn.sigmoid(gates[:, 0 * h_dim:1 * h_dim])
            f_g = jax.nn.sigmoid(gates[:, 1 * h_dim:2 * h_dim])
            g_g = jnp.tanh(gates[:, 2 * h_dim:3 * h_dim])
            o_g = jax.nn.sigmoid(gates[:, 3 * h_dim:4 * h_dim])
            c = f_g * c + i_g * g_g
            h = o_g * jnp.tanh(c)
            outs.append(h)
        layer_in = jnp.stack(outs, axis=1)
    return layer_in[:, -1, :], layer_in


if __name__ == "__main__":
    # Small shapes consistent with the module's forward: x is (batch, seq, input_dim)
    batch, seq, input_dim = 2, 8, 16
    embedding_dim = 32
    lstm_layers = 2
    dropout = 0.1  # eval-mode forward: inter-layer dropout is inert
    # TODO(synk): training-mode inter-layer dropout is not implemented.

    key = jax.random.PRNGKey(0)
    key, kx, kp = jax.random.split(key, 3)
    x = jax.random.normal(kx, (batch, seq, input_dim), jnp.float32)

    raw_params = init_encoder_params(kp, input_dim, embedding_dim, lstm_layers)
    kernel_params = prepare_kernel_params(raw_params, embedding_dim)

    hidden, activations = encoder_forward(x, kernel_params,
                                          embedding_dim=embedding_dim)
    jax.block_until_ready((hidden, activations))

    assert hidden.shape == (batch, embedding_dim)
    assert activations.shape == (batch, seq, embedding_dim)

    # Real correctness check against a pure-JAX f32 nn.LSTM reference.
    ref_hidden, ref_acts = encoder_reference(x, raw_params)
    max_err = float(jnp.max(jnp.abs(activations - ref_acts)))
    assert bool(jnp.allclose(activations, ref_acts, atol=2e-3, rtol=2e-3)), max_err
    assert bool(jnp.allclose(hidden, ref_hidden, atol=2e-3, rtol=2e-3))
    # unidirectional LSTM invariant: hidden[-1] equals last-step activation
    assert bool(jnp.allclose(hidden, activations[:, -1, :], atol=1e-6))

    print("KERNEL_OK")
</pallas_src>

<mosaic_0001>
module attributes {stable_mosaic.version = 11 : i64} {
  func.func @_lstm_layer_kernel(%arg0: i32, %arg1: i32, %arg2: memref<8x8x128xf32, #tpu.memory_space<vmem>>, %arg3: memref<128x512xf32, #tpu.memory_space<vmem>>, %arg4: memref<128x512xf32, #tpu.memory_space<vmem>>, %arg5: memref<1x512xf32, #tpu.memory_space<vmem>>, %arg6: memref<8x8x128xf32, #tpu.memory_space<vmem>>, %arg7: memref<8x128xf32, #tpu.memory_space<vmem>>, %arg8: memref<8x128xf32, #tpu.memory_space<vmem>>, %arg9: memref<64x512xf32, #tpu.memory_space<vmem>>) attributes {dimension_semantics = [#tpu.dimension_semantics<parallel>, #tpu.dimension_semantics<arbitrary>], iteration_bounds = array<i64: 1, 1>, scalar_prefetch = 0 : i64, scratch_operands = 3 : i64, tpu.core_type = #tpu.core_type<tc>, window_params = [{transform_indices = @transform_0, window_bounds = array<i64: 8, 8, 128>}, {pipeline_mode = #tpu.pipeline_mode<synchronous>, transform_indices = @transform_1, window_bounds = array<i64: 128, 512>}, {pipeline_mode = #tpu.pipeline_mode<synchronous>, transform_indices = @transform_2, window_bounds = array<i64: 128, 512>}, {pipeline_mode = #tpu.pipeline_mode<synchronous>, transform_indices = @transform_3, window_bounds = array<i64: 1, 512>}, {transform_indices = @transform_4, window_bounds = array<i64: 8, 8, 128>}]} {
    %c0_i32 = arith.constant 0 : i32
    %0 = arith.cmpi eq, %arg1, %c0_i32 : i32
    %1 = arith.extui %0 : i1 to i32
    %c0_i32_0 = arith.constant 0 : i32
    %2 = arith.cmpi ne, %1, %c0_i32_0 : i32
    scf.if %2 {
      %cst_84 = arith.constant 0.000000e+00 : f32
      %296 = vector.broadcast %cst_84 : f32 to vector<8x128xf32>
      %c0_85 = arith.constant 0 : index
      %c0_86 = arith.constant 0 : index
      %297 = vector.load %arg7[%c0_85, %c0_86] : memref<8x128xf32, #tpu.memory_space<vmem>>, vector<8x128xf32>
      tpu.vector_store %arg7[%c0_85, %c0_86], %296 {strides = array<i32>} : memref<8x128xf32, #tpu.memory_space<vmem>>, vector<8x128xf32>,
      %cst_87 = arith.constant 0.000000e+00 : f32
      %298 = vector.broadcast %cst_87 : f32 to vector<8x128xf32>
      %c0_88 = arith.constant 0 : index
      %c0_89 = arith.constant 0 : index
      %299 = vector.load %arg8[%c0_88, %c0_89] : memref<8x128xf32, #tpu.memory_space<vmem>>, vector<8x128xf32>
      tpu.vector_store %arg8[%c0_88, %c0_89], %298 {strides = array<i32>} : memref<8x128xf32, #tpu.memory_space<vmem>>, vector<8x128xf32>,
    } else {
    }
    %c0 = arith.constant 0 : index
    %c0_1 = arith.constant 0 : index
    %c0_2 = arith.constant 0 : index
    %3 = vector.load %arg2[%c0, %c0_1, %c0_2] : memref<8x8x128xf32, #tpu.memory_space<vmem>>, vector<8x8x128xf32>
    %4 = vector.shape_cast %3 : vector<8x8x128xf32> to vector<64x128xf32>
    %c0_3 = arith.constant 0 : index
    %c0_4 = arith.constant 0 : index
    %5 = vector.load %arg3[%c0_3, %c0_4] : memref<128x512xf32, #tpu.memory_space<vmem>>, vector<128x512xf32>
    %cst = arith.constant dense<0.000000e+00> : vector<64x512xf32>
    %6 = tpu.matmul %4, %5, %cst {dimension_numbers = #tpu.dot_dimension_numbers<[1], [0], [0], [1], [0, 0, 1, 1], [], []>} : vector<64x128xf32>, vector<128x512xf32>, vector<64x512xf32> -> vector<64x512xf32>
    %c0_5 = arith.constant 0 : index
    %c0_6 = arith.constant 0 : index
    %7 = vector.load %arg5[%c0_5, %c0_6] : memref<1x512xf32, #tpu.memory_space<vmem>>, vector<1x512xf32>
    %8 = vector.broadcast %7 : vector<1x512xf32> to vector<64x512xf32>
    %9 = arith.addf %6, %8 : vector<64x512xf32>
    %c0_7 = arith.constant 0 : index
    %c0_8 = arith.constant 0 : index
    %10 = vector.load %arg9[%c0_7, %c0_8] : memref<64x512xf32, #tpu.memory_space<vmem>>, vector<64x512xf32>
    tpu.vector_store %arg9[%c0_7, %c0_8], %9 {strides = array<i32>} : memref<64x512xf32, #tpu.memory_space<vmem>>, vector<64x512xf32>,
    %c0_9 = arith.constant 0 : index
    %c0_10 = arith.constant 0 : index
    %11 = vector.load %arg4[%c0_9, %c0_10] : memref<128x512xf32, #tpu.memory_space<vmem>>, vector<128x512xf32>
    %c0_11 = arith.constant 0 : index
    %c0_12 = arith.constant 0 : index
    %12 = vector.load %arg7[%c0_11, %c0_12] : memref<8x128xf32, #tpu.memory_space<vmem>>, vector<8x128xf32>
    %c0_13 = arith.constant 0 : index
    %c0_14 = arith.constant 0 : index
    %13 = vector.load %arg8[%c0_13, %c0_14] : memref<8x128xf32, #tpu.memory_space<vmem>>, vector<8x128xf32>
    %c0_i32_15 = arith.constant 0 : i32
    %c8_i32 = arith.constant 8 : i32
    %14 = arith.muli %c0_i32_15, %c8_i32 : i32
    %15 = tpu.assume_multiple %14, 8 : i32
    %16 = arith.index_cast %15 : i32 to index
    %c0_16 = arith.constant 0 : index
    %17 = vector.load %arg9[%16, %c0_16] : memref<64x512xf32, #tpu.memory_space<vmem>>, vector<8x512xf32>
    %cst_17 = arith.constant dense<0.000000e+00> : vector<8x512xf32>
    %18 = tpu.matmul %12, %11, %cst_17 {dimension_numbers = #tpu.dot_dimension_numbers<[1], [0], [0], [1], [0, 0, 1, 1], [], []>} : vector<8x128xf32>, vector<128x512xf32>, vector<8x512xf32> -> vector<8x512xf32>
    %19 = arith.addf %17, %18 : vector<8x512xf32>
    %20 = vector.extract_strided_slice %19 {offsets = [0, 0], sizes = [8, 128], strides = [1, 1]} : vector<8x512xf32> to vector<8x128xf32>
    %21 = arith.negf %20 : vector<8x128xf32>
    %22 = math.exp %21 : vector<8x128xf32>
    %cst_18 = arith.constant 1.000000e+00 : f32
    %23 = vector.broadcast %cst_18 : f32 to vector<8x128xf32>
    %24 = arith.addf %23, %22 : vector<8x128xf32>
    %25 = arith.divf %23, %24 : vector<8x128xf32>
    %26 = vector.extract_strided_slice %19 {offsets = [0, 128], sizes = [8, 128], strides = [1, 1]} : vector<8x512xf32> to vector<8x128xf32>
    %27 = arith.negf %26 : vector<8x128xf32>
    %28 = math.exp %27 : vector<8x128xf32>
    %cst_19 = arith.constant 1.000000e+00 : f32
    %29 = vector.broadcast %cst_19 : f32 to vector<8x128xf32>
    %30 = arith.addf %29, %28 : vector<8x128xf32>
    %31 = arith.divf %29, %30 : vector<8x128xf32>
    %32 = vector.extract_strided_slice %19 {offsets = [0, 256], sizes = [8, 128], strides = [1, 1]} : vector<8x512xf32> to vector<8x128xf32>
    %33 = math.tanh %32 : vector<8x128xf32>
    %34 = vector.extract_strided_slice %19 {offsets = [0, 384], sizes = [8, 128], strides = [1, 1]} : vector<8x512xf32> to vector<8x128xf32>
    %35 = arith.negf %34 : vector<8x128xf32>
    %36 = math.exp %35 : vector<8x128xf32>
    %cst_20 = arith.constant 1.000000e+00 : f32
    %37 = vector.broadcast %cst_20 : f32 to vector<8x128xf32>
    %38 = arith.addf %37, %36 : vector<8x128xf32>
    %39 = arith.divf %37, %38 : vector<8x128xf32>
    %40 = arith.mulf %31, %13 : vector<8x128xf32>
    %41 = arith.mulf %25, %33 : vector<8x128xf32>
    %42 = arith.addf %40, %41 : vector<8x128xf32>
    %43 = math.tanh %42 : vector<8x128xf32>
    %44 = arith.mulf %39, %43 : vector<8x128xf32>
    %45 = arith.index_cast %c0_i32_15 : i32 to index
    %c0_21 = arith.constant 0 : index
    %c0_22 = arith.constant 0 : index
    %46 = vector.load %arg6[%45, %c0_21, %c0_22] : memref<8x8x128xf32, #tpu.memory_space<vmem>>, vector<1x8x128xf32>
    %47 = vector.shape_cast %46 : vector<1x8x128xf32> to vector<8x128xf32>
    %48 = vector.shape_cast %44 : vector<8x128xf32> to vector<1x8x128xf32>
    tpu.vector_store %arg6[%45, %c0_21, %c0_22], %48 {strides = array<i32>} : memref<8x8x128xf32, #tpu.memory_space<vmem>>, vector<1x8x128xf32>,
    %c1_i32 = arith.constant 1 : i32
    %c8_i32_23 = arith.constant 8 : i32
    %49 = arith.muli %c1_i32, %c8_i32_23 : i32
    %50 = tpu.assume_multiple %49, 8 : i32
    %51 = arith.index_cast %50 : i32 to index
    %c0_24 = arith.constant 0 : index
    %52 = vector.load %arg9[%51, %c0_24] : memref<64x512xf32, #tpu.memory_space<vmem>>, vector<8x512xf32>
    %cst_25 = arith.constant dense<0.000000e+00> : vector<8x512xf32>
    %53 = tpu.matmul %44, %11, %cst_25 {dimension_numbers = #tpu.dot_dimension_numbers<[1], [0], [0], [1], [0, 0, 1, 1], [], []>} : vector<8x128xf32>, vector<128x512xf32>, vector<8x512xf32> -> vector<8x512xf32>
    %54 = arith.addf %52, %53 : vector<8x512xf32>
    %55 = vector.extract_strided_slice %54 {offsets = [0, 0], sizes = [8, 128], strides = [1, 1]} : vector<8x512xf32> to vector<8x128xf32>
    %56 = arith.negf %55 : vector<8x128xf32>
    %57 = math.exp %56 : vector<8x128xf32>
    %cst_26 = arith.constant 1.000000e+00 : f32
    %58 = vector.broadcast %cst_26 : f32 to vector<8x128xf32>
    %59 = arith.addf %58, %57 : vector<8x128xf32>
    %60 = arith.divf %58, %59 : vector<8x128xf32>
    %61 = vector.extract_strided_slice %54 {offsets = [0, 128], sizes = [8, 128], strides = [1, 1]} : vector<8x512xf32> to vector<8x128xf32>
    %62 = arith.negf %61 : vector<8x128xf32>
    %63 = math.exp %62 : vector<8x128xf32>
    %cst_27 = arith.constant 1.000000e+00 : f32
    %64 = vector.broadcast %cst_27 : f32 to vector<8x128xf32>
    %65 = arith.addf %64, %63 : vector<8x128xf32>
    %66 = arith.divf %64, %65 : vector<8x128xf32>
    %67 = vector.extract_strided_slice %54 {offsets = [0, 256], sizes = [8, 128], strides = [1, 1]} : vector<8x512xf32> to vector<8x128xf32>
    %68 = math.tanh %67 : vector<8x128xf32>
    %69 = vector.extract_strided_slice %54 {offsets = [0, 384], sizes = [8, 128], strides = [1, 1]} : vector<8x512xf32> to vector<8x128xf32>
    %70 = arith.negf %69 : vector<8x128xf32>
    %71 = math.exp %70 : vector<8x128xf32>
    %cst_28 = arith.constant 1.000000e+00 : f32
    %72 = vector.broadcast %cst_28 : f32 to vector<8x128xf32>
    %73 = arith.addf %72, %71 : vector<8x128xf32>
    %74 = arith.divf %72, %73 : vector<8x128xf32>
    %75 = arith.mulf %66, %42 : vector<8x128xf32>
    %76 = arith.mulf %60, %68 : vector<8x128xf32>
    %77 = arith.addf %75, %76 : vector<8x128xf32>
    %78 = math.tanh %77 : vector<8x128xf32>
    %79 = arith.mulf %74, %78 : vector<8x128xf32>
    %80 = arith.index_cast %c1_i32 : i32 to index
    %c0_29 = arith.constant 0 : index
    %c0_30 = arith.constant 0 : index
    %81 = vector.load %arg6[%80, %c0_29, %c0_30] : memref<8x8x128xf32, #tpu.memory_space<vmem>>, vector<1x8x128xf32>
    %82 = vector.shape_cast %81 : vector<1x8x128xf32> to vector<8x128xf32>
    %83 = vector.shape_cast %79 : vector<8x128xf32> to vector<1x8x128xf32>
    tpu.vector_store %arg6[%80, %c0_29, %c0_30], %83 {strides = array<i32>} : memref<8x8x128xf32, #tpu.memory_space<vmem>>, vector<1x8x128xf32>,
    %c2_i32 = arith.constant 2 : i32
    %c8_i32_31 = arith.constant 8 : i32
    %84 = arith.muli %c2_i32, %c8_i32_31 : i32
    %85 = tpu.assume_multiple %84, 8 : i32
    %86 = arith.index_cast %85 : i32 to index
    %c0_32 = arith.constant 0 : index
    %87 = vector.load %arg9[%86, %c0_32] : memref<64x512xf32, #tpu.memory_space<vmem>>, vector<8x512xf32>
    %cst_33 = arith.constant dense<0.000000e+00> : vector<8x512xf32>
    %88 = tpu.matmul %79, %11, %cst_33 {dimension_numbers = #tpu.dot_dimension_numbers<[1], [0], [0], [1], [0, 0, 1, 1], [], []>} : vector<8x128xf32>, vector<128x512xf32>, vector<8x512xf32> -> vector<8x512xf32>
    %89 = arith.addf %87, %88 : vector<8x512xf32>
    %90 = vector.extract_strided_slice %89 {offsets = [0, 0], sizes = [8, 128], strides = [1, 1]} : vector<8x512xf32> to vector<8x128xf32>
    %91 = arith.negf %90 : vector<8x128xf32>
    %92 = math.exp %91 : vector<8x128xf32>
    %cst_34 = arith.constant 1.000000e+00 : f32
    %93 = vector.broadcast %cst_34 : f32 to vector<8x128xf32>
    %94 = arith.addf %93, %92 : vector<8x128xf32>
    %95 = arith.divf %93, %94 : vector<8x128xf32>
    %96 = vector.extract_strided_slice %89 {offsets = [0, 128], sizes = [8, 128], strides = [1, 1]} : vector<8x512xf32> to vector<8x128xf32>
    %97 = arith.negf %96 : vector<8x128xf32>
    %98 = math.exp %97 : vector<8x128xf32>
    %cst_35 = arith.constant 1.000000e+00 : f32
    %99 = vector.broadcast %cst_35 : f32 to vector<8x128xf32>
    %100 = arith.addf %99, %98 : vector<8x128xf32>
    %101 = arith.divf %99, %100 : vector<8x128xf32>
    %102 = vector.extract_strided_slice %89 {offsets = [0, 256], sizes = [8, 128], strides = [1, 1]} : vector<8x512xf32> to vector<8x128xf32>
    %103 = math.tanh %102 : vector<8x128xf32>
    %104 = vector.extract_strided_slice %89 {offsets = [0, 384], sizes = [8, 128], strides = [1, 1]} : vector<8x512xf32> to vector<8x128xf32>
    %105 = arith.negf %104 : vector<8x128xf32>
    %106 = math.exp %105 : vector<8x128xf32>
    %cst_36 = arith.constant 1.000000e+00 : f32
    %107 = vector.broadcast %cst_36 : f32 to vector<8x128xf32>
    %108 = arith.addf %107, %106 : vector<8x128xf32>
    %109 = arith.divf %107, %108 : vector<8x128xf32>
    %110 = arith.mulf %101, %77 : vector<8x128xf32>
    %111 = arith.mulf %95, %103 : vector<8x128xf32>
    %112 = arith.addf %110, %111 : vector<8x128xf32>
    %113 = math.tanh %112 : vector<8x128xf32>
    %114 = arith.mulf %109, %113 : vector<8x128xf32>
    %115 = arith.index_cast %c2_i32 : i32 to index
    %c0_37 = arith.constant 0 : index
    %c0_38 = arith.constant 0 : index
    %116 = vector.load %arg6[%115, %c0_37, %c0_38] : memref<8x8x128xf32, #tpu.memory_space<vmem>>, vector<1x8x128xf32>
    %117 = vector.shape_cast %116 : vector<1x8x128xf32> to vector<8x128xf32>
    %118 = vector.shape_cast %114 : vector<8x128xf32> to vector<1x8x128xf32>
    tpu.vector_store %arg6[%115, %c0_37, %c0_38], %118 {strides = array<i32>} : memref<8x8x128xf32, #tpu.memory_space<vmem>>, vector<1x8x128xf32>,
    %c3_i32 = arith.constant 3 : i32
    %c8_i32_39 = arith.constant 8 : i32
    %119 = arith.muli %c3_i32, %c8_i32_39 : i32
    %120 = tpu.assume_multiple %119, 8 : i32
    %121 = arith.index_cast %120 : i32 to index
    %c0_40 = arith.constant 0 : index
    %122 = vector.load %arg9[%121, %c0_40] : memref<64x512xf32, #tpu.memory_space<vmem>>, vector<8x512xf32>
    %cst_41 = arith.constant dense<0.000000e+00> : vector<8x512xf32>
    %123 = tpu.matmul %114, %11, %cst_41 {dimension_numbers = #tpu.dot_dimension_numbers<[1], [0], [0], [1], [0, 0, 1, 1], [], []>} : vector<8x128xf32>, vector<128x512xf32>, vector<8x512xf32> -> vector<8x512xf32>
    %124 = arith.addf %122, %123 : vector<8x512xf32>
    %125 = vector.extract_strided_slice %124 {offsets = [0, 0], sizes = [8, 128], strides = [1, 1]} : vector<8x512xf32> to vector<8x128xf32>
    %126 = arith.negf %125 : vector<8x128xf32>
    %127 = math.exp %126 : vector<8x128xf32>
    %cst_42 = arith.constant 1.000000e+00 : f32
    %128 = vector.broadcast %cst_42 : f32 to vector<8x128xf32>
    %129 = arith.addf %128, %127 : vector<8x128xf32>
    %130 = arith.divf %128, %129 : vector<8x128xf32>
    %131 = vector.extract_strided_slice %124 {offsets = [0, 128], sizes = [8, 128], strides = [1, 1]} : vector<8x512xf32> to vector<8x128xf32>
    %132 = arith.negf %131 : vector<8x128xf32>
    %133 = math.exp %132 : vector<8x128xf32>
    %cst_43 = arith.constant 1.000000e+00 : f32
    %134 = vector.broadcast %cst_43 : f32 to vector<8x128xf32>
    %135 = arith.addf %134, %133 : vector<8x128xf32>
    %136 = arith.divf %134, %135 : vector<8x128xf32>
    %137 = vector.extract_strided_slice %124 {offsets = [0, 256], sizes = [8, 128], strides = [1, 1]} : vector<8x512xf32> to vector<8x128xf32>
    %138 = math.tanh %137 : vector<8x128xf32>
    %139 = vector.extract_strided_slice %124 {offsets = [0, 384], sizes = [8, 128], strides = [1, 1]} : vector<8x512xf32> to vector<8x128xf32>
    %140 = arith.negf %139 : vector<8x128xf32>
    %141 = math.exp %140 : vector<8x128xf32>
    %cst_44 = arith.constant 1.000000e+00 : f32
    %142 = vector.broadcast %cst_44 : f32 to vector<8x128xf32>
    %143 = arith.addf %142, %141 : vector<8x128xf32>
    %144 = arith.divf %142, %143 : vector<8x128xf32>
    %145 = arith.mulf %136, %112 : vector<8x128xf32>
    %146 = arith.mulf %130, %138 : vector<8x128xf32>
    %147 = arith.addf %145, %146 : vector<8x128xf32>
    %148 = math.tanh %147 : vector<8x128xf32>
    %149 = arith.mulf %144, %148 : vector<8x128xf32>
    %150 = arith.index_cast %c3_i32 : i32 to index
    %c0_45 = arith.constant 0 : index
    %c0_46 = arith.constant 0 : index
    %151 = vector.load %arg6[%150, %c0_45, %c0_46] : memref<8x8x128xf32, #tpu.memory_space<vmem>>, vector<1x8x128xf32>
    %152 = vector.shape_cast %151 : vector<1x8x128xf32> to vector<8x128xf32>
    %153 = vector.shape_cast %149 : vector<8x128xf32> to vector<1x8x128xf32>
    tpu.vector_store %arg6[%150, %c0_45, %c0_46], %153 {strides = array<i32>} : memref<8x8x128xf32, #tpu.memory_space<vmem>>, vector<1x8x128xf32>,
    %c4_i32 = arith.constant 4 : i32
    %c8_i32_47 = arith.constant 8 : i32
    %154 = arith.muli %c4_i32, %c8_i32_47 : i32
    %155 = tpu.assume_multiple %154, 8 : i32
    %156 = arith.index_cast %155 : i32 to index
    %c0_48 = arith.constant 0 : index
    %157 = vector.load %arg9[%156, %c0_48] : memref<64x512xf32, #tpu.memory_space<vmem>>, vector<8x512xf32>
    %cst_49 = arith.constant dense<0.000000e+00> : vector<8x512xf32>
    %158 = tpu.matmul %149, %11, %cst_49 {dimension_numbers = #tpu.dot_dimension_numbers<[1], [0], [0], [1], [0, 0, 1, 1], [], []>} : vector<8x128xf32>, vector<128x512xf32>, vector<8x512xf32> -> vector<8x512xf32>
    %159 = arith.addf %157, %158 : vector<8x512xf32>
    %160 = vector.extract_strided_slice %159 {offsets = [0, 0], sizes = [8, 128], strides = [1, 1]} : vector<8x512xf32> to vector<8x128xf32>
    %161 = arith.negf %160 : vector<8x128xf32>
    %162 = math.exp %161 : vector<8x128xf32>
    %cst_50 = arith.constant 1.000000e+00 : f32
    %163 = vector.broadcast %cst_50 : f32 to vector<8x128xf32>
    %164 = arith.addf %163, %162 : vector<8x128xf32>
    %165 = arith.divf %163, %164 : vector<8x128xf32>
    %166 = vector.extract_strided_slice %159 {offsets = [0, 128], sizes = [8, 128], strides = [1, 1]} : vector<8x512xf32> to vector<8x128xf32>
    %167 = arith.negf %166 : vector<8x128xf32>
    %168 = math.exp %167 : vector<8x128xf32>
    %cst_51 = arith.constant 1.000000e+00 : f32
    %169 = vector.broadcast %cst_51 : f32 to vector<8x128xf32>
    %170 = arith.addf %169, %168 : vector<8x128xf32>
    %171 = arith.divf %169, %170 : vector<8x128xf32>
    %172 = vector.extract_strided_slice %159 {offsets = [0, 256], sizes = [8, 128], strides = [1, 1]} : vector<8x512xf32> to vector<8x128xf32>
    %173 = math.tanh %172 : vector<8x128xf32>
    %174 = vector.extract_strided_slice %159 {offsets = [0, 384], sizes = [8, 128], strides = [1, 1]} : vector<8x512xf32> to vector<8x128xf32>
    %175 = arith.negf %174 : vector<8x128xf32>
    %176 = math.exp %175 : vector<8x128xf32>
    %cst_52 = arith.constant 1.000000e+00 : f32
    %177 = vector.broadcast %cst_52 : f32 to vector<8x128xf32>
    %178 = arith.addf %177, %176 : vector<8x128xf32>
    %179 = arith.divf %177, %178 : vector<8x128xf32>
    %180 = arith.mulf %171, %147 : vector<8x128xf32>
    %181 = arith.mulf %165, %173 : vector<8x128xf32>
    %182 = arith.addf %180, %181 : vector<8x128xf32>
    %183 = math.tanh %182 : vector<8x128xf32>
    %184 = arith.mulf %179, %183 : vector<8x128xf32>
    %185 = arith.index_cast %c4_i32 : i32 to index
    %c0_53 = arith.constant 0 : index
    %c0_54 = arith.constant 0 : index
    %186 = vector.load %arg6[%185, %c0_53, %c0_54] : memref<8x8x128xf32, #tpu.memory_space<vmem>>, vector<1x8x128xf32>
    %187 = vector.shape_cast %186 : vector<1x8x128xf32> to vector<8x128xf32>
    %188 = vector.shape_cast %184 : vector<8x128xf32> to vector<1x8x128xf32>
    tpu.vector_store %arg6[%185, %c0_53, %c0_54], %188 {strides = array<i32>} : memref<8x8x128xf32, #tpu.memory_space<vmem>>, vector<1x8x128xf32>,
    %c5_i32 = arith.constant 5 : i32
    %c8_i32_55 = arith.constant 8 : i32
    %189 = arith.muli %c5_i32, %c8_i32_55 : i32
    %190 = tpu.assume_multiple %189, 8 : i32
    %191 = arith.index_cast %190 : i32 to index
    %c0_56 = arith.constant 0 : index
    %192 = vector.load %arg9[%191, %c0_56] : memref<64x512xf32, #tpu.memory_space<vmem>>, vector<8x512xf32>
    %cst_57 = arith.constant dense<0.000000e+00> : vector<8x512xf32>
    %193 = tpu.matmul %184, %11, %cst_57 {dimension_numbers = #tpu.dot_dimension_numbers<[1], [0], [0], [1], [0, 0, 1, 1], [], []>} : vector<8x128xf32>, vector<128x512xf32>, vector<8x512xf32> -> vector<8x512xf32>
    %194 = arith.addf %192, %193 : vector<8x512xf32>
    %195 = vector.extract_strided_slice %194 {offsets = [0, 0], sizes = [8, 128], strides = [1, 1]} : vector<8x512xf32> to vector<8x128xf32>
    %196 = arith.negf %195 : vector<8x128xf32>
    %197 = math.exp %196 : vector<8x128xf32>
    %cst_58 = arith.constant 1.000000e+00 : f32
    %198 = vector.broadcast %cst_58 : f32 to vector<8x128xf32>
    %199 = arith.addf %198, %197 : vector<8x128xf32>
    %200 = arith.divf %198, %199 : vector<8x128xf32>
    %201 = vector.extract_strided_slice %194 {offsets = [0, 128], sizes = [8, 128], strides = [1, 1]} : vector<8x512xf32> to vector<8x128xf32>
    %202 = arith.negf %201 : vector<8x128xf32>
    %203 = math.exp %202 : vector<8x128xf32>
    %cst_59 = arith.constant 1.000000e+00 : f32
    %204 = vector.broadcast %cst_59 : f32 to vector<8x128xf32>
    %205 = arith.addf %204, %203 : vector<8x128xf32>
    %206 = arith.divf %204, %205 : vector<8x128xf32>
    %207 = vector.extract_strided_slice %194 {offsets = [0, 256], sizes = [8, 128], strides = [1, 1]} : vector<8x512xf32> to vector<8x128xf32>
    %208 = math.tanh %207 : vector<8x128xf32>
    %209 = vector.extract_strided_slice %194 {offsets = [0, 384], sizes = [8, 128], strides = [1, 1]} : vector<8x512xf32> to vector<8x128xf32>
    %210 = arith.negf %209 : vector<8x128xf32>
    %211 = math.exp %210 : vector<8x128xf32>
    %cst_60 = arith.constant 1.000000e+00 : f32
    %212 = vector.broadcast %cst_60 : f32 to vector<8x128xf32>
    %213 = arith.addf %212, %211 : vector<8x128xf32>
    %214 = arith.divf %212, %213 : vector<8x128xf32>
    %215 = arith.mulf %206, %182 : vector<8x128xf32>
    %216 = arith.mulf %200, %208 : vector<8x128xf32>
    %217 = arith.addf %215, %216 : vector<8x128xf32>
    %218 = math.tanh %217 : vector<8x128xf32>
    %219 = arith.mulf %214, %218 : vector<8x128xf32>
    %220 = arith.index_cast %c5_i32 : i32 to index
    %c0_61 = arith.constant 0 : index
    %c0_62 = arith.constant 0 : index
    %221 = vector.load %arg6[%220, %c0_61, %c0_62] : memref<8x8x128xf32, #tpu.memory_space<vmem>>, vector<1x8x128xf32>
    %222 = vector.shape_cast %221 : vector<1x8x128xf32> to vector<8x128xf32>
    %223 = vector.shape_cast %219 : vector<8x128xf32> to vector<1x8x128xf32>
    tpu.vector_store %arg6[%220, %c0_61, %c0_62], %223 {strides = array<i32>} : memref<8x8x128xf32, #tpu.memory_space<vmem>>, vector<1x8x128xf32>,
    %c6_i32 = arith.constant 6 : i32
    %c8_i32_63 = arith.constant 8 : i32
    %224 = arith.muli %c6_i32, %c8_i32_63 : i32
    %225 = tpu.assume_multiple %224, 8 : i32
    %226 = arith.index_cast %225 : i32 to index
    %c0_64 = arith.constant 0 : index
    %227 = vector.load %arg9[%226, %c0_64] : memref<64x512xf32, #tpu.memory_space<vmem>>, vector<8x512xf32>
    %cst_65 = arith.constant dense<0.000000e+00> : vector<8x512xf32>
    %228 = tpu.matmul %219, %11, %cst_65 {dimension_numbers = #tpu.dot_dimension_numbers<[1], [0], [0], [1], [0, 0, 1, 1], [], []>} : vector<8x128xf32>, vector<128x512xf32>, vector<8x512xf32> -> vector<8x512xf32>
    %229 = arith.addf %227, %228 : vector<8x512xf32>
    %230 = vector.extract_strided_slice %229 {offsets = [0, 0], sizes = [8, 128], strides = [1, 1]} : vector<8x512xf32> to vector<8x128xf32>
    %231 = arith.negf %230 : vector<8x128xf32>
    %232 = math.exp %231 : vector<8x128xf32>
    %cst_66 = arith.constant 1.000000e+00 : f32
    %233 = vector.broadcast %cst_66 : f32 to vector<8x128xf32>
    %234 = arith.addf %233, %232 : vector<8x128xf32>
    %235 = arith.divf %233, %234 : vector<8x128xf32>
    %236 = vector.extract_strided_slice %229 {offsets = [0, 128], sizes = [8, 128], strides = [1, 1]} : vector<8x512xf32> to vector<8x128xf32>
    %237 = arith.negf %236 : vector<8x128xf32>
    %238 = math.exp %237 : vector<8x128xf32>
    %cst_67 = arith.constant 1.000000e+00 : f32
    %239 = vector.broadcast %cst_67 : f32 to vector<8x128xf32>
    %240 = arith.addf %239, %238 : vector<8x128xf32>
    %241 = arith.divf %239, %240 : vector<8x128xf32>
    %242 = vector.extract_strided_slice %229 {offsets = [0, 256], sizes = [8, 128], strides = [1, 1]} : vector<8x512xf32> to vector<8x128xf32>
    %243 = math.tanh %242 : vector<8x128xf32>
    %244 = vector.extract_strided_slice %229 {offsets = [0, 384], sizes = [8, 128], strides = [1, 1]} : vector<8x512xf32> to vector<8x128xf32>
    %245 = arith.negf %244 : vector<8x128xf32>
    %246 = math.exp %245 : vector<8x128xf32>
    %cst_68 = arith.constant 1.000000e+00 : f32
    %247 = vector.broadcast %cst_68 : f32 to vector<8x128xf32>
    %248 = arith.addf %247, %246 : vector<8x128xf32>
    %249 = arith.divf %247, %248 : vector<8x128xf32>
    %250 = arith.mulf %241, %217 : vector<8x128xf32>
    %251 = arith.mulf %235, %243 : vector<8x128xf32>
    %252 = arith.addf %250, %251 : vector<8x128xf32>
    %253 = math.tanh %252 : vector<8x128xf32>
    %254 = arith.mulf %249, %253 : vector<8x128xf32>
    %255 = arith.index_cast %c6_i32 : i32 to index
    %c0_69 = arith.constant 0 : index
    %c0_70 = arith.constant 0 : index
    %256 = vector.load %arg6[%255, %c0_69, %c0_70] : memref<8x8x128xf32, #tpu.memory_space<vmem>>, vector<1x8x128xf32>
    %257 = vector.shape_cast %256 : vector<1x8x128xf32> to vector<8x128xf32>
    %258 = vector.shape_cast %254 : vector<8x128xf32> to vector<1x8x128xf32>
    tpu.vector_store %arg6[%255, %c0_69, %c0_70], %258 {strides = array<i32>} : memref<8x8x128xf32, #tpu.memory_space<vmem>>, vector<1x8x128xf32>,
    %c7_i32 = arith.constant 7 : i32
    %c8_i32_71 = arith.constant 8 : i32
    %259 = arith.muli %c7_i32, %c8_i32_71 : i32
    %260 = tpu.assume_multiple %259, 8 : i32
    %261 = arith.index_cast %260 : i32 to index
    %c0_72 = arith.constant 0 : index
    %262 = vector.load %arg9[%261, %c0_72] : memref<64x512xf32, #tpu.memory_space<vmem>>, vector<8x512xf32>
    %cst_73 = arith.constant dense<0.000000e+00> : vector<8x512xf32>
    %263 = tpu.matmul %254, %11, %cst_73 {dimension_numbers = #tpu.dot_dimension_numbers<[1], [0], [0], [1], [0, 0, 1, 1], [], []>} : vector<8x128xf32>, vector<128x512xf32>, vector<8x512xf32> -> vector<8x512xf32>
    %264 = arith.addf %262, %263 : vector<8x512xf32>
    %265 = vector.extract_strided_slice %264 {offsets = [0, 0], sizes = [8, 128], strides = [1, 1]} : vector<8x512xf32> to vector<8x128xf32>
    %266 = arith.negf %265 : vector<8x128xf32>
    %267 = math.exp %266 : vector<8x128xf32>
    %cst_74 = arith.constant 1.000000e+00 : f32
    %268 = vector.broadcast %cst_74 : f32 to vector<8x128xf32>
    %269 = arith.addf %268, %267 : vector<8x128xf32>
    %270 = arith.divf %268, %269 : vector<8x128xf32>
    %271 = vector.extract_strided_slice %264 {offsets = [0, 128], sizes = [8, 128], strides = [1, 1]} : vector<8x512xf32> to vector<8x128xf32>
    %272 = arith.negf %271 : vector<8x128xf32>
    %273 = math.exp %272 : vector<8x128xf32>
    %cst_75 = arith.constant 1.000000e+00 : f32
    %274 = vector.broadcast %cst_75 : f32 to vector<8x128xf32>
    %275 = arith.addf %274, %273 : vector<8x128xf32>
    %276 = arith.divf %274, %275 : vector<8x128xf32>
    %277 = vector.extract_strided_slice %264 {offsets = [0, 256], sizes = [8, 128], strides = [1, 1]} : vector<8x512xf32> to vector<8x128xf32>
    %278 = math.tanh %277 : vector<8x128xf32>
    %279 = vector.extract_strided_slice %264 {offsets = [0, 384], sizes = [8, 128], strides = [1, 1]} : vector<8x512xf32> to vector<8x128xf32>
    %280 = arith.negf %279 : vector<8x128xf32>
    %281 = math.exp %280 : vector<8x128xf32>
    %cst_76 = arith.constant 1.000000e+00 : f32
    %282 = vector.broadcast %cst_76 : f32 to vector<8x128xf32>
    %283 = arith.addf %282, %281 : vector<8x128xf32>
    %284 = arith.divf %282, %283 : vector<8x128xf32>
    %285 = arith.mulf %276, %252 : vector<8x128xf32>
    %286 = arith.mulf %270, %278 : vector<8x128xf32>
    %287 = arith.addf %285, %286 : vector<8x128xf32>
    %288 = math.tanh %287 : vector<8x128xf32>
    %289 = arith.mulf %284, %288 : vector<8x128xf32>
    %290 = arith.index_cast %c7_i32 : i32 to index
    %c0_77 = arith.constant 0 : index
    %c0_78 = arith.constant 0 : index
    %291 = vector.load %arg6[%290, %c0_77, %c0_78] : memref<8x8x128xf32, #tpu.memory_space<vmem>>, vector<1x8x128xf32>
    %292 = vector.shape_cast %291 : vector<1x8x128xf32> to vector<8x128xf32>
    %293 = vector.shape_cast %289 : vector<8x128xf32> to vector<1x8x128xf32>
    tpu.vector_store %arg6[%290, %c0_77, %c0_78], %293 {strides = array<i32>} : memref<8x8x128xf32, #tpu.memory_space<vmem>>, vector<1x8x128xf32>,
    %c8_i32_79 = arith.constant 8 : i32
    %c0_80 = arith.constant 0 : index
    %c0_81 = arith.constant 0 : index
    %294 = vector.load %arg7[%c0_80, %c0_81] : memref<8x128xf32, #tpu.memory_space<vmem>>, vector<8x128xf32>
    tpu.vector_store %arg7[%c0_80, %c0_81], %289 {strides = array<i32>} : memref<8x128xf32, #tpu.memory_space<vmem>>, vector<8x128xf32>,
    %c0_82 = arith.constant 0 : index
    %c0_83 = arith.constant 0 : index
    %295 = vector.load %arg8[%c0_82, %c0_83] : memref<8x128xf32, #tpu.memory_space<vmem>>, vector<8x128xf32>
    tpu.vector_store %arg8[%c0_82, %c0_83], %287 {strides = array<i32>} : memref<8x128xf32, #tpu.memory_space<vmem>>, vector<8x128xf32>,
    return
  }
  func.func @transform_0(%arg0: i32, %arg1: i32) -> (i32, i32, i32) {
    %c0_i32 = arith.constant 0 : i32
    %c0_i32_0 = arith.constant 0 : i32
    return %arg1, %arg0, %c0_i32 : i32, i32, i32
  }
  func.func @transform_1(%arg0: i32, %arg1: i32) -> (i32, i32) {
    %c0_i32 = arith.constant 0 : i32
    %c0_i32_0 = arith.constant 0 : i32
    %c0_i32_1 = arith.constant 0 : i32
    return %c0_i32, %c0_i32_0 : i32, i32
  }
  func.func @transform_2(%arg0: i32, %arg1: i32) -> (i32, i32) {
    %c0_i32 = arith.constant 0 : i32
    %c0_i32_0 = arith.constant 0 : i32
    %c0_i32_1 = arith.constant 0 : i32
    return %c0_i32, %c0_i32_0 : i32, i32
  }
  func.func @transform_3(%arg0: i32, %arg1: i32) -> (i32, i32) {
    %c0_i32 = arith.constant 0 : i32
    %c0_i32_0 = arith.constant 0 : i32
    %c0_i32_1 = arith.constant 0 : i32
    return %c0_i32, %c0_i32_0 : i32, i32
  }
  func.func @transform_4(%arg0: i32, %arg1: i32) -> (i32, i32, i32) {
    %c0_i32 = arith.constant 0 : i32
    %c0_i32_0 = arith.constant 0 : i32
    return %arg1, %arg0, %c0_i32 : i32, i32, i32
  }
}

module attributes {stable_mosaic.version = 11 : i64} {
  func.func @_lstm_layer_kernel(%arg0: i32, %arg1: i32, %arg2: memref<8x8x16xf32, #tpu.memory_space<vmem>>, %arg3: memref<16x512xf32, #tpu.memory_space<vmem>>, %arg4: memref<128x512xf32, #tpu.memory_space<vmem>>, %arg5: memref<1x512xf32, #tpu.memory_space<vmem>>, %arg6: memref<8x8x128xf32, #tpu.memory_space<vmem>>, %arg7: memref<8x128xf32, #tpu.memory_space<vmem>>, %arg8: memref<8x128xf32, #tpu.memory_space<vmem>>, %arg9: memref<64x512xf32, #tpu.memory_space<vmem>>) attributes {dimension_semantics = [#tpu.dimension_semantics<parallel>, #tpu.dimension_semantics<arbitrary>], iteration_bounds = array<i64: 1, 1>, scalar_prefetch = 0 : i64, scratch_operands = 3 : i64, tpu.core_type = #tpu.core_type<tc>, window_params = [{transform_indices = @transform_0, window_bounds = array<i64: 8, 8, 16>}, {pipeline_mode = #tpu.pipeline_mode<synchronous>, transform_indices = @transform_1, window_bounds = array<i64: 16, 512>}, {pipeline_mode = #tpu.pipeline_mode<synchronous>, transform_indices = @transform_2, window_bounds = array<i64: 128, 512>}, {pipeline_mode = #tpu.pipeline_mode<synchronous>, transform_indices = @transform_3, window_bounds = array<i64: 1, 512>}, {transform_indices = @transform_4, window_bounds = array<i64: 8, 8, 128>}]} {
    %c0_i32 = arith.constant 0 : i32
    %0 = arith.cmpi eq, %arg1, %c0_i32 : i32
    %1 = arith.extui %0 : i1 to i32
    %c0_i32_0 = arith.constant 0 : i32
    %2 = arith.cmpi ne, %1, %c0_i32_0 : i32
    scf.if %2 {
      %cst_84 = arith.constant 0.000000e+00 : f32
      %296 = vector.broadcast %cst_84 : f32 to vector<8x128xf32>
      %c0_85 = arith.constant 0 : index
      %c0_86 = arith.constant 0 : index
      %297 = vector.load %arg7[%c0_85, %c0_86] : memref<8x128xf32, #tpu.memory_space<vmem>>, vector<8x128xf32>
      tpu.vector_store %arg7[%c0_85, %c0_86], %296 {strides = array<i32>} : memref<8x128xf32, #tpu.memory_space<vmem>>, vector<8x128xf32>,
      %cst_87 = arith.constant 0.000000e+00 : f32
      %298 = vector.broadcast %cst_87 : f32 to vector<8x128xf32>
      %c0_88 = arith.constant 0 : index
      %c0_89 = arith.constant 0 : index
      %299 = vector.load %arg8[%c0_88, %c0_89] : memref<8x128xf32, #tpu.memory_space<vmem>>, vector<8x128xf32>
      tpu.vector_store %arg8[%c0_88, %c0_89], %298 {strides = array<i32>} : memref<8x128xf32, #tpu.memory_space<vmem>>, vector<8x128xf32>,
    } else {
    }
    %c0 = arith.constant 0 : index
    %c0_1 = arith.constant 0 : index
    %c0_2 = arith.constant 0 : index
    %3 = vector.load %arg2[%c0, %c0_1, %c0_2] : memref<8x8x16xf32, #tpu.memory_space<vmem>>, vector<8x8x16xf32>
    %4 = vector.shape_cast %3 : vector<8x8x16xf32> to vector<64x16xf32>
    %c0_3 = arith.constant 0 : index
    %c0_4 = arith.constant 0 : index
    %5 = vector.load %arg3[%c0_3, %c0_4] : memref<16x512xf32, #tpu.memory_space<vmem>>, vector<16x512xf32>
    %cst = arith.constant dense<0.000000e+00> : vector<64x512xf32>
    %6 = tpu.matmul %4, %5, %cst {dimension_numbers = #tpu.dot_dimension_numbers<[1], [0], [0], [1], [0, 0, 1, 1], [], []>} : vector<64x16xf32>, vector<16x512xf32>, vector<64x512xf32> -> vector<64x512xf32>
    %c0_5 = arith.constant 0 : index
    %c0_6 = arith.constant 0 : index
    %7 = vector.load %arg5[%c0_5, %c0_6] : memref<1x512xf32, #tpu.memory_space<vmem>>, vector<1x512xf32>
    %8 = vector.broadcast %7 : vector<1x512xf32> to vector<64x512xf32>
    %9 = arith.addf %6, %8 : vector<64x512xf32>
    %c0_7 = arith.constant 0 : index
    %c0_8 = arith.constant 0 : index
    %10 = vector.load %arg9[%c0_7, %c0_8] : memref<64x512xf32, #tpu.memory_space<vmem>>, vector<64x512xf32>
    tpu.vector_store %arg9[%c0_7, %c0_8], %9 {strides = array<i32>} : memref<64x512xf32, #tpu.memory_space<vmem>>, vector<64x512xf32>,
    %c0_9 = arith.constant 0 : index
    %c0_10 = arith.constant 0 : index
    %11 = vector.load %arg4[%c0_9, %c0_10] : memref<128x512xf32, #tpu.memory_space<vmem>>, vector<128x512xf32>
    %c0_11 = arith.constant 0 : index
    %c0_12 = arith.constant 0 : index
    %12 = vector.load %arg7[%c0_11, %c0_12] : memref<8x128xf32, #tpu.memory_space<vmem>>, vector<8x128xf32>
    %c0_13 = arith.constant 0 : index
    %c0_14 = arith.constant 0 : index
    %13 = vector.load %arg8[%c0_13, %c0_14] : memref<8x128xf32, #tpu.memory_space<vmem>>, vector<8x128xf32>
    %c0_i32_15 = arith.constant 0 : i32
    %c8_i32 = arith.constant 8 : i32
    %14 = arith.muli %c0_i32_15, %c8_i32 : i32
    %15 = tpu.assume_multiple %14, 8 : i32
    %16 = arith.index_cast %15 : i32 to index
    %c0_16 = arith.constant 0 : index
    %17 = vector.load %arg9[%16, %c0_16] : memref<64x512xf32, #tpu.memory_space<vmem>>, vector<8x512xf32>
    %cst_17 = arith.constant dense<0.000000e+00> : vector<8x512xf32>
    %18 = tpu.matmul %12, %11, %cst_17 {dimension_numbers = #tpu.dot_dimension_numbers<[1], [0], [0], [1], [0, 0, 1, 1], [], []>} : vector<8x128xf32>, vector<128x512xf32>, vector<8x512xf32> -> vector<8x512xf32>
    %19 = arith.addf %17, %18 : vector<8x512xf32>
    %20 = vector.extract_strided_slice %19 {offsets = [0, 0], sizes = [8, 128], strides = [1, 1]} : vector<8x512xf32> to vector<8x128xf32>
    %21 = arith.negf %20 : vector<8x128xf32>
    %22 = math.exp %21 : vector<8x128xf32>
    %cst_18 = arith.constant 1.000000e+00 : f32
    %23 = vector.broadcast %cst_18 : f32 to vector<8x128xf32>
    %24 = arith.addf %23, %22 : vector<8x128xf32>
    %25 = arith.divf %23, %24 : vector<8x128xf32>
    %26 = vector.extract_strided_slice %19 {offsets = [0, 128], sizes = [8, 128], strides = [1, 1]} : vector<8x512xf32> to vector<8x128xf32>
    %27 = arith.negf %26 : vector<8x128xf32>
    %28 = math.exp %27 : vector<8x128xf32>
    %cst_19 = arith.constant 1.000000e+00 : f32
    %29 = vector.broadcast %cst_19 : f32 to vector<8x128xf32>
    %30 = arith.addf %29, %28 : vector<8x128xf32>
    %31 = arith.divf %29, %30 : vector<8x128xf32>
    %32 = vector.extract_strided_slice %19 {offsets = [0, 256], sizes = [8, 128], strides = [1, 1]} : vector<8x512xf32> to vector<8x128xf32>
    %33 = math.tanh %32 : vector<8x128xf32>
    %34 = vector.extract_strided_slice %19 {offsets = [0, 384], sizes = [8, 128], strides = [1, 1]} : vector<8x512xf32> to vector<8x128xf32>
    %35 = arith.negf %34 : vector<8x128xf32>
    %36 = math.exp %35 : vector<8x128xf32>
    %cst_20 = arith.constant 1.000000e+00 : f32
    %37 = vector.broadcast %cst_20 : f32 to vector<8x128xf32>
    %38 = arith.addf %37, %36 : vector<8x128xf32>
    %39 = arith.divf %37, %38 : vector<8x128xf32>
    %40 = arith.mulf %31, %13 : vector<8x128xf32>
    %41 = arith.mulf %25, %33 : vector<8x128xf32>
    %42 = arith.addf %40, %41 : vector<8x128xf32>
    %43 = math.tanh %42 : vector<8x128xf32>
    %44 = arith.mulf %39, %43 : vector<8x128xf32>
    %45 = arith.index_cast %c0_i32_15 : i32 to index
    %c0_21 = arith.constant 0 : index
    %c0_22 = arith.constant 0 : index
    %46 = vector.load %arg6[%45, %c0_21, %c0_22] : memref<8x8x128xf32, #tpu.memory_space<vmem>>, vector<1x8x128xf32>
    %47 = vector.shape_cast %46 : vector<1x8x128xf32> to vector<8x128xf32>
    %48 = vector.shape_cast %44 : vector<8x128xf32> to vector<1x8x128xf32>
    tpu.vector_store %arg6[%45, %c0_21, %c0_22], %48 {strides = array<i32>} : memref<8x8x128xf32, #tpu.memory_space<vmem>>, vector<1x8x128xf32>,
    %c1_i32 = arith.constant 1 : i32
    %c8_i32_23 = arith.constant 8 : i32
    %49 = arith.muli %c1_i32, %c8_i32_23 : i32
    %50 = tpu.assume_multiple %49, 8 : i32
    %51 = arith.index_cast %50 : i32 to index
    %c0_24 = arith.constant 0 : index
    %52 = vector.load %arg9[%51, %c0_24] : memref<64x512xf32, #tpu.memory_space<vmem>>, vector<8x512xf32>
    %cst_25 = arith.constant dense<0.000000e+00> : vector<8x512xf32>
    %53 = tpu.matmul %44, %11, %cst_25 {dimension_numbers = #tpu.dot_dimension_numbers<[1], [0], [0], [1], [0, 0, 1, 1], [], []>} : vector<8x128xf32>, vector<128x512xf32>, vector<8x512xf32> -> vector<8x512xf32>
    %54 = arith.addf %52, %53 : vector<8x512xf32>
    %55 = vector.extract_strided_slice %54 {offsets = [0, 0], sizes = [8, 128], strides = [1, 1]} : vector<8x512xf32> to vector<8x128xf32>
    %56 = arith.negf %55 : vector<8x128xf32>
    %57 = math.exp %56 : vector<8x128xf32>
    %cst_26 = arith.constant 1.000000e+00 : f32
    %58 = vector.broadcast %cst_26 : f32 to vector<8x128xf32>
    %59 = arith.addf %58, %57 : vector<8x128xf32>
    %60 = arith.divf %58, %59 : vector<8x128xf32>
    %61 = vector.extract_strided_slice %54 {offsets = [0, 128], sizes = [8, 128], strides = [1, 1]} : vector<8x512xf32> to vector<8x128xf32>
    %62 = arith.negf %61 : vector<8x128xf32>
    %63 = math.exp %62 : vector<8x128xf32>
    %cst_27 = arith.constant 1.000000e+00 : f32
    %64 = vector.broadcast %cst_27 : f32 to vector<8x128xf32>
    %65 = arith.addf %64, %63 : vector<8x128xf32>
    %66 = arith.divf %64, %65 : vector<8x128xf32>
    %67 = vector.extract_strided_slice %54 {offsets = [0, 256], sizes = [8, 128], strides = [1, 1]} : vector<8x512xf32> to vector<8x128xf32>
    %68 = math.tanh %67 : vector<8x128xf32>
    %69 = vector.extract_strided_slice %54 {offsets = [0, 384], sizes = [8, 128], strides = [1, 1]} : vector<8x512xf32> to vector<8x128xf32>
    %70 = arith.negf %69 : vector<8x128xf32>
    %71 = math.exp %70 : vector<8x128xf32>
    %cst_28 = arith.constant 1.000000e+00 : f32
    %72 = vector.broadcast %cst_28 : f32 to vector<8x128xf32>
    %73 = arith.addf %72, %71 : vector<8x128xf32>
    %74 = arith.divf %72, %73 : vector<8x128xf32>
    %75 = arith.mulf %66, %42 : vector<8x128xf32>
    %76 = arith.mulf %60, %68 : vector<8x128xf32>
    %77 = arith.addf %75, %76 : vector<8x128xf32>
    %78 = math.tanh %77 : vector<8x128xf32>
    %79 = arith.mulf %74, %78 : vector<8x128xf32>
    %80 = arith.index_cast %c1_i32 : i32 to index
    %c0_29 = arith.constant 0 : index
    %c0_30 = arith.constant 0 : index
    %81 = vector.load %arg6[%80, %c0_29, %c0_30] : memref<8x8x128xf32, #tpu.memory_space<vmem>>, vector<1x8x128xf32>
    %82 = vector.shape_cast %81 : vector<1x8x128xf32> to vector<8x128xf32>
    %83 = vector.shape_cast %79 : vector<8x128xf32> to vector<1x8x128xf32>
    tpu.vector_store %arg6[%80, %c0_29, %c0_30], %83 {strides = array<i32>} : memref<8x8x128xf32, #tpu.memory_space<vmem>>, vector<1x8x128xf32>,
    %c2_i32 = arith.constant 2 : i32
    %c8_i32_31 = arith.constant 8 : i32
    %84 = arith.muli %c2_i32, %c8_i32_31 : i32
    %85 = tpu.assume_multiple %84, 8 : i32
    %86 = arith.index_cast %85 : i32 to index
    %c0_32 = arith.constant 0 : index
    %87 = vector.load %arg9[%86, %c0_32] : memref<64x512xf32, #tpu.memory_space<vmem>>, vector<8x512xf32>
    %cst_33 = arith.constant dense<0.000000e+00> : vector<8x512xf32>
    %88 = tpu.matmul %79, %11, %cst_33 {dimension_numbers = #tpu.dot_dimension_numbers<[1], [0], [0], [1], [0, 0, 1, 1], [], []>} : vector<8x128xf32>, vector<128x512xf32>, vector<8x512xf32> -> vector<8x512xf32>
    %89 = arith.addf %87, %88 : vector<8x512xf32>
    %90 = vector.extract_strided_slice %89 {offsets = [0, 0], sizes = [8, 128], strides = [1, 1]} : vector<8x512xf32> to vector<8x128xf32>
    %91 = arith.negf %90 : vector<8x128xf32>
    %92 = math.exp %91 : vector<8x128xf32>
    %cst_34 = arith.constant 1.000000e+00 : f32
    %93 = vector.broadcast %cst_34 : f32 to vector<8x128xf32>
    %94 = arith.addf %93, %92 : vector<8x128xf32>
    %95 = arith.divf %93, %94 : vector<8x128xf32>
    %96 = vector.extract_strided_slice %89 {offsets = [0, 128], sizes = [8, 128], strides = [1, 1]} : vector<8x512xf32> to vector<8x128xf32>
    %97 = arith.negf %96 : vector<8x128xf32>
    %98 = math.exp %97 : vector<8x128xf32>
    %cst_35 = arith.constant 1.000000e+00 : f32
    %99 = vector.broadcast %cst_35 : f32 to vector<8x128xf32>
    %100 = arith.addf %99, %98 : vector<8x128xf32>
    %101 = arith.divf %99, %100 : vector<8x128xf32>
    %102 = vector.extract_strided_slice %89 {offsets = [0, 256], sizes = [8, 128], strides = [1, 1]} : vector<8x512xf32> to vector<8x128xf32>
    %103 = math.tanh %102 : vector<8x128xf32>
    %104 = vector.extract_strided_slice %89 {offsets = [0, 384], sizes = [8, 128], strides = [1, 1]} : vector<8x512xf32> to vector<8x128xf32>
    %105 = arith.negf %104 : vector<8x128xf32>
    %106 = math.exp %105 : vector<8x128xf32>
    %cst_36 = arith.constant 1.000000e+00 : f32
    %107 = vector.broadcast %cst_36 : f32 to vector<8x128xf32>
    %108 = arith.addf %107, %106 : vector<8x128xf32>
    %109 = arith.divf %107, %108 : vector<8x128xf32>
    %110 = arith.mulf %101, %77 : vector<8x128xf32>
    %111 = arith.mulf %95, %103 : vector<8x128xf32>
    %112 = arith.addf %110, %111 : vector<8x128xf32>
    %113 = math.tanh %112 : vector<8x128xf32>
    %114 = arith.mulf %109, %113 : vector<8x128xf32>
    %115 = arith.index_cast %c2_i32 : i32 to index
    %c0_37 = arith.constant 0 : index
    %c0_38 = arith.constant 0 : index
    %116 = vector.load %arg6[%115, %c0_37, %c0_38] : memref<8x8x128xf32, #tpu.memory_space<vmem>>, vector<1x8x128xf32>
    %117 = vector.shape_cast %116 : vector<1x8x128xf32> to vector<8x128xf32>
    %118 = vector.shape_cast %114 : vector<8x128xf32> to vector<1x8x128xf32>
    tpu.vector_store %arg6[%115, %c0_37, %c0_38], %118 {strides = array<i32>} : memref<8x8x128xf32, #tpu.memory_space<vmem>>, vector<1x8x128xf32>,
    %c3_i32 = arith.constant 3 : i32
    %c8_i32_39 = arith.constant 8 : i32
    %119 = arith.muli %c3_i32, %c8_i32_39 : i32
    %120 = tpu.assume_multiple %119, 8 : i32
    %121 = arith.index_cast %120 : i32 to index
    %c0_40 = arith.constant 0 : index
    %122 = vector.load %arg9[%121, %c0_40] : memref<64x512xf32, #tpu.memory_space<vmem>>, vector<8x512xf32>
    %cst_41 = arith.constant dense<0.000000e+00> : vector<8x512xf32>
    %123 = tpu.matmul %114, %11, %cst_41 {dimension_numbers = #tpu.dot_dimension_numbers<[1], [0], [0], [1], [0, 0, 1, 1], [], []>} : vector<8x128xf32>, vector<128x512xf32>, vector<8x512xf32> -> vector<8x512xf32>
    %124 = arith.addf %122, %123 : vector<8x512xf32>
    %125 = vector.extract_strided_slice %124 {offsets = [0, 0], sizes = [8, 128], strides = [1, 1]} : vector<8x512xf32> to vector<8x128xf32>
    %126 = arith.negf %125 : vector<8x128xf32>
    %127 = math.exp %126 : vector<8x128xf32>
    %cst_42 = arith.constant 1.000000e+00 : f32
    %128 = vector.broadcast %cst_42 : f32 to vector<8x128xf32>
    %129 = arith.addf %128, %127 : vector<8x128xf32>
    %130 = arith.divf %128, %129 : vector<8x128xf32>
    %131 = vector.extract_strided_slice %124 {offsets = [0, 128], sizes = [8, 128], strides = [1, 1]} : vector<8x512xf32> to vector<8x128xf32>
    %132 = arith.negf %131 : vector<8x128xf32>
    %133 = math.exp %132 : vector<8x128xf32>
    %cst_43 = arith.constant 1.000000e+00 : f32
    %134 = vector.broadcast %cst_43 : f32 to vector<8x128xf32>
    %135 = arith.addf %134, %133 : vector<8x128xf32>
    %136 = arith.divf %134, %135 : vector<8x128xf32>
    %137 = vector.extract_strided_slice %124 {offsets = [0, 256], sizes = [8, 128], strides = [1, 1]} : vector<8x512xf32> to vector<8x128xf32>
    %138 = math.tanh %137 : vector<8x128xf32>
    %139 = vector.extract_strided_slice %124 {offsets = [0, 384], sizes = [8, 128], strides = [1, 1]} : vector<8x512xf32> to vector<8x128xf32>
    %140 = arith.negf %139 : vector<8x128xf32>
    %141 = math.exp %140 : vector<8x128xf32>
    %cst_44 = arith.constant 1.000000e+00 : f32
    %142 = vector.broadcast %cst_44 : f32 to vector<8x128xf32>
    %143 = arith.addf %142, %141 : vector<8x128xf32>
    %144 = arith.divf %142, %143 : vector<8x128xf32>
    %145 = arith.mulf %136, %112 : vector<8x128xf32>
    %146 = arith.mulf %130, %138 : vector<8x128xf32>
    %147 = arith.addf %145, %146 : vector<8x128xf32>
    %148 = math.tanh %147 : vector<8x128xf32>
    %149 = arith.mulf %144, %148 : vector<8x128xf32>
    %150 = arith.index_cast %c3_i32 : i32 to index
    %c0_45 = arith.constant 0 : index
    %c0_46 = arith.constant 0 : index
    %151 = vector.load %arg6[%150, %c0_45, %c0_46] : memref<8x8x128xf32, #tpu.memory_space<vmem>>, vector<1x8x128xf32>
    %152 = vector.shape_cast %151 : vector<1x8x128xf32> to vector<8x128xf32>
    %153 = vector.shape_cast %149 : vector<8x128xf32> to vector<1x8x128xf32>
    tpu.vector_store %arg6[%150, %c0_45, %c0_46], %153 {strides = array<i32>} : memref<8x8x128xf32, #tpu.memory_space<vmem>>, vector<1x8x128xf32>,
    %c4_i32 = arith.constant 4 : i32
    %c8_i32_47 = arith.constant 8 : i32
    %154 = arith.muli %c4_i32, %c8_i32_47 : i32
    %155 = tpu.assume_multiple %154, 8 : i32
    %156 = arith.index_cast %155 : i32 to index
    %c0_48 = arith.constant 0 : index
    %157 = vector.load %arg9[%156, %c0_48] : memref<64x512xf32, #tpu.memory_space<vmem>>, vector<8x512xf32>
    %cst_49 = arith.constant dense<0.000000e+00> : vector<8x512xf32>
    %158 = tpu.matmul %149, %11, %cst_49 {dimension_numbers = #tpu.dot_dimension_numbers<[1], [0], [0], [1], [0, 0, 1, 1], [], []>} : vector<8x128xf32>, vector<128x512xf32>, vector<8x512xf32> -> vector<8x512xf32>
    %159 = arith.addf %157, %158 : vector<8x512xf32>
    %160 = vector.extract_strided_slice %159 {offsets = [0, 0], sizes = [8, 128], strides = [1, 1]} : vector<8x512xf32> to vector<8x128xf32>
    %161 = arith.negf %160 : vector<8x128xf32>
    %162 = math.exp %161 : vector<8x128xf32>
    %cst_50 = arith.constant 1.000000e+00 : f32
    %163 = vector.broadcast %cst_50 : f32 to vector<8x128xf32>
    %164 = arith.addf %163, %162 : vector<8x128xf32>
    %165 = arith.divf %163, %164 : vector<8x128xf32>
    %166 = vector.extract_strided_slice %159 {offsets = [0, 128], sizes = [8, 128], strides = [1, 1]} : vector<8x512xf32> to vector<8x128xf32>
    %167 = arith.negf %166 : vector<8x128xf32>
    %168 = math.exp %167 : vector<8x128xf32>
    %cst_51 = arith.constant 1.000000e+00 : f32
    %169 = vector.broadcast %cst_51 : f32 to vector<8x128xf32>
    %170 = arith.addf %169, %168 : vector<8x128xf32>
    %171 = arith.divf %169, %170 : vector<8x128xf32>
    %172 = vector.extract_strided_slice %159 {offsets = [0, 256], sizes = [8, 128], strides = [1, 1]} : vector<8x512xf32> to vector<8x128xf32>
    %173 = math.tanh %172 : vector<8x128xf32>
    %174 = vector.extract_strided_slice %159 {offsets = [0, 384], sizes = [8, 128], strides = [1, 1]} : vector<8x512xf32> to vector<8x128xf32>
    %175 = arith.negf %174 : vector<8x128xf32>
    %176 = math.exp %175 : vector<8x128xf32>
    %cst_52 = arith.constant 1.000000e+00 : f32
    %177 = vector.broadcast %cst_52 : f32 to vector<8x128xf32>
    %178 = arith.addf %177, %176 : vector<8x128xf32>
    %179 = arith.divf %177, %178 : vector<8x128xf32>
    %180 = arith.mulf %171, %147 : vector<8x128xf32>
    %181 = arith.mulf %165, %173 : vector<8x128xf32>
    %182 = arith.addf %180, %181 : vector<8x128xf32>
    %183 = math.tanh %182 : vector<8x128xf32>
    %184 = arith.mulf %179, %183 : vector<8x128xf32>
    %185 = arith.index_cast %c4_i32 : i32 to index
    %c0_53 = arith.constant 0 : index
    %c0_54 = arith.constant 0 : index
    %186 = vector.load %arg6[%185, %c0_53, %c0_54] : memref<8x8x128xf32, #tpu.memory_space<vmem>>, vector<1x8x128xf32>
    %187 = vector.shape_cast %186 : vector<1x8x128xf32> to vector<8x128xf32>
    %188 = vector.shape_cast %184 : vector<8x128xf32> to vector<1x8x128xf32>
    tpu.vector_store %arg6[%185, %c0_53, %c0_54], %188 {strides = array<i32>} : memref<8x8x128xf32, #tpu.memory_space<vmem>>, vector<1x8x128xf32>,
    %c5_i32 = arith.constant 5 : i32
    %c8_i32_55 = arith.constant 8 : i32
    %189 = arith.muli %c5_i32, %c8_i32_55 : i32
    %190 = tpu.assume_multiple %189, 8 : i32
    %191 = arith.index_cast %190 : i32 to index
    %c0_56 = arith.constant 0 : index
    %192 = vector.load %arg9[%191, %c0_56] : memref<64x512xf32, #tpu.memory_space<vmem>>, vector<8x512xf32>
    %cst_57 = arith.constant dense<0.000000e+00> : vector<8x512xf32>
    %193 = tpu.matmul %184, %11, %cst_57 {dimension_numbers = #tpu.dot_dimension_numbers<[1], [0], [0], [1], [0, 0, 1, 1], [], []>} : vector<8x128xf32>, vector<128x512xf32>, vector<8x512xf32> -> vector<8x512xf32>
    %194 = arith.addf %192, %193 : vector<8x512xf32>
    %195 = vector.extract_strided_slice %194 {offsets = [0, 0], sizes = [8, 128], strides = [1, 1]} : vector<8x512xf32> to vector<8x128xf32>
    %196 = arith.negf %195 : vector<8x128xf32>
    %197 = math.exp %196 : vector<8x128xf32>
    %cst_58 = arith.constant 1.000000e+00 : f32
    %198 = vector.broadcast %cst_58 : f32 to vector<8x128xf32>
    %199 = arith.addf %198, %197 : vector<8x128xf32>
    %200 = arith.divf %198, %199 : vector<8x128xf32>
    %201 = vector.extract_strided_slice %194 {offsets = [0, 128], sizes = [8, 128], strides = [1, 1]} : vector<8x512xf32> to vector<8x128xf32>
    %202 = arith.negf %201 : vector<8x128xf32>
    %203 = math.exp %202 : vector<8x128xf32>
    %cst_59 = arith.constant 1.000000e+00 : f32
    %204 = vector.broadcast %cst_59 : f32 to vector<8x128xf32>
    %205 = arith.addf %204, %203 : vector<8x128xf32>
    %206 = arith.divf %204, %205 : vector<8x128xf32>
    %207 = vector.extract_strided_slice %194 {offsets = [0, 256], sizes = [8, 128], strides = [1, 1]} : vector<8x512xf32> to vector<8x128xf32>
    %208 = math.tanh %207 : vector<8x128xf32>
    %209 = vector.extract_strided_slice %194 {offsets = [0, 384], sizes = [8, 128], strides = [1, 1]} : vector<8x512xf32> to vector<8x128xf32>
    %210 = arith.negf %209 : vector<8x128xf32>
    %211 = math.exp %210 : vector<8x128xf32>
    %cst_60 = arith.constant 1.000000e+00 : f32
    %212 = vector.broadcast %cst_60 : f32 to vector<8x128xf32>
    %213 = arith.addf %212, %211 : vector<8x128xf32>
    %214 = arith.divf %212, %213 : vector<8x128xf32>
    %215 = arith.mulf %206, %182 : vector<8x128xf32>
    %216 = arith.mulf %200, %208 : vector<8x128xf32>
    %217 = arith.addf %215, %216 : vector<8x128xf32>
    %218 = math.tanh %217 : vector<8x128xf32>
    %219 = arith.mulf %214, %218 : vector<8x128xf32>
    %220 = arith.index_cast %c5_i32 : i32 to index
    %c0_61 = arith.constant 0 : index
    %c0_62 = arith.constant 0 : index
    %221 = vector.load %arg6[%220, %c0_61, %c0_62] : memref<8x8x128xf32, #tpu.memory_space<vmem>>, vector<1x8x128xf32>
    %222 = vector.shape_cast %221 : vector<1x8x128xf32> to vector<8x128xf32>
    %223 = vector.shape_cast %219 : vector<8x128xf32> to vector<1x8x128xf32>
    tpu.vector_store %arg6[%220, %c0_61, %c0_62], %223 {strides = array<i32>} : memref<8x8x128xf32, #tpu.memory_space<vmem>>, vector<1x8x128xf32>,
    %c6_i32 = arith.constant 6 : i32
    %c8_i32_63 = arith.constant 8 : i32
    %224 = arith.muli %c6_i32, %c8_i32_63 : i32
    %225 = tpu.assume_multiple %224, 8 : i32
    %226 = arith.index_cast %225 : i32 to index
    %c0_64 = arith.constant 0 : index
    %227 = vector.load %arg9[%226, %c0_64] : memref<64x512xf32, #tpu.memory_space<vmem>>, vector<8x512xf32>
    %cst_65 = arith.constant dense<0.000000e+00> : vector<8x512xf32>
    %228 = tpu.matmul %219, %11, %cst_65 {dimension_numbers = #tpu.dot_dimension_numbers<[1], [0], [0], [1], [0, 0, 1, 1], [], []>} : vector<8x128xf32>, vector<128x512xf32>, vector<8x512xf32> -> vector<8x512xf32>
    %229 = arith.addf %227, %228 : vector<8x512xf32>
    %230 = vector.extract_strided_slice %229 {offsets = [0, 0], sizes = [8, 128], strides = [1, 1]} : vector<8x512xf32> to vector<8x128xf32>
    %231 = arith.negf %230 : vector<8x128xf32>
    %232 = math.exp %231 : vector<8x128xf32>
    %cst_66 = arith.constant 1.000000e+00 : f32
    %233 = vector.broadcast %cst_66 : f32 to vector<8x128xf32>
    %234 = arith.addf %233, %232 : vector<8x128xf32>
    %235 = arith.divf %233, %234 : vector<8x128xf32>
    %236 = vector.extract_strided_slice %229 {offsets = [0, 128], sizes = [8, 128], strides = [1, 1]} : vector<8x512xf32> to vector<8x128xf32>
    %237 = arith.negf %236 : vector<8x128xf32>
    %238 = math.exp %237 : vector<8x128xf32>
    %cst_67 = arith.constant 1.000000e+00 : f32
    %239 = vector.broadcast %cst_67 : f32 to vector<8x128xf32>
    %240 = arith.addf %239, %238 : vector<8x128xf32>
    %241 = arith.divf %239, %240 : vector<8x128xf32>
    %242 = vector.extract_strided_slice %229 {offsets = [0, 256], sizes = [8, 128], strides = [1, 1]} : vector<8x512xf32> to vector<8x128xf32>
    %243 = math.tanh %242 : vector<8x128xf32>
    %244 = vector.extract_strided_slice %229 {offsets = [0, 384], sizes = [8, 128], strides = [1, 1]} : vector<8x512xf32> to vector<8x128xf32>
    %245 = arith.negf %244 : vector<8x128xf32>
    %246 = math.exp %245 : vector<8x128xf32>
    %cst_68 = arith.constant 1.000000e+00 : f32
    %247 = vector.broadcast %cst_68 : f32 to vector<8x128xf32>
    %248 = arith.addf %247, %246 : vector<8x128xf32>
    %249 = arith.divf %247, %248 : vector<8x128xf32>
    %250 = arith.mulf %241, %217 : vector<8x128xf32>
    %251 = arith.mulf %235, %243 : vector<8x128xf32>
    %252 = arith.addf %250, %251 : vector<8x128xf32>
    %253 = math.tanh %252 : vector<8x128xf32>
    %254 = arith.mulf %249, %253 : vector<8x128xf32>
    %255 = arith.index_cast %c6_i32 : i32 to index
    %c0_69 = arith.constant 0 : index
    %c0_70 = arith.constant 0 : index
    %256 = vector.load %arg6[%255, %c0_69, %c0_70] : memref<8x8x128xf32, #tpu.memory_space<vmem>>, vector<1x8x128xf32>
    %257 = vector.shape_cast %256 : vector<1x8x128xf32> to vector<8x128xf32>
    %258 = vector.shape_cast %254 : vector<8x128xf32> to vector<1x8x128xf32>
    tpu.vector_store %arg6[%255, %c0_69, %c0_70], %258 {strides = array<i32>} : memref<8x8x128xf32, #tpu.memory_space<vmem>>, vector<1x8x128xf32>,
    %c7_i32 = arith.constant 7 : i32
    %c8_i32_71 = arith.constant 8 : i32
    %259 = arith.muli %c7_i32, %c8_i32_71 : i32
    %260 = tpu.assume_multiple %259, 8 : i32
    %261 = arith.index_cast %260 : i32 to index
    %c0_72 = arith.constant 0 : index
    %262 = vector.load %arg9[%261, %c0_72] : memref<64x512xf32, #tpu.memory_space<vmem>>, vector<8x512xf32>
    %cst_73 = arith.constant dense<0.000000e+00> : vector<8x512xf32>
    %263 = tpu.matmul %254, %11, %cst_73 {dimension_numbers = #tpu.dot_dimension_numbers<[1], [0], [0], [1], [0, 0, 1, 1], [], []>} : vector<8x128xf32>, vector<128x512xf32>, vector<8x512xf32> -> vector<8x512xf32>
    %264 = arith.addf %262, %263 : vector<8x512xf32>
    %265 = vector.extract_strided_slice %264 {offsets = [0, 0], sizes = [8, 128], strides = [1, 1]} : vector<8x512xf32> to vector<8x128xf32>
    %266 = arith.negf %265 : vector<8x128xf32>
    %267 = math.exp %266 : vector<8x128xf32>
    %cst_74 = arith.constant 1.000000e+00 : f32
    %268 = vector.broadcast %cst_74 : f32 to vector<8x128xf32>
    %269 = arith.addf %268, %267 : vector<8x128xf32>
    %270 = arith.divf %268, %269 : vector<8x128xf32>
    %271 = vector.extract_strided_slice %264 {offsets = [0, 128], sizes = [8, 128], strides = [1, 1]} : vector<8x512xf32> to vector<8x128xf32>
    %272 = arith.negf %271 : vector<8x128xf32>
    %273 = math.exp %272 : vector<8x128xf32>
    %cst_75 = arith.constant 1.000000e+00 : f32
    %274 = vector.broadcast %cst_75 : f32 to vector<8x128xf32>
    %275 = arith.addf %274, %273 : vector<8x128xf32>
    %276 = arith.divf %274, %275 : vector<8x128xf32>
    %277 = vector.extract_strided_slice %264 {offsets = [0, 256], sizes = [8, 128], strides = [1, 1]} : vector<8x512xf32> to vector<8x128xf32>
    %278 = math.tanh %277 : vector<8x128xf32>
    %279 = vector.extract_strided_slice %264 {offsets = [0, 384], sizes = [8, 128], strides = [1, 1]} : vector<8x512xf32> to vector<8x128xf32>
    %280 = arith.negf %279 : vector<8x128xf32>
    %281 = math.exp %280 : vector<8x128xf32>
    %cst_76 = arith.constant 1.000000e+00 : f32
    %282 = vector.broadcast %cst_76 : f32 to vector<8x128xf32>
    %283 = arith.addf %282, %281 : vector<8x128xf32>
    %284 = arith.divf %282, %283 : vector<8x128xf32>
    %285 = arith.mulf %276, %252 : vector<8x128xf32>
    %286 = arith.mulf %270, %278 : vector<8x128xf32>
    %287 = arith.addf %285, %286 : vector<8x128xf32>
    %288 = math.tanh %287 : vector<8x128xf32>
    %289 = arith.mulf %284, %288 : vector<8x128xf32>
    %290 = arith.index_cast %c7_i32 : i32 to index
    %c0_77 = arith.constant 0 : index
    %c0_78 = arith.constant 0 : index
    %291 = vector.load %arg6[%290, %c0_77, %c0_78] : memref<8x8x128xf32, #tpu.memory_space<vmem>>, vector<1x8x128xf32>
    %292 = vector.shape_cast %291 : vector<1x8x128xf32> to vector<8x128xf32>
    %293 = vector.shape_cast %289 : vector<8x128xf32> to vector<1x8x128xf32>
    tpu.vector_store %arg6[%290, %c0_77, %c0_78], %293 {strides = array<i32>} : memref<8x8x128xf32, #tpu.memory_space<vmem>>, vector<1x8x128xf32>,
    %c8_i32_79 = arith.constant 8 : i32
    %c0_80 = arith.constant 0 : index
    %c0_81 = arith.constant 0 : index
    %294 = vector.load %arg7[%c0_80, %c0_81] : memref<8x128xf32, #tpu.memory_space<vmem>>, vector<8x128xf32>
    tpu.vector_store %arg7[%c0_80, %c0_81], %289 {strides = array<i32>} : memref<8x128xf32, #tpu.memory_space<vmem>>, vector<8x128xf32>,
    %c0_82 = arith.constant 0 : index
    %c0_83 = arith.constant 0 : index
    %295 = vector.load %arg8[%c0_82, %c0_83] : memref<8x128xf32, #tpu.memory_space<vmem>>, vector<8x128xf32>
    tpu.vector_store %arg8[%c0_82, %c0_83], %287 {strides = array<i32>} : memref<8x128xf32, #tpu.memory_space<vmem>>, vector<8x128xf32>,
    return
  }
  func.func @transform_0(%arg0: i32, %arg1: i32) -> (i32, i32, i32) {
    %c0_i32 = arith.constant 0 : i32
    %c0_i32_0 = arith.constant 0 : i32
    return %arg1, %arg0, %c0_i32 : i32, i32, i32
  }
  func.func @transform_1(%arg0: i32, %arg1: i32) -> (i32, i32) {
    %c0_i32 = arith.constant 0 : i32
    %c0_i32_0 = arith.constant 0 : i32
    %c0_i32_1 = arith.constant 0 : i32
    return %c0_i32, %c0_i32_0 : i32, i32
  }
  func.func @transform_2(%arg0: i32, %arg1: i32) -> (i32, i32) {
    %c0_i32 = arith.constant 0 : i32
    %c0_i32_0 = arith.constant 0 : i32
    %c0_i32_1 = arith.constant 0 : i32
    return %c0_i32, %c0_i32_0 : i32, i32
  }
  func.func @transform_3(%arg0: i32, %arg1: i32) -> (i32, i32) {
    %c0_i32 = arith.constant 0 : i32
    %c0_i32_0 = arith.constant 0 : i32
    %c0_i32_1 = arith.constant 0 : i32
    return %c0_i32, %c0_i32_0 : i32, i32
  }
  func.func @transform_4(%arg0: i32, %arg1: i32) -> (i32, i32, i32) {
    %c0_i32 = arith.constant 0 : i32
    %c0_i32_0 = arith.constant 0 : i32
    return %arg1, %arg0, %c0_i32 : i32, i32, i32
  }
}

</mosaic_0001>

<llo_original>
// kernel: encoder_forward.2
$region0: #{encoder_forward.2}
  #allocation0 [shape = 'u32[]', space=smem, size = 0x4, offset = 0x4, fixed_abs, tag = 'smem constant byte address 0x4 - core index']
  #allocation1 [shape = 'u32[144,128]{1,0:T(1,128)}', space=vmem, size = 0x12000, scoped, tag = 'internal scratch']
  #allocation2 [shape = 'f32[8,128]{1,0:T(8,128)}', space=vmem, size = 0x1000, scoped, tag = 'scratch operand']
  #allocation3 [shape = 'f32[8,128]{1,0:T(8,128)}', space=vmem, size = 0x1000, scoped, tag = 'scratch operand']
  #allocation4 [shape = 'f32[64,512]{1,0:T(8,128)}', space=vmem, size = 0x20000, scoped, tag = 'scratch operand']
  %s0 = inlined_call_operand.vmem [shape: f32[8,8,16], index: 0, kind: input, shape index: {}]
  %s1 = inlined_call_operand.hbm [shape: f32[16,512], index: 1, kind: input, shape index: {}]
  %s2 = inlined_call_operand.hbm [shape: f32[128,512], index: 2, kind: input, shape index: {}]
  %s3 = inlined_call_operand.hbm [shape: f32[1,512], index: 3, kind: input, shape index: {}]
  %s4 = inlined_call_operand.vmem [shape: f32[8,8,128], index: 4, kind: output, shape index: {}]
  %s5 = sld [smem:[#allocation0]]
  $region42: #{encoder_forward.2} parent=0
    _
  %s7 = ssub.s32 1, %s5
  %s8 = scalar_select 0, %s7, %s5
  $region1: #{encoder_forward.2} parent=0
    #allocation5 [shape = 'u8[32768]{0}', space=vmem, size = 0x8000, scoped, tag = 'input window, operand 1, single buffered']
    #allocation6 [shape = 's32[1]{0}', space=sflag, size = 0x4, scoped, tag = 'scoped memory for encoder_forward.2']
    #allocation7 [shape = 'u8[262144]{0}', space=vmem, size = 0x40000, scoped, tag = 'input window, operand 2, single buffered']
    #allocation8 [shape = 's32[1]{0}', space=sflag, size = 0x4, scoped, tag = 'scoped memory for encoder_forward.2']
    #allocation9 [shape = 'u8[2048]{0}', space=vmem, size = 0x800, scoped, tag = 'input window, operand 3, single buffered']
    %9 = vsyncpa [#allocation6], 0
    %10 = vsyncpa [#allocation8], 0
    // Predicated region
    $region2: #{encoder_forward.2} parent=1 // pred_check
      _
    $region3: #{encoder_forward.2} parent=1 // pred_check_branch
      %12 = sbr.rel (0) target = $region5
    $region4: #{encoder_forward.2} parent=1 // pred_region
      _
    $region5: #{encoder_forward.2} parent=1 // pred_fallthru
      _
    // Predicated region
    $region6: #{encoder_forward.2} parent=1 // pred_check
      _
    $region7: #{encoder_forward.2} parent=1 // pred_check_branch
      %14 = sbr.rel (0) target = $region9
    $region8: #{encoder_forward.2} parent=1 // pred_region
      %s16 = ssub.s32 1024, 1024
      %17 = vsyncadd [#allocation6], %s16
      %s18 = sshll.u32 [#allocation5], 4
      %s19 = int_to_ptr.vmem [resolvable:$true] %s18
      %24 = dma.hbm_to_vmem [thread:$0]  %s1, 1024, %s19, [#allocation6], 512, 512, 32
    $region9: #{encoder_forward.2} parent=1 // pred_fallthru
      _
    // Predicated region
    $region10: #{encoder_forward.2} parent=1 // pred_check
      _
    $region11: #{encoder_forward.2} parent=1 // pred_check_branch
      %26 = sbr.rel (0) target = $region13
    $region12: #{encoder_forward.2} parent=1 // pred_region
      %s28 = ssub.s32 8192, 8192
      %29 = vsyncadd [#allocation8], %s28
      %s30 = sshll.u32 [#allocation7], 4
      %s31 = int_to_ptr.vmem [resolvable:$true] %s30
      %36 = dma.hbm_to_vmem [thread:$0]  %s2, 8192, %s31, [#allocation8], 512, 512, 32
    $region13: #{encoder_forward.2} parent=1 // pred_fallthru
      _
    // Predicated region
    $region14: #{encoder_forward.2} parent=1 // pred_check
      _
    $region15: #{encoder_forward.2} parent=1 // pred_check_branch
      %38 = sbr.rel (0) target = $region17
    $region16: #{encoder_forward.2} parent=1 // pred_region
      %s40 = ssub.s32 64, 64
      %41 = vsyncadd [#allocation8], %s40
      %s43 = sshll.u32 [#allocation9], 4
      %s44 = int_to_ptr.vmem [resolvable:$true] %s43
      %46 = dma.hbm_to_vmem [thread:$0]  %s3, 64, %s44, [#allocation8]
    $region17: #{encoder_forward.2} parent=1 // pred_fallthru
      _
    // Predicated region
    $region18: #{encoder_forward.2} parent=1 // pred_check
      _
    $region19: #{encoder_forward.2} parent=1 // pred_check_branch
      %48 = sbr.rel (0) target = $region21
    $region20: #{encoder_forward.2} parent=1 // pred_region
      %49 = dma.done [#allocation6], 1024
    $region21: #{encoder_forward.2} parent=1 // pred_fallthru
      _
    // Predicated region
    $region22: #{encoder_forward.2} parent=1 // pred_check
      _
    $region23: #{encoder_forward.2} parent=1 // pred_check_branch
      %51 = sbr.rel (0) target = $region25
    $region24: #{encoder_forward.2} parent=1 // pred_region
      %52 = dma.done [#allocation8], 8192
    $region25: #{encoder_forward.2} parent=1 // pred_fallthru
      _
    // Predicated region
    $region26: #{encoder_forward.2} parent=1 // pred_check
      _
    $region27: #{encoder_forward.2} parent=1 // pred_check_branch
      %54 = sbr.rel (0) target = $region29
    $region28: #{encoder_forward.2} parent=1 // pred_region
      %55 = dma.done [#allocation8], 64
    $region29: #{encoder_forward.2} parent=1 // pred_fallthru
      _
    %p56 = scmp.eq.s32.totalorder 0, 0
    // Predicated region
    $region30: #{encoder_forward.2} parent=1 // pred_check
      %p57 = pneg %p56
    $region31: #{encoder_forward.2} parent=1 // pred_check_branch
      %59 = sbr.rel (%p57) target = $region33
    $region32: #{encoder_forward.2} parent=1 // pred_region
      %60 = vst [vmem:[#allocation2] sm:$0xff] 0.0
      %61 = vst [vmem:[#allocation3] sm:$0xff] 0.0
    $region33: #{encoder_forward.2} parent=1 // pred_fallthru
      _
    %v62 = vld [vmem:[%s0] sm:$0xff]
    %v63 = vld [vmem:[%s0 + $0x8] sm:$0xff]
    %v64 = vld [vmem:[%s0 + $0x10] sm:$0xff]
    %v65 = vld [vmem:[%s0 + $0x18] sm:$0xff]
    %v66 = vld [vmem:[%s0 + $0x20] sm:$0xff]
    %v67 = vld [vmem:[%s0 + $0x28] sm:$0xff]
    %v68 = vld [vmem:[%s0 + $0x30] sm:$0xff]
    %v69 = vld [vmem:[%s0 + $0x38] sm:$0xff]
    %v70 = vld [vmem:[#allocation5] sm:$0xff]
    %v71 = vld [vmem:[#allocation5 + $0x8] sm:$0xff]
    %v72 = vld [vmem:[#allocation5 + $0x10] sm:$0xff]
    %v73 = vld [vmem:[#allocation5 + $0x18] sm:$0xff]
    %v74 = vld [vmem:[#allocation5 + $0x20] sm:$0xff]
    %v75 = vld [vmem:[#allocation5 + $0x28] sm:$0xff]
    %v76 = vld [vmem:[#allocation5 + $0x30] sm:$0xff]
    %v77 = vld [vmem:[#allocation5 + $0x38] sm:$0xff]
    %v78 = vld [vmem:[#allocation9] sm:$0xf]
    %v80 = vlaneseq
    %v81 = vshrl.u32 %v80, 7
    %v82 = vsub.s32 0, %v81
    %v83 = vrot.slane %v78, %v82
    %v84 = vlaneseq
    %v85 = vshrl.u32 %v84, 7
    %v86 = vsub.s32 1, %v85
    %v87 = vrot.slane %v78, %v86
    %v88 = vlaneseq
    %v89 = vshrl.u32 %v88, 7
    %v90 = vsub.s32 2, %v89
    %v91 = vrot.slane %v78, %v90
    %v92 = vlaneseq
    %v93 = vshrl.u32 %v92, 7
    %v94 = vsub.s32 3, %v93
    %v95 = vrot.slane %v78, %v94
    %vm100 = vcmask 130048
    %v102 = vsel %vm100, %v62, 0
    %v105 = vsel %vm100, %v63, 0
    %v108 = vsel %vm100, %v64, 0
    %v111 = vsel %vm100, %v65, 0
    %v114 = vsel %vm100, %v66, 0
    %v117 = vsel %vm100, %v67, 0
    %v120 = vsel %vm100, %v68, 0
    %v123 = vsel %vm100, %v69, 0
    %125 = vmatprep.subr.mxu0 %v71
    %126 = vmatpush1.msra.mxu0 %v70
    %127 = vmatprep.subr.mxu0 %v75
    %128 = vmatpush1.msra.mxu0 %v74
    %129 = vmatprep.subr.mxu0 0.0
    %130 = vmatpush1.msra.mxu0 0.0
    %131 = vmatprep.subr.mxu0 0.0
    %132 = vmatpush1.msra.mxu0 0.0
    %133 = vmatprep.subr.mxu0 0.0
    %134 = vmatpush1.msra.mxu0 0.0
    %135 = vmatprep.subr.mxu0 0.0
    %136 = vmatpush1.msra.mxu0 0.0
    %137 = vmatprep.subr.mxu0 0.0
    %138 = vmatpush1.msra.mxu0 0.0
    %139 = vmatprep.subr.mxu0 0.0
    %140 = vmatpush1.msra.mxu0 0.0
    %141 = vmatprep.subr.mxu0 0.0
    %142 = vmatpush1.msra.mxu0 0.0
    %143 = vmatprep.subr.mxu0 0.0
    %144 = vmatpush1.msra.mxu0 0.0
    %145 = vmatprep.subr.mxu0 0.0
    %146 = vmatpush1.msra.mxu0 0.0
    %147 = vmatprep.subr.mxu0 0.0
    %148 = vmatpush1.msra.mxu0 0.0
    %149 = vmatprep.subr.mxu0 0.0
    %150 = vmatpush1.msra.mxu0 0.0
    %151 = vmatprep.subr.mxu0 0.0
    %152 = vmatpush1.msra.mxu0 0.0
    %153 = vmatprep.subr.mxu0 0.0
    %154 = vmatpush1.msra.mxu0 0.0
    %155 = vmatprep.subr.mxu0 0.0
    %156 = vmatpush1.msra.mxu0 0.0
    %157 = vmatprep.subr.mxu0 0.0
    %158 = vmatpush1.msra.mxu0 0.0
    %159 = vmatprep.subr.mxu0 0.0
    %160 = vmatpush1.msra.mxu0 0.0
    %161 = vmatprep.subr.mxu0 0.0
    %162 = vmatpush1.msra.mxu0 0.0
    %163 = vmatprep.subr.mxu0 0.0
    %164 = vmatpush1.msra.mxu0 0.0
    %165 = vmatprep.subr.mxu0 0.0
    %166 = vmatpush1.msra.mxu0 0.0
    %167 = vmatprep.subr.mxu0 0.0
    %168 = vmatpush1.msra.mxu0 0.0
    %169 = vmatprep.subr.mxu0 0.0
    %170 = vmatpush1.msra.mxu0 0.0
    %171 = vmatprep.subr.mxu0 0.0
    %172 = vmatpush1.msra.mxu0 0.0
    %173 = vmatprep.subr.mxu0 0.0
    %174 = vmatpush1.msra.mxu0 0.0
    %175 = vmatprep.subr.mxu0 0.0
    %176 = vmatpush1.msra.mxu0 0.0
    %177 = vmatprep.subr.mxu0 0.0
    %178 = vmatpush1.msra.mxu0 0.0
    %179 = vmatprep.subr.mxu0 0.0
    %180 = vmatpush1.msra.mxu0 0.0
    %181 = vmatprep.subr.mxu0 0.0
    %182 = vmatpush1.msra.mxu0 0.0
    %183 = vmatprep.subr.mxu0 0.0
    %184 = vmatpush1.msra.mxu0 0.0
    %185 = vmatprep.subr.mxu0 0.0
    %186 = vmatpush1.msra.mxu0 0.0
    %187 = vmatprep.subr.mxu0 0.0
    %188 = vmatpush1.msra.mxu0 0.0
    %189 = vmatprep.mubr.f32.mxu0 0.0
    %190 = vmatmul.mubr.f32.gmra.mrb[0].mxu0 %v102
    %v191 = vpop.f32.mrb[0].mxu0
    %v192 = vadd.f32 %v83, %v191
    %v193 = vpop.f32.mrb[0].mxu0
    %v194 = vadd.f32 %v87, %v193
    %195 = vmatprep.mubr.f32.mxu0 0.0
    %196 = vmatmul.mubr.f32.gmra.mrb[0].mxu0 %v105
    %v197 = vpop.f32.mrb[0].mxu0
    %v198 = vadd.f32 %v83, %v197
    %v199 = vpop.f32.mrb[0].mxu0
    %v200 = vadd.f32 %v87, %v199
    %201 = vmatprep.mubr.f32.mxu0 0.0
    %202 = vmatmul.mubr.f32.gmra.mrb[0].mxu0 %v108
    %v203 = vpop.f32.mrb[0].mxu0
    %v204 = vadd.f32 %v83, %v203
    %v205 = vpop.f32.mrb[0].mxu0
    %v206 = vadd.f32 %v87, %v205
    %207 = vmatprep.mubr.f32.mxu0 0.0
    %208 = vmatmul.mubr.f32.gmra.mrb[0].mxu0 %v111
    %v209 = vpop.f32.mrb[0].mxu0
    %v210 = vadd.f32 %v83, %v209
    %v211 = vpop.f32.mrb[0].mxu0
    %v212 = vadd.f32 %v87, %v211
    %213 = vmatprep.mubr.f32.mxu0 0.0
    %214 = vmatmul.mubr.f32.gmra.mrb[0].mxu0 %v114
    %v215 = vpop.f32.mrb[0].mxu0
    %v216 = vadd.f32 %v83, %v215
    %v217 = vpop.f32.mrb[0].mxu0
    %v218 = vadd.f32 %v87, %v217
    %219 = vmatprep.mubr.f32.mxu0 0.0
    %220 = vmatmul.mubr.f32.gmra.mrb[0].mxu0 %v117
    %v221 = vpop.f32.mrb[0].mxu0
    %v222 = vadd.f32 %v83, %v221
    %v223 = vpop.f32.mrb[0].mxu0
    %v224 = vadd.f32 %v87, %v223
    %225 = vmatprep.mubr.f32.mxu0 0.0
    %226 = vmatmul.mubr.f32.gmra.mrb[0].mxu0 %v120
    %v227 = vpop.f32.mrb[0].mxu0
    %v228 = vadd.f32 %v83, %v227
    %v229 = vpop.f32.mrb[0].mxu0
    %v230 = vadd.f32 %v87, %v229
    %231 = vmatprep.mubr.f32.mxu0 0.0
    %232 = vmatmul.mubr.f32.gmra.mrb[0].mxu0 %v123
    %v233 = vpop.f32.mrb[0].mxu0
    %v234 = vadd.f32 %v83, %v233
    %v235 = vpop.f32.mrb[0].mxu0
    %v236 = vadd.f32 %v87, %v235
    %237 = vdwg.mxu0
    %238 = vmatprep.subr.mxu0 %v73
    %239 = vmatpush1.msra.mxu0 %v72
    %240 = vmatprep.subr.mxu0 %v77
    %241 = vmatpush1.msra.mxu0 %v76
    %242 = vmatprep.subr.mxu0 0.0
    %243 = vmatpush1.msra.mxu0 0.0
    %244 = vmatprep.subr.mxu0 0.0
    %245 = vmatpush1.msra.mxu0 0.0
    %246 = vmatprep.subr.mxu0 0.0
    %247 = vmatpush1.msra.mxu0 0.0
    %248 = vmatprep.subr.mxu0 0.0
    %249 = vmatpush1.msra.mxu0 0.0
    %250 = vmatprep.subr.mxu0 0.0
    %251 = vmatpush1.msra.mxu0 0.0
    %252 = vmatprep.subr.mxu0 0.0
    %253 = vmatpush1.msra.mxu0 0.0
    %254 = vmatprep.subr.mxu0 0.0
    %255 = vmatpush1.msra.mxu0 0.0
    %256 = vmatprep.subr.mxu0 0.0
    %257 = vmatpush1.msra.mxu0 0.0
    %258 = vmatprep.subr.mxu0 0.0
    %259 = vmatpush1.msra.mxu0 0.0
    %260 = vmatprep.subr.mxu0 0.0
    %261 = vmatpush1.msra.mxu0 0.0
    %262 = vmatprep.subr.mxu0 0.0
    %263 = vmatpush1.msra.mxu0 0.0
    %264 = vmatprep.subr.mxu0 0.0
    %265 = vmatpush1.msra.mxu0 0.0
    %266 = vmatprep.subr.mxu0 0.0
    %267 = vmatpush1.msra.mxu0 0.0
    %268 = vmatprep.subr.mxu0 0.0
    %269 = vmatpush1.msra.mxu0 0.0
    %270 = vmatprep.subr.mxu0 0.0
    %271 = vmatpush1.msra.mxu0 0.0
    %272 = vmatprep.subr.mxu0 0.0
    %273 = vmatpush1.msra.mxu0 0.0
    %274 = vmatprep.subr.mxu0 0.0
    %275 = vmatpush1.msra.mxu0 0.0
    %276 = vmatprep.subr.mxu0 0.0
    %277 = vmatpush1.msra.mxu0 0.0
    %278 = vmatprep.subr.mxu0 0.0
    %279 = vmatpush1.msra.mxu0 0.0
    %280 = vmatprep.subr.mxu0 0.0
    %281 = vmatpush1.msra.mxu0 0.0
    %282 = vmatprep.subr.mxu0 0.0
    %283 = vmatpush1.msra.mxu0 0.0
    %284 = vmatprep.subr.mxu0 0.0
    %285 = vmatpush1.msra.mxu0 0.0
    %286 = vmatprep.subr.mxu0 0.0
    %287 = vmatpush1.msra.mxu0 0.0
    %288 = vmatprep.subr.mxu0 0.0
    %289 = vmatpush1.msra.mxu0 0.0
    %290 = vmatprep.subr.mxu0 0.0
    %291 = vmatpush1.msra.mxu0 0.0
    %292 = vmatprep.subr.mxu0 0.0
    %293 = vmatpush1.msra.mxu0 0.0
    %294 = vmatprep.subr.mxu0 0.0
    %295 = vmatpush1.msra.mxu0 0.0
    %296 = vmatprep.subr.mxu0 0.0
    %297 = vmatpush1.msra.mxu0 0.0
    %298 = vmatprep.subr.mxu0 0.0
    %299 = vmatpush1.msra.mxu0 0.0
    %300 = vmatprep.subr.mxu0 0.0
    %301 = vmatpush1.msra.mxu0 0.0
    %302 = vmatprep.mubr.f32.mxu0 0.0
    %303 = vmatmul.mubr.f32.gmra.mrb[0].mxu0 %v102
    %v304 = vpop.f32.mrb[0].mxu0
    %v305 = vadd.f32 %v91, %v304
    %v306 = vpop.f32.mrb[0].mxu0
    %v307 = vadd.f32 %v95, %v306
    %308 = vmatprep.mubr.f32.mxu0 0.0
    %309 = vmatmul.mubr.f32.gmra.mrb[0].mxu0 %v105
    %v310 = vpop.f32.mrb[0].mxu0
    %v311 = vadd.f32 %v91, %v310
    %v312 = vpop.f32.mrb[0].mxu0
    %v313 = vadd.f32 %v95, %v312
    %314 = vmatprep.mubr.f32.mxu0 0.0
    %315 = vmatmul.mubr.f32.gmra.mrb[0].mxu0 %v108
    %v316 = vpop.f32.mrb[0].mxu0
    %v317 = vadd.f32 %v91, %v316
    %v318 = vpop.f32.mrb[0].mxu0
    %v319 = vadd.f32 %v95, %v318
    %320 = vmatprep.mubr.f32.mxu0 0.0
    %321 = vmatmul.mubr.f32.gmra.mrb[0].mxu0 %v111
    %v322 = vpop.f32.mrb[0].mxu0
    %v323 = vadd.f32 %v91, %v322
    %v324 = vpop.f32.mrb[0].mxu0
    %v325 = vadd.f32 %v95, %v324
    %326 = vmatprep.mubr.f32.mxu0 0.0
    %327 = vmatmul.mubr.f32.gmra.mrb[0].mxu0 %v114
    %v328 = vpop.f32.mrb[0].mxu0
    %v329 = vadd.f32 %v91, %v328
    %v330 = vpop.f32.mrb[0].mxu0
    %v331 = vadd.f32 %v95, %v330
    %332 = vmatprep.mubr.f32.mxu0 0.0
    %333 = vmatmul.mubr.f32.gmra.mrb[0].mxu0 %v117
    %v334 = vpop.f32.mrb[0].mxu0
    %v335 = vadd.f32 %v91, %v334
    %v336 = vpop.f32.mrb[0].mxu0
    %v337 = vadd.f32 %v95, %v336
    %338 = vmatprep.mubr.f32.mxu0 0.0
    %339 = vmatmul.mubr.f32.gmra.mrb[0].mxu0 %v120
    %v340 = vpop.f32.mrb[0].mxu0
    %v341 = vadd.f32 %v91, %v340
    %v342 = vpop.f32.mrb[0].mxu0
    %v343 = vadd.f32 %v95, %v342
    %344 = vmatprep.mubr.f32.mxu0 0.0
    %345 = vmatmul.mubr.f32.gmra.mrb[0].mxu0 %v123
    %v346 = vpop.f32.mrb[0].mxu0
    %v347 = vadd.f32 %v91, %v346
    %v348 = vpop.f32.mrb[0].mxu0
    %v349 = vadd.f32 %v95, %v348
    %350 = vdwg.mxu0
    %351 = vst [vmem:[#allocation4] sm:$0xff] %v192
    %352 = vst [vmem:[#allocation4 + $0x8] sm:$0xff] %v194
    %353 = vst [vmem:[#allocation4 + $0x10] sm:$0xff] %v305
    %354 = vst [vmem:[#allocation4 + $0x18] sm:$0xff] %v307
    %355 = vst [vmem:[#allocation4 + $0x20] sm:$0xff] %v198
    %356 = vst [vmem:[#allocation4 + $0x28] sm:$0xff] %v200
    %357 = vst [vmem:[#allocation4 + $0x30] sm:$0xff] %v311
    %358 = vst [vmem:[#allocation4 + $0x38] sm:$0xff] %v313
    %359 = vst [vmem:[#allocation4 + $0x40] sm:$0xff] %v204
    %360 = vst [vmem:[#allocation4 + $0x48] sm:$0xff] %v206
    %361 = vst [vmem:[#allocation4 + $0x50] sm:$0xff] %v317
    %362 = vst [vmem:[#allocation4 + $0x58] sm:$0xff] %v319
    %363 = vst [vmem:[#allocation4 + $0x60] sm:$0xff] %v210
    %364 = vst [vmem:[#allocation4 + $0x68] sm:$0xff] %v212
    %365 = vst [vmem:[#allocation4 + $0x70] sm:$0xff] %v323
    %366 = vst [vmem:[#allocation4 + $0x78] sm:$0xff] %v325
    %367 = vst [vmem:[#allocation4 + $0x80] sm:$0xff] %v216
    %368 = vst [vmem:[#allocation4 + $0x88] sm:$0xff] %v218
    %369 = vst [vmem:[#allocation4 + $0x90] sm:$0xff] %v329
    %370 = vst [vmem:[#allocation4 + $0x98] sm:$0xff] %v331
    %371 = vst [vmem:[#allocation4 + $0xa0] sm:$0xff] %v222
    %372 = vst [vmem:[#allocation4 + $0xa8] sm:$0xff] %v224
    %373 = vst [vmem:[#allocation4 + $0xb0] sm:$0xff] %v335
    %374 = vst [vmem:[#allocation4 + $0xb8] sm:$0xff] %v337
    %375 = vst [vmem:[#allocation4 + $0xc0] sm:$0xff] %v228
    %376 = vst [vmem:[#allocation4 + $0xc8] sm:$0xff] %v230
    %377 = vst [vmem:[#allocation4 + $0xd0] sm:$0xff] %v341
    %378 = vst [vmem:[#allocation4 + $0xd8] sm:$0xff] %v343
    %379 = vst [vmem:[#allocation4 + $0xe0] sm:$0xff] %v234
    %380 = vst [vmem:[#allocation4 + $0xe8] sm:$0xff] %v236
    %381 = vst [vmem:[#allocation4 + $0xf0] sm:$0xff] %v347
    %382 = vst [vmem:[#allocation4 + $0xf8] sm:$0xff] %v349
    %v383 = vld [vmem:[#allocation7] sm:$0xff]
    %v384 = vld [vmem:[#allocation7 + $0x8] sm:$0xff]
    %v385 = vld [vmem:[#allocation7 + $0x10] sm:$0xff]
    %v386 = vld [vmem:[#allocation7 + $0x18] sm:$0xff]
    %v387 = vld [vmem:[#allocation7 + $0x20] sm:$0xff]
    %v388 = vld [vmem:[#allocation7 + $0x28] sm:$0xff]
    %v389 = vld [vmem:[#allocation7 + $0x30] sm:$0xff]
    %v390 = vld [vmem:[#allocation7 + $0x38] sm:$0xff]
    %v391 = vld [vmem:[#allocation7 + $0x40] sm:$0xff]
    %v392 = vld [vmem:[#allocation7 + $0x48] sm:$0xff]
    %v393 = vld [vmem:[#allocation7 + $0x50] sm:$0xff]
    %v394 = vld [vmem:[#allocation7 + $0x58] sm:$0xff]
    %v395 = vld [vmem:[#allocation7 + $0x60] sm:$0xff]
    %v396 = vld [vmem:[#allocation7 + $0x68] sm:$0xff]
    %v397 = vld [vmem:[#allocation7 + $0x70] sm:$0xff]
    %v398 = vld [vmem:[#allocation7 + $0x78] sm:$0xff]
    %v399 = vld [vmem:[#allocation7 + $0x80] sm:$0xff]
    %v400 = vld [vmem:[#allocation7 + $0x88] sm:$0xff]
    %v401 = vld [vmem:[#allocation7 + $0x90] sm:$0xff]
    %v402 = vld [vmem:[#allocation7 + $0x98] sm:$0xff]
    %v403 = vld [vmem:[#allocation7 + $0xa0] sm:$0xff]
    %v404 = vld [vmem:[#allocation7 + $0xa8] sm:$0xff]
    %v405 = vld [vmem:[#allocation7 + $0xb0] sm:$0xff]
    %v406 = vld [vmem:[#allocation7 + $0xb8] sm:$0xff]
    %v407 = vld [vmem:[#allocation7 + $0xc0] sm:$0xff]
    %v408 = vld [vmem:[#allocation7 + $0xc8] sm:$0xff]
    %v409 = vld [vmem:[#allocation7 + $0xd0] sm:$0xff]
    %v410 = vld [vmem:[#allocation7 + $0xd8] sm:$0xff]
    %v411 = vld [vmem:[#allocation7 + $0xe0] sm:$0xff]
    %v412 = vld [vmem:[#allocation7 + $0xe8] sm:$0xff]
    %v413 = vld [vmem:[#allocation7 + $0xf0] sm:$0xff]
    %v414 = vld [vmem:[#allocation7 + $0xf8] sm:$0xff]
    %v415 = vld [vmem:[#allocation7 + $0x100] sm:$0xff]
    %v416 = vld [vmem:[#allocation7 + $0x108] sm:$0xff]
    %v417 = vld [vmem:[#allocation7 + $0x110] sm:$0xff]
    %v418 = vld [vmem:[#allocation7 + $0x118] sm:$0xff]
    %v419 = vld [vmem:[#allocation7 + $0x120] sm:$0xff]
    %v420 = vld [vmem:[#allocation7 + $0x128] sm:$0xff]
    %v421 = vld [vmem:[#allocation7 + $0x130] sm:$0xff]
    %v422 = vld [vmem:[#allocation7 + $0x138] sm:$0xff]
    %v423 = vld [vmem:[#allocation7 + $0x140] sm:$0xff]
    %v424 = vld [vmem:[#allocation7 + $0x148] sm:$0xff]
    %v425 = vld [vmem:[#allocation7 + $0x150] sm:$0xff]
    %v426 = vld [vmem:[#allocation7 + $0x158] sm:$0xff]
    %v427 = vld [vmem:[#allocation7 + $0x160] sm:$0xff]
    %v428 = vld [vmem:[#allocation7 + $0x168] sm:$0xff]
    %v429 = vld [vmem:[#allocation7 + $0x170] sm:$0xff]
    %v430 = vld [vmem:[#allocation7 + $0x178] sm:$0xff]
    %v431 = vld [vmem:[#allocation7 + $0x180] sm:$0xff]
    %v432 = vld [vmem:[#allocation7 + $0x188] sm:$0xff]
    %v433 = vld [vmem:[#allocation7 + $0x190] sm:$0xff]
    %v434 = vld [vmem:[#allocation7 + $0x198] sm:$0xff]
    %v435 = vld [vmem:[#allocation7 + $0x1a0] sm:$0xff]
    %v436 = vld [vmem:[#allocation7 + $0x1a8] sm:$0xff]
    %v437 = vld [vmem:[#allocation7 + $0x1b0] sm:$0xff]
    %v438 = vld [vmem:[#allocation7 + $0x1b8] sm:$0xff]
    %v439 = vld [vmem:[#allocation7 + $0x1c0] sm:$0xff]
    %v440 = vld [vmem:[#allocation7 + $0x1c8] sm:$0xff]
    %v441 = vld [vmem:[#allocation7 + $0x1d0] sm:$0xff]
    %v442 = vld [vmem:[#allocation7 + $0x1d8] sm:$0xff]
    %v443 = vld [vmem:[#allocation7 + $0x1e0] sm:$0xff]
    %v444 = vld [vmem:[#allocation7 + $0x1e8] sm:$0xff]
    %v445 = vld [vmem:[#allocation7 + $0x1f0] sm:$0xff]
    %v446 = vld [vmem:[#allocation7 + $0x1f8] sm:$0xff]
    %v447 = vld [vmem:[#allocation2] sm:$0xff]
    %v448 = vld [vmem:[#allocation3] sm:$0xff]
    %s449 = smul.u32 0, 4
    %s450 = smul.addr %s449, 8
    %s451 = scalar_lea.vmem [#allocation4], %s450
    %v452 = vld [vmem:[%s451] sm:$0xff]
    %v453 = vld [vmem:[%s451 + $0x8] sm:$0xff]
    %v454 = vld [vmem:[%s451 + $0x10] sm:$0xff]
    %v455 = vld [vmem:[%s451 + $0x18] sm:$0xff]
    %456 = vmatprep.subr.mxu0 %v384
    %457 = vmatpush1.msra.mxu0 %v383
    %458 = vmatprep.subr.mxu0 %v388
    %459 = vmatpush1.msra.mxu0 %v387
    %460 = vmatprep.subr.mxu0 %v392
    %461 = vmatpush1.msra.mxu0 %v391
    %462 = vmatprep.subr.mxu0 %v396
    %463 = vmatpush1.msra.mxu0 %v395
    %464 = vmatprep.subr.mxu0 %v400
    %465 = vmatpush1.msra.mxu0 %v399
    %466 = vmatprep.subr.mxu0 %v404
    %467 = vmatpush1.msra.mxu0 %v403
    %468 = vmatprep.subr.mxu0 %v408
    %469 = vmatpush1.msra.mxu0 %v407
    %470 = vmatprep.subr.mxu0 %v412
    %471 = vmatpush1.msra.mxu0 %v411
    %472 = vmatprep.subr.mxu0 %v416
    %473 = vmatpush1.msra.mxu0 %v415
    %474 = vmatprep.subr.mxu0 %v420
    %475 = vmatpush1.msra.mxu0 %v419
    %476 = vmatprep.subr.mxu0 %v424
    %477 = vmatpush1.msra.mxu0 %v423
    %478 = vmatprep.subr.mxu0 %v428
    %479 = vmatpush1.msra.mxu0 %v427
    %480 = vmatprep.subr.mxu0 %v432
    %481 = vmatpush1.msra.mxu0 %v431
    %482 = vmatprep.subr.mxu0 %v436
    %483 = vmatpush1.msra.mxu0 %v435
    %484 = vmatprep.subr.mxu0 %v440
    %485 = vmatpush1.msra.mxu0 %v439
    %486 = vmatprep.subr.mxu0 %v444
    %487 = vmatpush1.msra.mxu0 %v443
    %488 = vmatprep.subr.mxu0 0.0
    %489 = vmatpush1.msra.mxu0 0.0
    %490 = vmatprep.subr.mxu0 0.0
    %491 = vmatpush1.msra.mxu0 0.0
    %492 = vmatprep.subr.mxu0 0.0
    %493 = vmatpush1.msra.mxu0 0.0
    %494 = vmatprep.subr.mxu0 0.0
    %495 = vmatpush1.msra.mxu0 0.0
    %496 = vmatprep.subr.mxu0 0.0
    %497 = vmatpush1.msra.mxu0 0.0
    %498 = vmatprep.subr.mxu0 0.0
    %499 = vmatpush1.msra.mxu0 0.0
    %500 = vmatprep.subr.mxu0 0.0
    %501 = vmatpush1.msra.mxu0 0.0
    %502 = vmatprep.subr.mxu0 0.0
    %503 = vmatpush1.msra.mxu0 0.0
    %504 = vmatprep.subr.mxu0 0.0
    %505 = vmatpush1.msra.mxu0 0.0
    %506 = vmatprep.subr.mxu0 0.0
    %507 = vmatpush1.msra.mxu0 0.0
    %508 = vmatprep.subr.mxu0 0.0
    %509 = vmatpush1.msra.mxu0 0.0
    %510 = vmatprep.subr.mxu0 0.0
    %511 = vmatpush1.msra.mxu0 0.0
    %512 = vmatprep.subr.mxu0 0.0
    %513 = vmatpush1.msra.mxu0 0.0
    %514 = vmatprep.subr.mxu0 0.0
    %515 = vmatpush1.msra.mxu0 0.0
    %516 = vmatprep.subr.mxu0 0.0
    %517 = vmatpush1.msra.mxu0 0.0
    %518 = vmatprep.subr.mxu0 0.0
    %519 = vmatpush1.msra.mxu0 0.0
    %520 = vmatprep.mubr.f32.mxu0 0.0
    %521 = vmatmul.mubr.f32.gmra.mrb[0].mxu0 %v447
    %v522 = vpop.f32.mrb[0].mxu0
    %v523 = vadd.f32 0.0, %v522
    %v524 = vpop.f32.mrb[0].mxu0
    %v525 = vadd.f32 0.0, %v524
    %526 = vdwg.mxu0
    %527 = vmatprep.subr.mxu0 %v386
    %528 = vmatpush1.msra.mxu0 %v385
    %529 = vmatprep.subr.mxu0 %v390
    %530 = vmatpush1.msra.mxu0 %v389
    %531 = vmatprep.subr.mxu0 %v394
    %532 = vmatpush1.msra.mxu0 %v393
    %533 = vmatprep.subr.mxu0 %v398
    %534 = vmatpush1.msra.mxu0 %v397
    %535 = vmatprep.subr.mxu0 %v402
    %536 = vmatpush1.msra.mxu0 %v401
    %537 = vmatprep.subr.mxu0 %v406
    %538 = vmatpush1.msra.mxu0 %v405
    %539 = vmatprep.subr.mxu0 %v410
    %540 = vmatpush1.msra.mxu0 %v409
    %541 = vmatprep.subr.mxu0 %v414
    %542 = vmatpush1.msra.mxu0 %v413
    %543 = vmatprep.subr.mxu0 %v418
    %544 = vmatpush1.msra.mxu0 %v417
    %545 = vmatprep.subr.mxu0 %v422
    %546 = vmatpush1.msra.mxu0 %v421
    %547 = vmatprep.subr.mxu0 %v426
    %548 = vmatpush1.msra.mxu0 %v425
    %549 = vmatprep.subr.mxu0 %v430
    %550 = vmatpush1.msra.mxu0 %v429
    %551 = vmatprep.subr.mxu0 %v434
    %552 = vmatpush1.msra.mxu0 %v433
    %553 = vmatprep.subr.mxu0 %v438
    %554 = vmatpush1.msra.mxu0 %v437
    %555 = vmatprep.subr.mxu0 %v442
    %556 = vmatpush1.msra.mxu0 %v441
    %557 = vmatprep.subr.mxu0 %v446
    %558 = vmatpush1.msra.mxu0 %v445
    %559 = vmatprep.subr.mxu0 0.0
    %560 = vmatpush1.msra.mxu0 0.0
    %561 = vmatprep.subr.mxu0 0.0
    %562 = vmatpush1.msra.mxu0 0.0
    %563 = vmatprep.subr.mxu0 0.0
    %564 = vmatpush1.msra.mxu0 0.0
    %565 = vmatprep.subr.mxu0 0.0
    %566 = vmatpush1.msra.mxu0 0.0
    %567 = vmatprep.subr.mxu0 0.0
    %568 = vmatpush1.msra.mxu0 0.0
    %569 = vmatprep.subr.mxu0 0.0
    %570 = vmatpush1.msra.mxu0 0.0
    %571 = vmatprep.subr.mxu0 0.0
    %572 = vmatpush1.msra.mxu0 0.0
    %573 = vmatprep.subr.mxu0 0.0
    %574 = vmatpush1.msra.mxu0 0.0
    %575 = vmatprep.subr.mxu0 0.0
    %576 = vmatpush1.msra.mxu0 0.0
    %577 = vmatprep.subr.mxu0 0.0
    %578 = vmatpush1.msra.mxu0 0.0
    %579 = vmatprep.subr.mxu0 0.0
    %580 = vmatpush1.msra.mxu0 0.0
    %581 = vmatprep.subr.mxu0 0.0
    %582 = vmatpush1.msra.mxu0 0.0
    %583 = vmatprep.subr.mxu0 0.0
    %584 = vmatpush1.msra.mxu0 0.0
    %585 = vmatprep.subr.mxu0 0.0
    %586 = vmatpush1.msra.mxu0 0.0
    %587 = vmatprep.subr.mxu0 0.0
    %588 = vmatpush1.msra.mxu0 0.0
    %589 = vmatprep.subr.mxu0 0.0
    %590 = vmatpush1.msra.mxu0 0.0
    %591 = vmatprep.mubr.f32.mxu0 0.0
    %592 = vmatmul.mubr.f32.gmra.mrb[0].mxu0 %v447
    %v593 = vpop.f32.mrb[0].mxu0
    %v594 = vadd.f32 0.0, %v593
    %v595 = vpop.f32.mrb[0].mxu0
    %v596 = vadd.f32 0.0, %v595
    %597 = vdwg.mxu0
    %v598 = vadd.f32 %v452, %v523
    %v599 = vadd.f32 %v453, %v525
    %v600 = vadd.f32 %v454, %v594
    %v601 = vadd.f32 %v455, %v596
    %v602 = vxor.u32 %v598, 2147483648
    %v603 = vmul.f32 %v602, 1.442695
    %v604 = vpow.pop %v603
    %v605 = vadd.f32 %v604, 1.0
    %v606 = vrcp.pop %v605
    %v607 = vmul.f32 1.0, %v606
    %v608 = vxor.u32 %v599, 2147483648
    %v609 = vmul.f32 %v608, 1.442695
    %v610 = vpow.pop %v609
    %v611 = vadd.f32 %v610, 1.0
    %v612 = vrcp.pop %v611
    %v613 = vmul.f32 1.0, %v612
    %v614 = vtanh.pop %v600
    %v615 = vxor.u32 %v601, 2147483648
    %v616 = vmul.f32 %v615, 1.442695
    %v617 = vpow.pop %v616
    %v618 = vadd.f32 %v617, 1.0
    %v619 = vrcp.pop %v618
    %v620 = vmul.f32 1.0, %v619
    %v621 = vmul.f32 %v613, %v448
    %v622 = vmul.f32 %v607, %v614
    %v623 = vadd.f32 %v621, %v622
    %v624 = vtanh.pop %v623
    %v625 = vmul.f32 %v620, %v624
    %626 = vst [vmem:[%s4] sm:$0xff] %v625
    %s627 = smul.u32 1, 4
    %s628 = smul.addr %s627, 8
    %s629 = scalar_lea.vmem [#allocation4], %s628
    %v630 = vld [vmem:[%s629] sm:$0xff]
    %v631 = vld [vmem:[%s629 + $0x8] sm:$0xff]
    %v632 = vld [vmem:[%s629 + $0x10] sm:$0xff]
    %v633 = vld [vmem:[%s629 + $0x18] sm:$0xff]
    %634 = vmatprep.subr.mxu0 %v384
    %635 = vmatpush1.msra.mxu0 %v383
    %636 = vmatprep.subr.mxu0 %v388
    %637 = vmatpush1.msra.mxu0 %v387
    %638 = vmatprep.subr.mxu0 %v392
    %639 = vmatpush1.msra.mxu0 %v391
    %640 = vmatprep.subr.mxu0 %v396
    %641 = vmatpush1.msra.mxu0 %v395
    %642 = vmatprep.subr.mxu0 %v400
    %643 = vmatpush1.msra.mxu0 %v399
    %644 = vmatprep.subr.mxu0 %v404
    %645 = vmatpush1.msra.mxu0 %v403
    %646 = vmatprep.subr.mxu0 %v408
    %647 = vmatpush1.msra.mxu0 %v407
    %648 = vmatprep.subr.mxu0 %v412
    %649 = vmatpush1.msra.mxu0 %v411
    %650 = vmatprep.subr.mxu0 %v416
    %651 = vmatpush1.msra.mxu0 %v415
    %652 = vmatprep.subr.mxu0 %v420
    %653 = vmatpush1.msra.mxu0 %v419
    %654 = vmatprep.subr.mxu0 %v424
    %655 = vmatpush1.msra.mxu0 %v423
    %656 = vmatprep.subr.mxu0 %v428
    %657 = vmatpush1.msra.mxu0 %v427
    %658 = vmatprep.subr.mxu0 %v432
    %659 = vmatpush1.msra.mxu0 %v431
    %660 = vmatprep.subr.mxu0 %v436
    %661 = vmatpush1.msra.mxu0 %v435
    %662 = vmatprep.subr.mxu0 %v440
    %663 = vmatpush1.msra.mxu0 %v439
    %664 = vmatprep.subr.mxu0 %v444
    %665 = vmatpush1.msra.mxu0 %v443
    %666 = vmatprep.subr.mxu0 0.0
    %667 = vmatpush1.msra.mxu0 0.0
    %668 = vmatprep.subr.mxu0 0.0
    %669 = vmatpush1.msra.mxu0 0.0
    %670 = vmatprep.subr.mxu0 0.0
    %671 = vmatpush1.msra.mxu0 0.0
    %672 = vmatprep.subr.mxu0 0.0
    %673 = vmatpush1.msra.mxu0 0.0
    %674 = vmatprep.subr.mxu0 0.0
    %675 = vmatpush1.msra.mxu0 0.0
    %676 = vmatprep.subr.mxu0 0.0
    %677 = vmatpush1.msra.mxu0 0.0
    %678 = vmatprep.subr.mxu0 0.0
    %679 = vmatpush1.msra.mxu0 0.0
    %680 = vmatprep.subr.mxu0 0.0
    %681 = vmatpush1.msra.mxu0 0.0
    %682 = vmatprep.subr.mxu0 0.0
    %683 = vmatpush1.msra.mxu0 0.0
    %684 = vmatprep.subr.mxu0 0.0
    %685 = vmatpush1.msra.mxu0 0.0
    %686 = vmatprep.subr.mxu0 0.0
    %687 = vmatpush1.msra.mxu0 0.0
    %688 = vmatprep.subr.mxu0 0.0
    %689 = vmatpush1.msra.mxu0 0.0
    %690 = vmatprep.subr.mxu0 0.0
    %691 = vmatpush1.msra.mxu0 0.0
    %692 = vmatprep.subr.mxu0 0.0
    %693 = vmatpush1.msra.mxu0 0.0
    %694 = vmatprep.subr.mxu0 0.0
    %695 = vmatpush1.msra.mxu0 0.0
    %696 = vmatprep.subr.mxu0 0.0
    %697 = vmatpush1.msra.mxu0 0.0
    %698 = vmatprep.mubr.f32.mxu0 0.0
    %699 = vmatmul.mubr.f32.gmra.mrb[0].mxu0 %v625
    %v700 = vpop.f32.mrb[0].mxu0
    %v701 = vadd.f32 0.0, %v700
    %v702 = vpop.f32.mrb[0].mxu0
    %v703 = vadd.f32 0.0, %v702
    %704 = vdwg.mxu0
    %705 = vmatprep.subr.mxu0 %v386
    %706 = vmatpush1.msra.mxu0 %v385
    %707 = vmatprep.subr.mxu0 %v390
    %708 = vmatpush1.msra.mxu0 %v389
    %709 = vmatprep.subr.mxu0 %v394
    %710 = vmatpush1.msra.mxu0 %v393
    %711 = vmatprep.subr.mxu0 %v398
    %712 = vmatpush1.msra.mxu0 %v397
    %713 = vmatprep.subr.mxu0 %v402
    %714 = vmatpush1.msra.mxu0 %v401
    %715 = vmatprep.subr.mxu0 %v406
    %716 = vmatpush1.msra.mxu0 %v405
    %717 = vmatprep.subr.mxu0 %v410
    %718 = vmatpush1.msra.mxu0 %v409
    %719 = vmatprep.subr.mxu0 %v414
    %720 = vmatpush1.msra.mxu0 %v413
    %721 = vmatprep.subr.mxu0 %v418
    %722 = vmatpush1.msra.mxu0 %v417
    %723 = vmatprep.subr.mxu0 %v422
    %724 = vmatpush1.msra.mxu0 %v421
    %725 = vmatprep.subr.mxu0 %v426
    %726 = vmatpush1.msra.mxu0 %v425
    %727 = vmatprep.subr.mxu0 %v430
    %728 = vmatpush1.msra.mxu0 %v429
    %729 = vmatprep.subr.mxu0 %v434
    %730 = vmatpush1.msra.mxu0 %v433
    %731 = vmatprep.subr.mxu0 %v438
    %732 = vmatpush1.msra.mxu0 %v437
    %733 = vmatprep.subr.mxu0 %v442
    %734 = vmatpush1.msra.mxu0 %v441
    %735 = vmatprep.subr.mxu0 %v446
    %736 = vmatpush1.msra.mxu0 %v445
    %737 = vmatprep.subr.mxu0 0.0
    %738 = vmatpush1.msra.mxu0 0.0
    %739 = vmatprep.subr.mxu0 0.0
    %740 = vmatpush1.msra.mxu0 0.0
    %741 = vmatprep.subr.mxu0 0.0
    %742 = vmatpush1.msra.mxu0 0.0
    %743 = vmatprep.subr.mxu0 0.0
    %744 = vmatpush1.msra.mxu0 0.0
    %745 = vmatprep.subr.mxu0 0.0
    %746 = vmatpush1.msra.mxu0 0.0
    %747 = vmatprep.subr.mxu0 0.0
    %748 = vmatpush1.msra.mxu0 0.0
    %749 = vmatprep.subr.mxu0 0.0
    %750 = vmatpush1.msra.mxu0 0.0
    %751 = vmatprep.subr.mxu0 0.0
    %752 = vmatpush1.msra.mxu0 0.0
    %753 = vmatprep.subr.mxu0 0.0
    %754 = vmatpush1.msra.mxu0 0.0
    %755 = vmatprep.subr.mxu0 0.0
    %756 = vmatpush1.msra.mxu0 0.0
    %757 = vmatprep.subr.mxu0 0.0
    %758 = vmatpush1.msra.mxu0 0.0
    %759 = vmatprep.subr.mxu0 0.0
    %760 = vmatpush1.msra.mxu0 0.0
    %761 = vmatprep.subr.mxu0 0.0
    %762 = vmatpush1.msra.mxu0 0.0
    %763 = vmatprep.subr.mxu0 0.0
    %764 = vmatpush1.msra.mxu0 0.0
    %765 = vmatprep.subr.mxu0 0.0
    %766 = vmatpush1.msra.mxu0 0.0
    %767 = vmatprep.subr.mxu0 0.0
    %768 = vmatpush1.msra.mxu0 0.0
    %769 = vmatprep.mubr.f32.mxu0 0.0
    %770 = vmatmul.mubr.f32.gmra.mrb[0].mxu0 %v625
    %v771 = vpop.f32.mrb[0].mxu0
    %v772 = vadd.f32 0.0, %v771
    %v773 = vpop.f32.mrb[0].mxu0
    %v774 = vadd.f32 0.0, %v773
    %775 = vdwg.mxu0
    %v776 = vadd.f32 %v630, %v701
    %v777 = vadd.f32 %v631, %v703
    %v778 = vadd.f32 %v632, %v772
    %v779 = vadd.f32 %v633, %v774
    %v780 = vxor.u32 %v776, 2147483648
    %v781 = vmul.f32 %v780, 1.442695
    %v782 = vpow.pop %v781
    %v783 = vadd.f32 %v782, 1.0
    %v784 = vrcp.pop %v783
    %v785 = vmul.f32 1.0, %v784
    %v786 = vxor.u32 %v777, 2147483648
    %v787 = vmul.f32 %v786, 1.442695
    %v788 = vpow.pop %v787
    %v789 = vadd.f32 %v788, 1.0
    %v790 = vrcp.pop %v789
    %v791 = vmul.f32 1.0, %v790
    %v792 = vtanh.pop %v778
    %v793 = vxor.u32 %v779, 2147483648
    %v794 = vmul.f32 %v793, 1.442695
    %v795 = vpow.pop %v794
    %v796 = vadd.f32 %v795, 1.0
    %v797 = vrcp.pop %v796
    %v798 = vmul.f32 1.0, %v797
    %v799 = vmul.f32 %v791, %v623
    %v800 = vmul.f32 %v785, %v792
    %v801 = vadd.f32 %v799, %v800
    %v802 = vtanh.pop %v801
    %v803 = vmul.f32 %v798, %v802
    %s804 = scalar_lea.vmem %s4, 8
    %805 = vst [vmem:[%s804] sm:$0xff] %v803
    %s806 = smul.u32 2, 4
    %s807 = smul.addr %s806, 8
    %s808 = scalar_lea.vmem [#allocation4], %s807
    %v809 = vld [vmem:[%s808] sm:$0xff]
    %v810 = vld [vmem:[%s808 + $0x8] sm:$0xff]
    %v811 = vld [vmem:[%s808 + $0x10] sm:$0xff]
    %v812 = vld [vmem:[%s808 + $0x18] sm:$0xff]
    %813 = vmatprep.subr.mxu0 %v384
    %814 = vmatpush1.msra.mxu0 %v383
    %815 = vmatprep.subr.mxu0 %v388
    %816 = vmatpush1.msra.mxu0 %v387
    %817 = vmatprep.subr.mxu0 %v392
    %818 = vmatpush1.msra.mxu0 %v391
    %819 = vmatprep.subr.mxu0 %v396
    %820 = vmatpush1.msra.mxu0 %v395
    %821 = vmatprep.subr.mxu0 %v400
    %822 = vmatpush1.msra.mxu0 %v399
    %823 = vmatprep.subr.mxu0 %v404
    %824 = vmatpush1.msra.mxu0 %v403
    %825 = vmatprep.subr.mxu0 %v408
    %826 = vmatpush1.msra.mxu0 %v407
    %827 = vmatprep.subr.mxu0 %v412
    %828 = vmatpush1.msra.mxu0 %v411
    %829 = vmatprep.subr.mxu0 %v416
    %830 = vmatpush1.msra.mxu0 %v415
    %831 = vmatprep.subr.mxu0 %v420
    %832 = vmatpush1.msra.mxu0 %v419
    %833 = vmatprep.subr.mxu0 %v424
    %834 = vmatpush1.msra.mxu0 %v423
    %835 = vmatprep.subr.mxu0 %v428
    %836 = vmatpush1.msra.mxu0 %v427
    %837 = vmatprep.subr.mxu0 %v432
    %838 = vmatpush1.msra.mxu0 %v431
    %839 = vmatprep.subr.mxu0 %v436
    %840 = vmatpush1.msra.mxu0 %v435
    %841 = vmatprep.subr.mxu0 %v440
    %842 = vmatpush1.msra.mxu0 %v439
    %843 = vmatprep.subr.mxu0 %v444
    %844 = vmatpush1.msra.mxu0 %v443
    %845 = vmatprep.subr.mxu0 0.0
    %846 = vmatpush1.msra.mxu0 0.0
    %847 = vmatprep.subr.mxu0 0.0
    %848 = vmatpush1.msra.mxu0 0.0
    %849 = vmatprep.subr.mxu0 0.0
    %850 = vmatpush1.msra.mxu0 0.0
    %851 = vmatprep.subr.mxu0 0.0
    %852 = vmatpush1.msra.mxu0 0.0
    %853 = vmatprep.subr.mxu0 0.0
    %854 = vmatpush1.msra.mxu0 0.0
    %855 = vmatprep.subr.mxu0 0.0
    %856 = vmatpush1.msra.mxu0 0.0
    %857 = vmatprep.subr.mxu0 0.0
    %858 = vmatpush1.msra.mxu0 0.0
    %859 = vmatprep.subr.mxu0 0.0
    %860 = vmatpush1.msra.mxu0 0.0
    %861 = vmatprep.subr.mxu0 0.0
    %862 = vmatpush1.msra.mxu0 0.0
    %863 = vmatprep.subr.mxu0 0.0
    %864 = vmatpush1.msra.mxu0 0.0
    %865 = vmatprep.subr.mxu0 0.0
    %866 = vmatpush1.msra.mxu0 0.0
    %867 = vmatprep.subr.mxu0 0.0
    %868 = vmatpush1.msra.mxu0 0.0
    %869 = vmatprep.subr.mxu0 0.0
    %870 = vmatpush1.msra.mxu0 0.0
    %871 = vmatprep.subr.mxu0 0.0
    %872 = vmatpush1.msra.mxu0 0.0
    %873 = vmatprep.subr.mxu0 0.0
    %874 = vmatpush1.msra.mxu0 0.0
    %875 = vmatprep.subr.mxu0 0.0
    %876 = vmatpush1.msra.mxu0 0.0
    %877 = vmatprep.mubr.f32.mxu0 0.0
    %878 = vmatmul.mubr.f32.gmra.mrb[0].mxu0 %v803
    %v879 = vpop.f32.mrb[0].mxu0
    %v880 = vadd.f32 0.0, %v879
    %v881 = vpop.f32.mrb[0].mxu0
    %v882 = vadd.f32 0.0, %v881
    %883 = vdwg.mxu0
    %884 = vmatprep.subr.mxu0 %v386
    %885 = vmatpush1.msra.mxu0 %v385
    %886 = vmatprep.subr.mxu0 %v390
    %887 = vmatpush1.msra.mxu0 %v389
    %888 = vmatprep.subr.mxu0 %v394
    %889 = vmatpush1.msra.mxu0 %v393
    %890 = vmatprep.subr.mxu0 %v398
    %891 = vmatpush1.msra.mxu0 %v397
    %892 = vmatprep.subr.mxu0 %v402
    %893 = vmatpush1.msra.mxu0 %v401
    %894 = vmatprep.subr.mxu0 %v406
    %895 = vmatpush1.msra.mxu0 %v405
    %896 = vmatprep.subr.mxu0 %v410
    %897 = vmatpush1.msra.mxu0 %v409
    %898 = vmatprep.subr.mxu0 %v414
    %899 = vmatpush1.msra.mxu0 %v413
    %900 = vmatprep.subr.mxu0 %v418
    %901 = vmatpush1.msra.mxu0 %v417
    %902 = vmatprep.subr.mxu0 %v422
    %903 = vmatpush1.msra.mxu0 %v421
    %904 = vmatprep.subr.mxu0 %v426
    %905 = vmatpush1.msra.mxu0 %v425
    %906 = vmatprep.subr.mxu0 %v430
    %907 = vmatpush1.msra.mxu0 %v429
    %908 = vmatprep.subr.mxu0 %v434
    %909 = vmatpush1.msra.mxu0 %v433
    %910 = vmatprep.subr.mxu0 %v438
    %911 = vmatpush1.msra.mxu0 %v437
    %912 = vmatprep.subr.mxu0 %v442
    %913 = vmatpush1.msra.mxu0 %v441
    %914 = vmatprep.subr.mxu0 %v446
    %915 = vmatpush1.msra.mxu0 %v445
    %916 = vmatprep.subr.mxu0 0.0
    %917 = vmatpush1.msra.mxu0 0.0
    %918 = vmatprep.subr.mxu0 0.0
    %919 = vmatpush1.msra.mxu0 0.0
    %920 = vmatprep.subr.mxu0 0.0
    %921 = vmatpush1.msra.mxu0 0.0
    %922 = vmatprep.subr.mxu0 0.0
    %923 = vmatpush1.msra.mxu0 0.0
    %924 = vmatprep.subr.mxu0 0.0
    %925 = vmatpush1.msra.mxu0 0.0
    %926 = vmatprep.subr.mxu0 0.0
    %927 = vmatpush1.msra.mxu0 0.0
    %928 = vmatprep.subr.mxu0 0.0
    %929 = vmatpush1.msra.mxu0 0.0
    %930 = vmatprep.subr.mxu0 0.0
    %931 = vmatpush1.msra.mxu0 0.0
    %932 = vmatprep.subr.mxu0 0.0
    %933 = vmatpush1.msra.mxu0 0.0
    %934 = vmatprep.subr.mxu0 0.0
    %935 = vmatpush1.msra.mxu0 0.0
    %936 = vmatprep.subr.mxu0 0.0
    %937 = vmatpush1.msra.mxu0 0.0
    %938 = vmatprep.subr.mxu0 0.0
    %939 = vmatpush1.msra.mxu0 0.0
    %940 = vmatprep.subr.mxu0 0.0
    %941 = vmatpush1.msra.mxu0 0.0
    %942 = vmatprep.subr.mxu0 0.0
    %943 = vmatpush1.msra.mxu0 0.0
    %944 = vmatprep.subr.mxu0 0.0
    %945 = vmatpush1.msra.mxu0 0.0
    %946 = vmatprep.subr.mxu0 0.0
    %947 = vmatpush1.msra.mxu0 0.0
    %948 = vmatprep.mubr.f32.mxu0 0.0
    %949 = vmatmul.mubr.f32.gmra.mrb[0].mxu0 %v803
    %v950 = vpop.f32.mrb[0].mxu0
    %v951 = vadd.f32 0.0, %v950
    %v952 = vpop.f32.mrb[0].mxu0
    %v953 = vadd.f32 0.0, %v952
    %954 = vdwg.mxu0
    %v955 = vadd.f32 %v809, %v880
    %v956 = vadd.f32 %v810, %v882
    %v957 = vadd.f32 %v811, %v951
    %v958 = vadd.f32 %v812, %v953
    %v959 = vxor.u32 %v955, 2147483648
    %v960 = vmul.f32 %v959, 1.442695
    %v961 = vpow.pop %v960
    %v962 = vadd.f32 %v961, 1.0
    %v963 = vrcp.pop %v962
    %v964 = vmul.f32 1.0, %v963
    %v965 = vxor.u32 %v956, 2147483648
    %v966 = vmul.f32 %v965, 1.442695
    %v967 = vpow.pop %v966
    %v968 = vadd.f32 %v967, 1.0
    %v969 = vrcp.pop %v968
    %v970 = vmul.f32 1.0, %v969
    %v971 = vtanh.pop %v957
    %v972 = vxor.u32 %v958, 2147483648
    %v973 = vmul.f32 %v972, 1.442695
    %v974 = vpow.pop %v973
    %v975 = vadd.f32 %v974, 1.0
    %v976 = vrcp.pop %v975
    %v977 = vmul.f32 1.0, %v976
    %v978 = vmul.f32 %v970, %v801
    %v979 = vmul.f32 %v964, %v971
    %v980 = vadd.f32 %v978, %v979
    %v981 = vtanh.pop %v980
    %v982 = vmul.f32 %v977, %v981
    %s983 = scalar_lea.vmem %s4, 16
    %984 = vst [vmem:[%s983] sm:$0xff] %v982
    %s985 = smul.u32 3, 4
    %s986 = smul.addr %s985, 8
    %s987 = scalar_lea.vmem [#allocation4], %s986
    %v988 = vld [vmem:[%s987] sm:$0xff]
    %v989 = vld [vmem:[%s987 + $0x8] sm:$0xff]
    %v990 = vld [vmem:[%s987 + $0x10] sm:$0xff]
    %v991 = vld [vmem:[%s987 + $0x18] sm:$0xff]
    %992 = vmatprep.subr.mxu0 %v384
    %993 = vmatpush1.msra.mxu0 %v383
    %994 = vmatprep.subr.mxu0 %v388
    %995 = vmatpush1.msra.mxu0 %v387
    %996 = vmatprep.subr.mxu0 %v392
    %997 = vmatpush1.msra.mxu0 %v391
    %998 = vmatprep.subr.mxu0 %v396
    %999 = vmatpush1.msra.mxu0 %v395
    %1000 = vmatprep.subr.mxu0 %v400
    %1001 = vmatpush1.msra.mxu0 %v399
    %1002 = vmatprep.subr.mxu0 %v404
    %1003 = vmatpush1.msra.mxu0 %v403
    %1004 = vmatprep.subr.mxu0 %v408
    %1005 = vmatpush1.msra.mxu0 %v407
    %1006 = vmatprep.subr.mxu0 %v412
    %1007 = vmatpush1.msra.mxu0 %v411
    %1008 = vmatprep.subr.mxu0 %v416
    %1009 = vmatpush1.msra.mxu0 %v415
    %1010 = vmatprep.subr.mxu0 %v420
    %1011 = vmatpush1.msra.mxu0 %v419
    %1012 = vmatprep.subr.mxu0 %v424
    %1013 = vmatpush1.msra.mxu0 %v423
    %1014 = vmatprep.subr.mxu0 %v428
    %1015 = vmatpush1.msra.mxu0 %v427
    %1016 = vmatprep.subr.mxu0 %v432
    %1017 = vmatpush1.msra.mxu0 %v431
    %1018 = vmatprep.subr.mxu0 %v436
    %1019 = vmatpush1.msra.mxu0 %v435
    %1020 = vmatprep.subr.mxu0 %v440
    %1021 = vmatpush1.msra.mxu0 %v439
    %1022 = vmatprep.subr.mxu0 %v444
    %1023 = vmatpush1.msra.mxu0 %v443
    %1024 = vmatprep.subr.mxu0 0.0
    %1025 = vmatpush1.msra.mxu0 0.0
    %1026 = vmatprep.subr.mxu0 0.0
    %1027 = vmatpush1.msra.mxu0 0.0
    %1028 = vmatprep.subr.mxu0 0.0
    %1029 = vmatpush1.msra.mxu0 0.0
    %1030 = vmatprep.subr.mxu0 0.0
    %1031 = vmatpush1.msra.mxu0 0.0
    %1032 = vmatprep.subr.mxu0 0.0
    %1033 = vmatpush1.msra.mxu0 0.0
    %1034 = vmatprep.subr.mxu0 0.0
    %1035 = vmatpush1.msra.mxu0 0.0
    %1036 = vmatprep.subr.mxu0 0.0
    %1037 = vmatpush1.msra.mxu0 0.0
    %1038 = vmatprep.subr.mxu0 0.0
    %1039 = vmatpush1.msra.mxu0 0.0
    %1040 = vmatprep.subr.mxu0 0.0
    %1041 = vmatpush1.msra.mxu0 0.0
    %1042 = vmatprep.subr.mxu0 0.0
    %1043 = vmatpush1.msra.mxu0 0.0
    %1044 = vmatprep.subr.mxu0 0.0
    %1045 = vmatpush1.msra.mxu0 0.0
    %1046 = vmatprep.subr.mxu0 0.0
    %1047 = vmatpush1.msra.mxu0 0.0
    %1048 = vmatprep.subr.mxu0 0.0
    %1049 = vmatpush1.msra.mxu0 0.0
    %1050 = vmatprep.subr.mxu0 0.0
    %1051 = vmatpush1.msra.mxu0 0.0
    %1052 = vmatprep.subr.mxu0 0.0
    %1053 = vmatpush1.msra.mxu0 0.0
    %1054 = vmatprep.subr.mxu0 0.0
    %1055 = vmatpush1.msra.mxu0 0.0
    %1056 = vmatprep.mubr.f32.mxu0 0.0
    %1057 = vmatmul.mubr.f32.gmra.mrb[0].mxu0 %v982
    %v1058 = vpop.f32.mrb[0].mxu0
    %v1059 = vadd.f32 0.0, %v1058
    %v1060 = vpop.f32.mrb[0].mxu0
    %v1061 = vadd.f32 0.0, %v1060
    %1062 = vdwg.mxu0
    %1063 = vmatprep.subr.mxu0 %v386
    %1064 = vmatpush1.msra.mxu0 %v385
    %1065 = vmatprep.subr.mxu0 %v390
    %1066 = vmatpush1.msra.mxu0 %v389
    %1067 = vmatprep.subr.mxu0 %v394
    %1068 = vmatpush1.msra.mxu0 %v393
    %1069 = vmatprep.subr.mxu0 %v398
    %1070 = vmatpush1.msra.mxu0 %v397
    %1071 = vmatprep.subr.mxu0 %v402
    %1072 = vmatpush1.msra.mxu0 %v401
    %1073 = vmatprep.subr.mxu0 %v406
    %1074 = vmatpush1.msra.mxu0 %v405
    %1075 = vmatprep.subr.mxu0 %v410
    %1076 = vmatpush1.msra.mxu0 %v409
    %1077 = vmatprep.subr.mxu0 %v414
    %1078 = vmatpush1.msra.mxu0 %v413
    %1079 = vmatprep.subr.mxu0 %v418
    %1080 = vmatpush1.msra.mxu0 %v417
    %1081 = vmatprep.subr.mxu0 %v422
    %1082 = vmatpush1.msra.mxu0 %v421
    %1083 = vmatprep.subr.mxu0 %v426
    %1084 = vmatpush1.msra.mxu0 %v425
    %1085 = vmatprep.subr.mxu0 %v430
    %1086 = vmatpush1.msra.mxu0 %v429
    %1087 = vmatprep.subr.mxu0 %v434
    %1088 = vmatpush1.msra.mxu0 %v433
    %1089 = vmatprep.subr.mxu0 %v438
    %1090 = vmatpush1.msra.mxu0 %v437
    %1091 = vmatprep.subr.mxu0 %v442
    %1092 = vmatpush1.msra.mxu0 %v441
    %1093 = vmatprep.subr.mxu0 %v446
    %1094 = vmatpush1.msra.mxu0 %v445
    %1095 = vmatprep.subr.mxu0 0.0
    %1096 = vmatpush1.msra.mxu0 0.0
    %1097 = vmatprep.subr.mxu0 0.0
    %1098 = vmatpush1.msra.mxu0 0.0
    %1099 = vmatprep.subr.mxu0 0.0
    %1100 = vmatpush1.msra.mxu0 0.0
    %1101 = vmatprep.subr.mxu0 0.0
    %1102 = vmatpush1.msra.mxu0 0.0
    %1103 = vmatprep.subr.mxu0 0.0
    %1104 = vmatpush1.msra.mxu0 0.0
    %1105 = vmatprep.subr.mxu0 0.0
    %1106 = vmatpush1.msra.mxu0 0.0
    %1107 = vmatprep.subr.mxu0 0.0
    %1108 = vmatpush1.msra.mxu0 0.0
    %1109 = vmatprep.subr.mxu0 0.0
    %1110 = vmatpush1.msra.mxu0 0.0
    %1111 = vmatprep.subr.mxu0 0.0
    %1112 = vmatpush1.msra.mxu0 0.0
    %1113 = vmatprep.subr.mxu0 0.0
    %1114 = vmatpush1.msra.mxu0 0.0
    %1115 = vmatprep.subr.mxu0 0.0
    %1116 = vmatpush1.msra.mxu0 0.0
    %1117 = vmatprep.subr.mxu0 0.0
    %1118 = vmatpush1.msra.mxu0 0.0
    %1119 = vmatprep.subr.mxu0 0.0
    %1120 = vmatpush1.msra.mxu0 0.0
    %1121 = vmatprep.subr.mxu0 0.0
    %1122 = vmatpush1.msra.mxu0 0.0
    %1123 = vmatprep.subr.mxu0 0.0
    %1124 = vmatpush1.msra.mxu0 0.0
    %1125 = vmatprep.subr.mxu0 0.0
    %1126 = vmatpush1.msra.mxu0 0.0
    %1127 = vmatprep.mubr.f32.mxu0 0.0
    %1128 = vmatmul.mubr.f32.gmra.mrb[0].mxu0 %v982
    %v1129 = vpop.f32.mrb[0].mxu0
    %v1130 = vadd.f32 0.0, %v1129
    %v1131 = vpop.f32.mrb[0].mxu0
    %v1132 = vadd.f32 0.0, %v1131
    %1133 = vdwg.mxu0
    %v1134 = vadd.f32 %v988, %v1059
    %v1135 = vadd.f32 %v989, %v1061
    %v1136 = vadd.f32 %v990, %v1130
    %v1137 = vadd.f32 %v991, %v1132
    %v1138 = vxor.u32 %v1134, 2147483648
    %v1139 = vmul.f32 %v1138, 1.442695
    %v1140 = vpow.pop %v1139
    %v1141 = vadd.f32 %v1140, 1.0
    %v1142 = vrcp.pop %v1141
    %v1143 = vmul.f32 1.0, %v1142
    %v1144 = vxor.u32 %v1135, 2147483648
    %v1145 = vmul.f32 %v1144, 1.442695
    %v1146 = vpow.pop %v1145
    %v1147 = vadd.f32 %v1146, 1.0
    %v1148 = vrcp.pop %v1147
    %v1149 = vmul.f32 1.0, %v1148
    %v1150 = vtanh.pop %v1136
    %v1151 = vxor.u32 %v1137, 2147483648
    %v1152 = vmul.f32 %v1151, 1.442695
    %v1153 = vpow.pop %v1152
    %v1154 = vadd.f32 %v1153, 1.0
    %v1155 = vrcp.pop %v1154
    %v1156 = vmul.f32 1.0, %v1155
    %v1157 = vmul.f32 %v1149, %v980
    %v1158 = vmul.f32 %v1143, %v1150
    %v1159 = vadd.f32 %v1157, %v1158
    %v1160 = vtanh.pop %v1159
    %v1161 = vmul.f32 %v1156, %v1160
    %s1162 = scalar_lea.vmem %s4, 24
    %1163 = vst [vmem:[%s1162] sm:$0xff] %v1161
    %s1164 = smul.u32 4, 4
    %s1165 = smul.addr %s1164, 8
    %s1166 = scalar_lea.vmem [#allocation4], %s1165
    %v1167 = vld [vmem:[%s1166] sm:$0xff]
    %v1168 = vld [vmem:[%s1166 + $0x8] sm:$0xff]
    %v1169 = vld [vmem:[%s1166 + $0x10] sm:$0xff]
    %v1170 = vld [vmem:[%s1166 + $0x18] sm:$0xff]
    %1171 = vmatprep.subr.mxu0 %v384
    %1172 = vmatpush1.msra.mxu0 %v383
    %1173 = vmatprep.subr.mxu0 %v388
    %1174 = vmatpush1.msra.mxu0 %v387
    %1175 = vmatprep.subr.mxu0 %v392
    %1176 = vmatpush1.msra.mxu0 %v391
    %1177 = vmatprep.subr.mxu0 %v396
    %1178 = vmatpush1.msra.mxu0 %v395
    %1179 = vmatprep.subr.mxu0 %v400
    %1180 = vmatpush1.msra.mxu0 %v399
    %1181 = vmatprep.subr.mxu0 %v404
    %1182 = vmatpush1.msra.mxu0 %v403
    %1183 = vmatprep.subr.mxu0 %v408
    %1184 = vmatpush1.msra.mxu0 %v407
    %1185 = vmatprep.subr.mxu0 %v412
    %1186 = vmatpush1.msra.mxu0 %v411
    %1187 = vmatprep.subr.mxu0 %v416
    %1188 = vmatpush1.msra.mxu0 %v415
    %1189 = vmatprep.subr.mxu0 %v420
    %1190 = vmatpush1.msra.mxu0 %v419
    %1191 = vmatprep.subr.mxu0 %v424
    %1192 = vmatpush1.msra.mxu0 %v423
    %1193 = vmatprep.subr.mxu0 %v428
    %1194 = vmatpush1.msra.mxu0 %v427
    %1195 = vmatprep.subr.mxu0 %v432
    %1196 = vmatpush1.msra.mxu0 %v431
    %1197 = vmatprep.subr.mxu0 %v436
    %1198 = vmatpush1.msra.mxu0 %v435
    %1199 = vmatprep.subr.mxu0 %v440
    %1200 = vmatpush1.msra.mxu0 %v439
    %1201 = vmatprep.subr.mxu0 %v444
    %1202 = vmatpush1.msra.mxu0 %v443
    %1203 = vmatprep.subr.mxu0 0.0
    %1204 = vmatpush1.msra.mxu0 0.0
    %1205 = vmatprep.subr.mxu0 0.0
    %1206 = vmatpush1.msra.mxu0 0.0
    %1207 = vmatprep.subr.mxu0 0.0
    %1208 = vmatpush1.msra.mxu0 0.0
    %1209 = vmatprep.subr.mxu0 0.0
    %1210 = vmatpush1.msra.mxu0 0.0
    %1211 = vmatprep.subr.mxu0 0.0
    %1212 = vmatpush1.msra.mxu0 0.0
    %1213 = vmatprep.subr.mxu0 0.0
    %1214 = vmatpush1.msra.mxu0 0.0
    %1215 = vmatprep.subr.mxu0 0.0
    %1216 = vmatpush1.msra.mxu0 0.0
    %1217 = vmatprep.subr.mxu0 0.0
    %1218 = vmatpush1.msra.mxu0 0.0
    %1219 = vmatprep.subr.mxu0 0.0
    %1220 = vmatpush1.msra.mxu0 0.0
    %1221 = vmatprep.subr.mxu0 0.0
    %1222 = vmatpush1.msra.mxu0 0.0
    %1223 = vmatprep.subr.mxu0 0.0
    %1224 = vmatpush1.msra.mxu0 0.0
    %1225 = vmatprep.subr.mxu0 0.0
    %1226 = vmatpush1.msra.mxu0 0.0
    %1227 = vmatprep.subr.mxu0 0.0
    %1228 = vmatpush1.msra.mxu0 0.0
    %1229 = vmatprep.subr.mxu0 0.0
    %1230 = vmatpush1.msra.mxu0 0.0
    %1231 = vmatprep.subr.mxu0 0.0
    %1232 = vmatpush1.msra.mxu0 0.0
    %1233 = vmatprep.subr.mxu0 0.0
    %1234 = vmatpush1.msra.mxu0 0.0
    %1235 = vmatprep.mubr.f32.mxu0 0.0
    %1236 = vmatmul.mubr.f32.gmra.mrb[0].mxu0 %v1161
    %v1237 = vpop.f32.mrb[0].mxu0
    %v1238 = vadd.f32 0.0, %v1237
    %v1239 = vpop.f32.mrb[0].mxu0
    %v1240 = vadd.f32 0.0, %v1239
    %1241 = vdwg.mxu0
    %1242 = vmatprep.subr.mxu0 %v386
    %1243 = vmatpush1.msra.mxu0 %v385
    %1244 = vmatprep.subr.mxu0 %v390
    %1245 = vmatpush1.msra.mxu0 %v389
    %1246 = vmatprep.subr.mxu0 %v394
    %1247 = vmatpush1.msra.mxu0 %v393
    %1248 = vmatprep.subr.mxu0 %v398
    %1249 = vmatpush1.msra.mxu0 %v397
    %1250 = vmatprep.subr.mxu0 %v402
    %1251 = vmatpush1.msra.mxu0 %v401
    %1252 = vmatprep.subr.mxu0 %v406
    %1253 = vmatpush1.msra.mxu0 %v405
    %1254 = vmatprep.subr.mxu0 %v410
    %1255 = vmatpush1.msra.mxu0 %v409
    %1256 = vmatprep.subr.mxu0 %v414
    %1257 = vmatpush1.msra.mxu0 %v413
    %1258 = vmatprep.subr.mxu0 %v418
    %1259 = vmatpush1.msra.mxu0 %v417
    %1260 = vmatprep.subr.mxu0 %v422
    %1261 = vmatpush1.msra.mxu0 %v421
    %1262 = vmatprep.subr.mxu0 %v426
    %1263 = vmatpush1.msra.mxu0 %v425
    %1264 = vmatprep.subr.mxu0 %v430
    %1265 = vmatpush1.msra.mxu0 %v429
    %1266 = vmatprep.subr.mxu0 %v434
    %1267 = vmatpush1.msra.mxu0 %v433
    %1268 = vmatprep.subr.mxu0 %v438
    %1269 = vmatpush1.msra.mxu0 %v437
    %1270 = vmatprep.subr.mxu0 %v442
    %1271 = vmatpush1.msra.mxu0 %v441
    %1272 = vmatprep.subr.mxu0 %v446
    %1273 = vmatpush1.msra.mxu0 %v445
    %1274 = vmatprep.subr.mxu0 0.0
    %1275 = vmatpush1.msra.mxu0 0.0
    %1276 = vmatprep.subr.mxu0 0.0
    %1277 = vmatpush1.msra.mxu0 0.0
    %1278 = vmatprep.subr.mxu0 0.0
    %1279 = vmatpush1.msra.mxu0 0.0
    %1280 = vmatprep.subr.mxu0 0.0
    %1281 = vmatpush1.msra.mxu0 0.0
    %1282 = vmatprep.subr.mxu0 0.0
    %1283 = vmatpush1.msra.mxu0 0.0
    %1284 = vmatprep.subr.mxu0 0.0
    %1285 = vmatpush1.msra.mxu0 0.0
    %1286 = vmatprep.subr.mxu0 0.0
    %1287 = vmatpush1.msra.mxu0 0.0
    %1288 = vmatprep.subr.mxu0 0.0
    %1289 = vmatpush1.msra.mxu0 0.0
    %1290 = vmatprep.subr.mxu0 0.0
    %1291 = vmatpush1.msra.mxu0 0.0
    %1292 = vmatprep.subr.mxu0 0.0
    %1293 = vmatpush1.msra.mxu0 0.0
    %1294 = vmatprep.subr.mxu0 0.0
    %1295 = vmatpush1.msra.mxu0 0.0
    %1296 = vmatprep.subr.mxu0 0.0
    %1297 = vmatpush1.msra.mxu0 0.0
    %1298 = vmatprep.subr.mxu0 0.0
    %1299 = vmatpush1.msra.mxu0 0.0
    %1300 = vmatprep.subr.mxu0 0.0
    %1301 = vmatpush1.msra.mxu0 0.0
    %1302 = vmatprep.subr.mxu0 0.0
    %1303 = vmatpush1.msra.mxu0 0.0
    %1304 = vmatprep.subr.mxu0 0.0
    %1305 = vmatpush1.msra.mxu0 0.0
    %1306 = vmatprep.mubr.f32.mxu0 0.0
    %1307 = vmatmul.mubr.f32.gmra.mrb[0].mxu0 %v1161
    %v1308 = vpop.f32.mrb[0].mxu0
    %v1309 = vadd.f32 0.0, %v1308
    %v1310 = vpop.f32.mrb[0].mxu0
    %v1311 = vadd.f32 0.0, %v1310
    %1312 = vdwg.mxu0
    %v1313 = vadd.f32 %v1167, %v1238
    %v1314 = vadd.f32 %v1168, %v1240
    %v1315 = vadd.f32 %v1169, %v1309
    %v1316 = vadd.f32 %v1170, %v1311
    %v1317 = vxor.u32 %v1313, 2147483648
    %v1318 = vmul.f32 %v1317, 1.442695
    %v1319 = vpow.pop %v1318
    %v1320 = vadd.f32 %v1319, 1.0
    %v1321 = vrcp.pop %v1320
    %v1322 = vmul.f32 1.0, %v1321
    %v1323 = vxor.u32 %v1314, 2147483648
    %v1324 = vmul.f32 %v1323, 1.442695
    %v1325 = vpow.pop %v1324
    %v1326 = vadd.f32 %v1325, 1.0
    %v1327 = vrcp.pop %v1326
    %v1328 = vmul.f32 1.0, %v1327
    %v1329 = vtanh.pop %v1315
    %v1330 = vxor.u32 %v1316, 2147483648
    %v1331 = vmul.f32 %v1330, 1.442695
    %v1332 = vpow.pop %v1331
    %v1333 = vadd.f32 %v1332, 1.0
    %v1334 = vrcp.pop %v1333
    %v1335 = vmul.f32 1.0, %v1334
    %v1336 = vmul.f32 %v1328, %v1159
    %v1337 = vmul.f32 %v1322, %v1329
    %v1338 = vadd.f32 %v1336, %v1337
    %v1339 = vtanh.pop %v1338
    %v1340 = vmul.f32 %v1335, %v1339
    %s1341 = scalar_lea.vmem %s4, 32
    %1342 = vst [vmem:[%s1341] sm:$0xff] %v1340
    %s1343 = smul.u32 5, 4
    %s1344 = smul.addr %s1343, 8
    %s1345 = scalar_lea.vmem [#allocation4], %s1344
    %v1346 = vld [vmem:[%s1345] sm:$0xff]
    %v1347 = vld [vmem:[%s1345 + $0x8] sm:$0xff]
    %v1348 = vld [vmem:[%s1345 + $0x10] sm:$0xff]
    %v1349 = vld [vmem:[%s1345 + $0x18] sm:$0xff]
    %1350 = vmatprep.subr.mxu0 %v384
    %1351 = vmatpush1.msra.mxu0 %v383
    %1352 = vmatprep.subr.mxu0 %v388
    %1353 = vmatpush1.msra.mxu0 %v387
    %1354 = vmatprep.subr.mxu0 %v392
    %1355 = vmatpush1.msra.mxu0 %v391
    %1356 = vmatprep.subr.mxu0 %v396
    %1357 = vmatpush1.msra.mxu0 %v395
    %1358 = vmatprep.subr.mxu0 %v400
    %1359 = vmatpush1.msra.mxu0 %v399
    %1360 = vmatprep.subr.mxu0 %v404
    %1361 = vmatpush1.msra.mxu0 %v403
    %1362 = vmatprep.subr.mxu0 %v408
    %1363 = vmatpush1.msra.mxu0 %v407
    %1364 = vmatprep.subr.mxu0 %v412
    %1365 = vmatpush1.msra.mxu0 %v411
    %1366 = vmatprep.subr.mxu0 %v416
    %1367 = vmatpush1.msra.mxu0 %v415
    %1368 = vmatprep.subr.mxu0 %v420
    %1369 = vmatpush1.msra.mxu0 %v419
    %1370 = vmatprep.subr.mxu0 %v424
    %1371 = vmatpush1.msra.mxu0 %v423
    %1372 = vmatprep.subr.mxu0 %v428
    %1373 = vmatpush1.msra.mxu0 %v427
    %1374 = vmatprep.subr.mxu0 %v432
    %1375 = vmatpush1.msra.mxu0 %v431
    %1376 = vmatprep.subr.mxu0 %v436
    %1377 = vmatpush1.msra.mxu0 %v435
    %1378 = vmatprep.subr.mxu0 %v440
    %1379 = vmatpush1.msra.mxu0 %v439
    %1380 = vmatprep.subr.mxu0 %v444
    %1381 = vmatpush1.msra.mxu0 %v443
    %1382 = vmatprep.subr.mxu0 0.0
    %1383 = vmatpush1.msra.mxu0 0.0
    %1384 = vmatprep.subr.mxu0 0.0
    %1385 = vmatpush1.msra.mxu0 0.0
    %1386 = vmatprep.subr.mxu0 0.0
    %1387 = vmatpush1.msra.mxu0 0.0
    %1388 = vmatprep.subr.mxu0 0.0
    %1389 = vmatpush1.msra.mxu0 0.0
    %1390 = vmatprep.subr.mxu0 0.0
    %1391 = vmatpush1.msra.mxu0 0.0
    %1392 = vmatprep.subr.mxu0 0.0
    %1393 = vmatpush1.msra.mxu0 0.0
    %1394 = vmatprep.subr.mxu0 0.0
    %1395 = vmatpush1.msra.mxu0 0.0
    %1396 = vmatprep.subr.mxu0 0.0
    %1397 = vmatpush1.msra.mxu0 0.0
    %1398 = vmatprep.subr.mxu0 0.0
    %1399 = vmatpush1.msra.mxu0 0.0
    %1400 = vmatprep.subr.mxu0 0.0
    %1401 = vmatpush1.msra.mxu0 0.0
    %1402 = vmatprep.subr.mxu0 0.0
    %1403 = vmatpush1.msra.mxu0 0.0
    %1404 = vmatprep.subr.mxu0 0.0
    %1405 = vmatpush1.msra.mxu0 0.0
    %1406 = vmatprep.subr.mxu0 0.0
    %1407 = vmatpush1.msra.mxu0 0.0
    %1408 = vmatprep.subr.mxu0 0.0
    %1409 = vmatpush1.msra.mxu0 0.0
    %1410 = vmatprep.subr.mxu0 0.0
    %1411 = vmatpush1.msra.mxu0 0.0
    %1412 = vmatprep.subr.mxu0 0.0
    %1413 = vmatpush1.msra.mxu0 0.0
    %1414 = vmatprep.mubr.f32.mxu0 0.0
    %1415 = vmatmul.mubr.f32.gmra.mrb[0].mxu0 %v1340
    %v1416 = vpop.f32.mrb[0].mxu0
    %v1417 = vadd.f32 0.0, %v1416
    %v1418 = vpop.f32.mrb[0].mxu0
    %v1419 = vadd.f32 0.0, %v1418
    %1420 = vdwg.mxu0
    %1421 = vmatprep.subr.mxu0 %v386
    %1422 = vmatpush1.msra.mxu0 %v385
    %1423 = vmatprep.subr.mxu0 %v390
    %1424 = vmatpush1.msra.mxu0 %v389
    %1425 = vmatprep.subr.mxu0 %v394
    %1426 = vmatpush1.msra.mxu0 %v393
    %1427 = vmatprep.subr.mxu0 %v398
    %1428 = vmatpush1.msra.mxu0 %v397
    %1429 = vmatprep.subr.mxu0 %v402
    %1430 = vmatpush1.msra.mxu0 %v401
    %1431 = vmatprep.subr.mxu0 %v406
    %1432 = vmatpush1.msra.mxu0 %v405
    %1433 = vmatprep.subr.mxu0 %v410
    %1434 = vmatpush1.msra.mxu0 %v409
    %1435 = vmatprep.subr.mxu0 %v414
    %1436 = vmatpush1.msra.mxu0 %v413
    %1437 = vmatprep.subr.mxu0 %v418
    %1438 = vmatpush1.msra.mxu0 %v417
    %1439 = vmatprep.subr.mxu0 %v422
    %1440 = vmatpush1.msra.mxu0 %v421
    %1441 = vmatprep.subr.mxu0 %v426
    %1442 = vmatpush1.msra.mxu0 %v425
    %1443 = vmatprep.subr.mxu0 %v430
    %1444 = vmatpush1.msra.mxu0 %v429
    %1445 = vmatprep.subr.mxu0 %v434
    %1446 = vmatpush1.msra.mxu0 %v433
    %1447 = vmatprep.subr.mxu0 %v438
    %1448 = vmatpush1.msra.mxu0 %v437
    %1449 = vmatprep.subr.mxu0 %v442
    %1450 = vmatpush1.msra.mxu0 %v441
    %1451 = vmatprep.subr.mxu0 %v446
    %1452 = vmatpush1.msra.mxu0 %v445
    %1453 = vmatprep.subr.mxu0 0.0
    %1454 = vmatpush1.msra.mxu0 0.0
    %1455 = vmatprep.subr.mxu0 0.0
    %1456 = vmatpush1.msra.mxu0 0.0
    %1457 = vmatprep.subr.mxu0 0.0
    %1458 = vmatpush1.msra.mxu0 0.0
    %1459 = vmatprep.subr.mxu0 0.0
    %1460 = vmatpush1.msra.mxu0 0.0
    %1461 = vmatprep.subr.mxu0 0.0
    %1462 = vmatpush1.msra.mxu0 0.0
    %1463 = vmatprep.subr.mxu0 0.0
    %1464 = vmatpush1.msra.mxu0 0.0
    %1465 = vmatprep.subr.mxu0 0.0
    %1466 = vmatpush1.msra.mxu0 0.0
    %1467 = vmatprep.subr.mxu0 0.0
    %1468 = vmatpush1.msra.mxu0 0.0
    %1469 = vmatprep.subr.mxu0 0.0
    %1470 = vmatpush1.msra.mxu0 0.0
    %1471 = vmatprep.subr.mxu0 0.0
    %1472 = vmatpush1.msra.mxu0 0.0
    %1473 = vmatprep.subr.mxu0 0.0
    %1474 = vmatpush1.msra.mxu0 0.0
    %1475 = vmatprep.subr.mxu0 0.0
    %1476 = vmatpush1.msra.mxu0 0.0
    %1477 = vmatprep.subr.mxu0 0.0
    %1478 = vmatpush1.msra.mxu0 0.0
    %1479 = vmatprep.subr.mxu0 0.0
    %1480 = vmatpush1.msra.mxu0 0.0
    %1481 = vmatprep.subr.mxu0 0.0
    %1482 = vmatpush1.msra.mxu0 0.0
    %1483 = vmatprep.subr.mxu0 0.0
    %1484 = vmatpush1.msra.mxu0 0.0
    %1485 = vmatprep.mubr.f32.mxu0 0.0
    %1486 = vmatmul.mubr.f32.gmra.mrb[0].mxu0 %v1340
    %v1487 = vpop.f32.mrb[0].mxu0
    %v1488 = vadd.f32 0.0, %v1487
    %v1489 = vpop.f32.mrb[0].mxu0
    %v1490 = vadd.f32 0.0, %v1489
    %1491 = vdwg.mxu0
    %v1492 = vadd.f32 %v1346, %v1417
    %v1493 = vadd.f32 %v1347, %v1419
    %v1494 = vadd.f32 %v1348, %v1488
    %v1495 = vadd.f32 %v1349, %v1490
    %v1496 = vxor.u32 %v1492, 2147483648
    %v1497 = vmul.f32 %v1496, 1.442695
    %v1498 = vpow.pop %v1497
    %v1499 = vadd.f32 %v1498, 1.0
    %v1500 = vrcp.pop %v1499
    %v1501 = vmul.f32 1.0, %v1500
    %v1502 = vxor.u32 %v1493, 2147483648
    %v1503 = vmul.f32 %v1502, 1.442695
    %v1504 = vpow.pop %v1503
    %v1505 = vadd.f32 %v1504, 1.0
    %v1506 = vrcp.pop %v1505
    %v1507 = vmul.f32 1.0, %v1506
    %v1508 = vtanh.pop %v1494
    %v1509 = vxor.u32 %v1495, 2147483648
    %v1510 = vmul.f32 %v1509, 1.442695
    %v1511 = vpow.pop %v1510
    %v1512 = vadd.f32 %v1511, 1.0
    %v1513 = vrcp.pop %v1512
    %v1514 = vmul.f32 1.0, %v1513
    %v1515 = vmul.f32 %v1507, %v1338
    %v1516 = vmul.f32 %v1501, %v1508
    %v1517 = vadd.f32 %v1515, %v1516
    %v1518 = vtanh.pop %v1517
    %v1519 = vmul.f32 %v1514, %v1518
    %s1520 = scalar_lea.vmem %s4, 40
    %1521 = vst [vmem:[%s1520] sm:$0xff] %v1519
    %s1522 = smul.u32 6, 4
    %s1523 = smul.addr %s1522, 8
    %s1524 = scalar_lea.vmem [#allocation4], %s1523
    %v1525 = vld [vmem:[%s1524] sm:$0xff]
    %v1526 = vld [vmem:[%s1524 + $0x8] sm:$0xff]
    %v1527 = vld [vmem:[%s1524 + $0x10] sm:$0xff]
    %v1528 = vld [vmem:[%s1524 + $0x18] sm:$0xff]
    %1529 = vmatprep.subr.mxu0 %v384
    %1530 = vmatpush1.msra.mxu0 %v383
    %1531 = vmatprep.subr.mxu0 %v388
    %1532 = vmatpush1.msra.mxu0 %v387
    %1533 = vmatprep.subr.mxu0 %v392
    %1534 = vmatpush1.msra.mxu0 %v391
    %1535 = vmatprep.subr.mxu0 %v396
    %1536 = vmatpush1.msra.mxu0 %v395
    %1537 = vmatprep.subr.mxu0 %v400
    %1538 = vmatpush1.msra.mxu0 %v399
    %1539 = vmatprep.subr.mxu0 %v404
    %1540 = vmatpush1.msra.mxu0 %v403
    %1541 = vmatprep.subr.mxu0 %v408
    %1542 = vmatpush1.msra.mxu0 %v407
    %1543 = vmatprep.subr.mxu0 %v412
    %1544 = vmatpush1.msra.mxu0 %v411
    %1545 = vmatprep.subr.mxu0 %v416
    %1546 = vmatpush1.msra.mxu0 %v415
    %1547 = vmatprep.subr.mxu0 %v420
    %1548 = vmatpush1.msra.mxu0 %v419
    %1549 = vmatprep.subr.mxu0 %v424
    %1550 = vmatpush1.msra.mxu0 %v423
    %1551 = vmatprep.subr.mxu0 %v428
    %1552 = vmatpush1.msra.mxu0 %v427
    %1553 = vmatprep.subr.mxu0 %v432
    %1554 = vmatpush1.msra.mxu0 %v431
    %1555 = vmatprep.subr.mxu0 %v436
    %1556 = vmatpush1.msra.mxu0 %v435
    %1557 = vmatprep.subr.mxu0 %v440
    %1558 = vmatpush1.msra.mxu0 %v439
    %1559 = vmatprep.subr.mxu0 %v444
    %1560 = vmatpush1.msra.mxu0 %v443
    %1561 = vmatprep.subr.mxu0 0.0
    %1562 = vmatpush1.msra.mxu0 0.0
    %1563 = vmatprep.subr.mxu0 0.0
    %1564 = vmatpush1.msra.mxu0 0.0
    %1565 = vmatprep.subr.mxu0 0.0
    %1566 = vmatpush1.msra.mxu0 0.0
    %1567 = vmatprep.subr.mxu0 0.0
    %1568 = vmatpush1.msra.mxu0 0.0
    %1569 = vmatprep.subr.mxu0 0.0
    %1570 = vmatpush1.msra.mxu0 0.0
    %1571 = vmatprep.subr.mxu0 0.0
    %1572 = vmatpush1.msra.mxu0 0.0
    %1573 = vmatprep.subr.mxu0 0.0
    %1574 = vmatpush1.msra.mxu0 0.0
    %1575 = vmatprep.subr.mxu0 0.0
    %1576 = vmatpush1.msra.mxu0 0.0
    %1577 = vmatprep.subr.mxu0 0.0
    %1578 = vmatpush1.msra.mxu0 0.0
    %1579 = vmatprep.subr.mxu0 0.0
    %1580 = vmatpush1.msra.mxu0 0.0
    %1581 = vmatprep.subr.mxu0 0.0
    %1582 = vmatpush1.msra.mxu0 0.0
    %1583 = vmatprep.subr.mxu0 0.0
    %1584 = vmatpush1.msra.mxu0 0.0
    %1585 = vmatprep.subr.mxu0 0.0
    %1586 = vmatpush1.msra.mxu0 0.0
    %1587 = vmatprep.subr.mxu0 0.0
    %1588 = vmatpush1.msra.mxu0 0.0
    %1589 = vmatprep.subr.mxu0 0.0
    %1590 = vmatpush1.msra.mxu0 0.0
    %1591 = vmatprep.subr.mxu0 0.0
    %1592 = vmatpush1.msra.mxu0 0.0
    %1593 = vmatprep.mubr.f32.mxu0 0.0
    %1594 = vmatmul.mubr.f32.gmra.mrb[0].mxu0 %v1519
    %v1595 = vpop.f32.mrb[0].mxu0
    %v1596 = vadd.f32 0.0, %v1595
    %v1597 = vpop.f32.mrb[0].mxu0
    %v1598 = vadd.f32 0.0, %v1597
    %1599 = vdwg.mxu0
    %1600 = vmatprep.subr.mxu0 %v386
    %1601 = vmatpush1.msra.mxu0 %v385
    %1602 = vmatprep.subr.mxu0 %v390
    %1603 = vmatpush1.msra.mxu0 %v389
    %1604 = vmatprep.subr.mxu0 %v394
    %1605 = vmatpush1.msra.mxu0 %v393
    %1606 = vmatprep.subr.mxu0 %v398
    %1607 = vmatpush1.msra.mxu0 %v397
    %1608 = vmatprep.subr.mxu0 %v402
    %1609 = vmatpush1.msra.mxu0 %v401
    %1610 = vmatprep.subr.mxu0 %v406
    %1611 = vmatpush1.msra.mxu0 %v405
    %1612 = vmatprep.subr.mxu0 %v410
    %1613 = vmatpush1.msra.mxu0 %v409
    %1614 = vmatprep.subr.mxu0 %v414
    %1615 = vmatpush1.msra.mxu0 %v413
    %1616 = vmatprep.subr.mxu0 %v418
    %1617 = vmatpush1.msra.mxu0 %v417
    %1618 = vmatprep.subr.mxu0 %v422
    %1619 = vmatpush1.msra.mxu0 %v421
    %1620 = vmatprep.subr.mxu0 %v426
    %1621 = vmatpush1.msra.mxu0 %v425
    %1622 = vmatprep.subr.mxu0 %v430
    %1623 = vmatpush1.msra.mxu0 %v429
    %1624 = vmatprep.subr.mxu0 %v434
    %1625 = vmatpush1.msra.mxu0 %v433
    %1626 = vmatprep.subr.mxu0 %v438
    %1627 = vmatpush1.msra.mxu0 %v437
    %1628 = vmatprep.subr.mxu0 %v442
    %1629 = vmatpush1.msra.mxu0 %v441
    %1630 = vmatprep.subr.mxu0 %v446
    %1631 = vmatpush1.msra.mxu0 %v445
    %1632 = vmatprep.subr.mxu0 0.0
    %1633 = vmatpush1.msra.mxu0 0.0
    %1634 = vmatprep.subr.mxu0 0.0
    %1635 = vmatpush1.msra.mxu0 0.0
    %1636 = vmatprep.subr.mxu0 0.0
    %1637 = vmatpush1.msra.mxu0 0.0
    %1638 = vmatprep.subr.mxu0 0.0
    %1639 = vmatpush1.msra.mxu0 0.0
    %1640 = vmatprep.subr.mxu0 0.0
    %1641 = vmatpush1.msra.mxu0 0.0
    %1642 = vmatprep.subr.mxu0 0.0
    %1643 = vmatpush1.msra.mxu0 0.0
    %1644 = vmatprep.subr.mxu0 0.0
    %1645 = vmatpush1.msra.mxu0 0.0
    %1646 = vmatprep.subr.mxu0 0.0
    %1647 = vmatpush1.msra.mxu0 0.0
    %1648 = vmatprep.subr.mxu0 0.0
    %1649 = vmatpush1.msra.mxu0 0.0
    %1650 = vmatprep.subr.mxu0 0.0
    %1651 = vmatpush1.msra.mxu0 0.0
    %1652 = vmatprep.subr.mxu0 0.0
    %1653 = vmatpush1.msra.mxu0 0.0
    %1654 = vmatprep.subr.mxu0 0.0
    %1655 = vmatpush1.msra.mxu0 0.0
    %1656 = vmatprep.subr.mxu0 0.0
    %1657 = vmatpush1.msra.mxu0 0.0
    %1658 = vmatprep.subr.mxu0 0.0
    %1659 = vmatpush1.msra.mxu0 0.0
    %1660 = vmatprep.subr.mxu0 0.0
    %1661 = vmatpush1.msra.mxu0 0.0
    %1662 = vmatprep.subr.mxu0 0.0
    %1663 = vmatpush1.msra.mxu0 0.0
    %1664 = vmatprep.mubr.f32.mxu0 0.0
    %1665 = vmatmul.mubr.f32.gmra.mrb[0].mxu0 %v1519
    %v1666 = vpop.f32.mrb[0].mxu0
    %v1667 = vadd.f32 0.0, %v1666
    %v1668 = vpop.f32.mrb[0].mxu0
    %v1669 = vadd.f32 0.0, %v1668
    %1670 = vdwg.mxu0
    %v1671 = vadd.f32 %v1525, %v1596
    %v1672 = vadd.f32 %v1526, %v1598
    %v1673 = vadd.f32 %v1527, %v1667
    %v1674 = vadd.f32 %v1528, %v1669
    %v1675 = vxor.u32 %v1671, 2147483648
    %v1676 = vmul.f32 %v1675, 1.442695
    %v1677 = vpow.pop %v1676
    %v1678 = vadd.f32 %v1677, 1.0
    %v1679 = vrcp.pop %v1678
    %v1680 = vmul.f32 1.0, %v1679
    %v1681 = vxor.u32 %v1672, 2147483648
    %v1682 = vmul.f32 %v1681, 1.442695
    %v1683 = vpow.pop %v1682
    %v1684 = vadd.f32 %v1683, 1.0
    %v1685 = vrcp.pop %v1684
    %v1686 = vmul.f32 1.0, %v1685
    %v1687 = vtanh.pop %v1673
    %v1688 = vxor.u32 %v1674, 2147483648
    %v1689 = vmul.f32 %v1688, 1.442695
    %v1690 = vpow.pop %v1689
    %v1691 = vadd.f32 %v1690, 1.0
    %v1692 = vrcp.pop %v1691
    %v1693 = vmul.f32 1.0, %v1692
    %v1694 = vmul.f32 %v1686, %v1517
    %v1695 = vmul.f32 %v1680, %v1687
    %v1696 = vadd.f32 %v1694, %v1695
    %v1697 = vtanh.pop %v1696
    %v1698 = vmul.f32 %v1693, %v1697
    %s1699 = scalar_lea.vmem %s4, 48
    %1700 = vst [vmem:[%s1699] sm:$0xff] %v1698
    %s1701 = smul.u32 7, 4
    %s1702 = smul.addr %s1701, 8
    %s1703 = scalar_lea.vmem [#allocation4], %s1702
    %v1704 = vld [vmem:[%s1703] sm:$0xff]
    %v1705 = vld [vmem:[%s1703 + $0x8] sm:$0xff]
    %v1706 = vld [vmem:[%s1703 + $0x10] sm:$0xff]
    %v1707 = vld [vmem:[%s1703 + $0x18] sm:$0xff]
    %1708 = vmatprep.subr.mxu0 %v384
    %1709 = vmatpush1.msra.mxu0 %v383
    %1710 = vmatprep.subr.mxu0 %v388
    %1711 = vmatpush1.msra.mxu0 %v387
    %1712 = vmatprep.subr.mxu0 %v392
    %1713 = vmatpush1.msra.mxu0 %v391
    %1714 = vmatprep.subr.mxu0 %v396
    %1715 = vmatpush1.msra.mxu0 %v395
    %1716 = vmatprep.subr.mxu0 %v400
    %1717 = vmatpush1.msra.mxu0 %v399
    %1718 = vmatprep.subr.mxu0 %v404
    %1719 = vmatpush1.msra.mxu0 %v403
    %1720 = vmatprep.subr.mxu0 %v408
    %1721 = vmatpush1.msra.mxu0 %v407
    %1722 = vmatprep.subr.mxu0 %v412
    %1723 = vmatpush1.msra.mxu0 %v411
    %1724 = vmatprep.subr.mxu0 %v416
    %1725 = vmatpush1.msra.mxu0 %v415
    %1726 = vmatprep.subr.mxu0 %v420
    %1727 = vmatpush1.msra.mxu0 %v419
    %1728 = vmatprep.subr.mxu0 %v424
    %1729 = vmatpush1.msra.mxu0 %v423
    %1730 = vmatprep.subr.mxu0 %v428
    %1731 = vmatpush1.msra.mxu0 %v427
    %1732 = vmatprep.subr.mxu0 %v432
    %1733 = vmatpush1.msra.mxu0 %v431
    %1734 = vmatprep.subr.mxu0 %v436
    %1735 = vmatpush1.msra.mxu0 %v435
    %1736 = vmatprep.subr.mxu0 %v440
    %1737 = vmatpush1.msra.mxu0 %v439
    %1738 = vmatprep.subr.mxu0 %v444
    %1739 = vmatpush1.msra.mxu0 %v443
    %1740 = vmatprep.subr.mxu0 0.0
    %1741 = vmatpush1.msra.mxu0 0.0
    %1742 = vmatprep.subr.mxu0 0.0
    %1743 = vmatpush1.msra.mxu0 0.0
    %1744 = vmatprep.subr.mxu0 0.0
    %1745 = vmatpush1.msra.mxu0 0.0
    %1746 = vmatprep.subr.mxu0 0.0
    %1747 = vmatpush1.msra.mxu0 0.0
    %1748 = vmatprep.subr.mxu0 0.0
    %1749 = vmatpush1.msra.mxu0 0.0
    %1750 = vmatprep.subr.mxu0 0.0
    %1751 = vmatpush1.msra.mxu0 0.0
    %1752 = vmatprep.subr.mxu0 0.0
    %1753 = vmatpush1.msra.mxu0 0.0
    %1754 = vmatprep.subr.mxu0 0.0
    %1755 = vmatpush1.msra.mxu0 0.0
    %1756 = vmatprep.subr.mxu0 0.0
    %1757 = vmatpush1.msra.mxu0 0.0
    %1758 = vmatprep.subr.mxu0 0.0
    %1759 = vmatpush1.msra.mxu0 0.0
    %1760 = vmatprep.subr.mxu0 0.0
    %1761 = vmatpush1.msra.mxu0 0.0
    %1762 = vmatprep.subr.mxu0 0.0
    %1763 = vmatpush1.msra.mxu0 0.0
    %1764 = vmatprep.subr.mxu0 0.0
    %1765 = vmatpush1.msra.mxu0 0.0
    %1766 = vmatprep.subr.mxu0 0.0
    %1767 = vmatpush1.msra.mxu0 0.0
    %1768 = vmatprep.subr.mxu0 0.0
    %1769 = vmatpush1.msra.mxu0 0.0
    %1770 = vmatprep.subr.mxu0 0.0
    %1771 = vmatpush1.msra.mxu0 0.0
    %1772 = vmatprep.mubr.f32.mxu0 0.0
    %1773 = vmatmul.mubr.f32.gmra.mrb[0].mxu0 %v1698
    %v1774 = vpop.f32.mrb[0].mxu0
    %v1775 = vadd.f32 0.0, %v1774
    %v1776 = vpop.f32.mrb[0].mxu0
    %v1777 = vadd.f32 0.0, %v1776
    %1778 = vdwg.mxu0
    %1779 = vmatprep.subr.mxu0 %v386
    %1780 = vmatpush1.msra.mxu0 %v385
    %1781 = vmatprep.subr.mxu0 %v390
    %1782 = vmatpush1.msra.mxu0 %v389
    %1783 = vmatprep.subr.mxu0 %v394
    %1784 = vmatpush1.msra.mxu0 %v393
    %1785 = vmatprep.subr.mxu0 %v398
    %1786 = vmatpush1.msra.mxu0 %v397
    %1787 = vmatprep.subr.mxu0 %v402
    %1788 = vmatpush1.msra.mxu0 %v401
    %1789 = vmatprep.subr.mxu0 %v406
    %1790 = vmatpush1.msra.mxu0 %v405
    %1791 = vmatprep.subr.mxu0 %v410
    %1792 = vmatpush1.msra.mxu0 %v409
    %1793 = vmatprep.subr.mxu0 %v414
    %1794 = vmatpush1.msra.mxu0 %v413
    %1795 = vmatprep.subr.mxu0 %v418
    %1796 = vmatpush1.msra.mxu0 %v417
    %1797 = vmatprep.subr.mxu0 %v422
    %1798 = vmatpush1.msra.mxu0 %v421
    %1799 = vmatprep.subr.mxu0 %v426
    %1800 = vmatpush1.msra.mxu0 %v425
    %1801 = vmatprep.subr.mxu0 %v430
    %1802 = vmatpush1.msra.mxu0 %v429
    %1803 = vmatprep.subr.mxu0 %v434
    %1804 = vmatpush1.msra.mxu0 %v433
    %1805 = vmatprep.subr.mxu0 %v438
    %1806 = vmatpush1.msra.mxu0 %v437
    %1807 = vmatprep.subr.mxu0 %v442
    %1808 = vmatpush1.msra.mxu0 %v441
    %1809 = vmatprep.subr.mxu0 %v446
    %1810 = vmatpush1.msra.mxu0 %v445
    %1811 = vmatprep.subr.mxu0 0.0
    %1812 = vmatpush1.msra.mxu0 0.0
    %1813 = vmatprep.subr.mxu0 0.0
    %1814 = vmatpush1.msra.mxu0 0.0
    %1815 = vmatprep.subr.mxu0 0.0
    %1816 = vmatpush1.msra.mxu0 0.0
    %1817 = vmatprep.subr.mxu0 0.0
    %1818 = vmatpush1.msra.mxu0 0.0
    %1819 = vmatprep.subr.mxu0 0.0
    %1820 = vmatpush1.msra.mxu0 0.0
    %1821 = vmatprep.subr.mxu0 0.0
    %1822 = vmatpush1.msra.mxu0 0.0
    %1823 = vmatprep.subr.mxu0 0.0
    %1824 = vmatpush1.msra.mxu0 0.0
    %1825 = vmatprep.subr.mxu0 0.0
    %1826 = vmatpush1.msra.mxu0 0.0
    %1827 = vmatprep.subr.mxu0 0.0
    %1828 = vmatpush1.msra.mxu0 0.0
    %1829 = vmatprep.subr.mxu0 0.0
    %1830 = vmatpush1.msra.mxu0 0.0
    %1831 = vmatprep.subr.mxu0 0.0
    %1832 = vmatpush1.msra.mxu0 0.0
    %1833 = vmatprep.subr.mxu0 0.0
    %1834 = vmatpush1.msra.mxu0 0.0
    %1835 = vmatprep.subr.mxu0 0.0
    %1836 = vmatpush1.msra.mxu0 0.0
    %1837 = vmatprep.subr.mxu0 0.0
    %1838 = vmatpush1.msra.mxu0 0.0
    %1839 = vmatprep.subr.mxu0 0.0
    %1840 = vmatpush1.msra.mxu0 0.0
    %1841 = vmatprep.subr.mxu0 0.0
    %1842 = vmatpush1.msra.mxu0 0.0
    %1843 = vmatprep.mubr.f32.mxu0 0.0
    %1844 = vmatmul.mubr.f32.gmra.mrb[0].mxu0 %v1698
    %v1845 = vpop.f32.mrb[0].mxu0
    %v1846 = vadd.f32 0.0, %v1845
    %v1847 = vpop.f32.mrb[0].mxu0
    %v1848 = vadd.f32 0.0, %v1847
    %1849 = vdwg.mxu0
    %v1850 = vadd.f32 %v1704, %v1775
    %v1851 = vadd.f32 %v1705, %v1777
    %v1852 = vadd.f32 %v1706, %v1846
    %v1853 = vadd.f32 %v1707, %v1848
    %v1854 = vxor.u32 %v1850, 2147483648
    %v1855 = vmul.f32 %v1854, 1.442695
    %v1856 = vpow.pop %v1855
    %v1857 = vadd.f32 %v1856, 1.0
    %v1858 = vrcp.pop %v1857
    %v1859 = vmul.f32 1.0, %v1858
    %v1860 = vxor.u32 %v1851, 2147483648
    %v1861 = vmul.f32 %v1860, 1.442695
    %v1862 = vpow.pop %v1861
    %v1863 = vadd.f32 %v1862, 1.0
    %v1864 = vrcp.pop %v1863
    %v1865 = vmul.f32 1.0, %v1864
    %v1866 = vtanh.pop %v1852
    %v1867 = vxor.u32 %v1853, 2147483648
    %v1868 = vmul.f32 %v1867, 1.442695
    %v1869 = vpow.pop %v1868
    %v1870 = vadd.f32 %v1869, 1.0
    %v1871 = vrcp.pop %v1870
    %v1872 = vmul.f32 1.0, %v1871
    %v1873 = vmul.f32 %v1865, %v1696
    %v1874 = vmul.f32 %v1859, %v1866
    %v1875 = vadd.f32 %v1873, %v1874
    %v1876 = vtanh.pop %v1875
    %v1877 = vmul.f32 %v1872, %v1876
    %s1878 = scalar_lea.vmem %s4, 56
    %1879 = vst [vmem:[%s1878] sm:$0xff] %v1877
    %1880 = vst [vmem:[#allocation2] sm:$0xff] %v1877
    %1881 = vst [vmem:[#allocation3] sm:$0xff] %v1875
    // Predicated region
    $region34: #{encoder_forward.2} parent=1 // pred_check
      _
    $region35: #{encoder_forward.2} parent=1 // pred_check_branch
      %1883 = sbr.rel (0) target = $region37
    $region36: #{encoder_forward.2} parent=1 // pred_region
      _
    $region37: #{encoder_forward.2} parent=1 // pred_fallthru
      _
    // Predicated region
    $region38: #{encoder_forward.2} parent=1 // pred_check
      _
    $region39: #{encoder_forward.2} parent=1 // pred_check_branch
      %1885 = sbr.rel (0) target = $region41
    $region40: #{encoder_forward.2} parent=1 // pred_region
      _
    $region41: #{encoder_forward.2} parent=1 // pred_fallthru
      _
    %1886 = vsyncpa [#allocation6], 1
    %1887 = vsyncpa [#allocation8], 1

// kernel: encoder_forward.3
$region0: #{encoder_forward.3}
  #allocation0 [shape = 'u32[]', space=smem, size = 0x4, offset = 0x4, fixed_abs, tag = 'smem constant byte address 0x4 - core index']
  #allocation1 [shape = 'u32[144,128]{1,0:T(1,128)}', space=vmem, size = 0x12000, scoped, tag = 'internal scratch']
  #allocation2 [shape = 'f32[8,128]{1,0:T(8,128)}', space=vmem, size = 0x1000, scoped, tag = 'scratch operand']
  #allocation3 [shape = 'f32[8,128]{1,0:T(8,128)}', space=vmem, size = 0x1000, scoped, tag = 'scratch operand']
  #allocation4 [shape = 'f32[64,512]{1,0:T(8,128)}', space=vmem, size = 0x20000, scoped, tag = 'scratch operand']
  %s0 = inlined_call_operand.vmem [shape: f32[8,8,128], index: 0, kind: input, shape index: {}]
  %s1 = inlined_call_operand.vmem [shape: f32[128,512], index: 1, kind: input, shape index: {}]
  %s2 = inlined_call_operand.hbm [shape: f32[128,512], index: 2, kind: input, shape index: {}]
  %s3 = inlined_call_operand.vmem [shape: f32[1,512], index: 3, kind: input, shape index: {}]
  %s4 = inlined_call_operand.vmem [shape: f32[8,8,128], index: 4, kind: output, shape index: {}]
  %s5 = sld [smem:[#allocation0]]
  $region34: #{encoder_forward.3} parent=0
    _
  %s7 = ssub.s32 1, %s5
  %s8 = scalar_select 0, %s7, %s5
  $region1: #{encoder_forward.3} parent=0
    #allocation5 [shape = 'u8[262144]{0}', space=vmem, size = 0x40000, scoped, tag = 'input window, operand 2, single buffered']
    #allocation6 [shape = 's32[1]{0}', space=sflag, size = 0x4, scoped, tag = 'scoped memory for encoder_forward.3']
    %9 = vsyncpa [#allocation6], 0
    // Predicated region
    $region2: #{encoder_forward.3} parent=1 // pred_check
      _
    $region3: #{encoder_forward.3} parent=1 // pred_check_branch
      %11 = sbr.rel (0) target = $region5
    $region4: #{encoder_forward.3} parent=1 // pred_region
      _
    $region5: #{encoder_forward.3} parent=1 // pred_fallthru
      _
    // Predicated region
    $region6: #{encoder_forward.3} parent=1 // pred_check
      _
    $region7: #{encoder_forward.3} parent=1 // pred_check_branch
      %13 = sbr.rel (0) target = $region9
    $region8: #{encoder_forward.3} parent=1 // pred_region
      _
    $region9: #{encoder_forward.3} parent=1 // pred_fallthru
      _
    // Predicated region
    $region10: #{encoder_forward.3} parent=1 // pred_check
      _
    $region11: #{encoder_forward.3} parent=1 // pred_check_branch
      %15 = sbr.rel (0) target = $region13
    $region12: #{encoder_forward.3} parent=1 // pred_region
      %s17 = ssub.s32 8192, 8192
      %18 = vsyncadd [#allocation6], %s17
      %s19 = sshll.u32 [#allocation5], 4
      %s20 = int_to_ptr.vmem [resolvable:$true] %s19
      %25 = dma.hbm_to_vmem [thread:$0]  %s2, 8192, %s20, [#allocation6], 512, 512, 32
    $region13: #{encoder_forward.3} parent=1 // pred_fallthru
      _
    // Predicated region
    $region14: #{encoder_forward.3} parent=1 // pred_check
      _
    $region15: #{encoder_forward.3} parent=1 // pred_check_branch
      %27 = sbr.rel (0) target = $region17
    $region16: #{encoder_forward.3} parent=1 // pred_region
      _
    $region17: #{encoder_forward.3} parent=1 // pred_fallthru
      _
    // Predicated region
    $region18: #{encoder_forward.3} parent=1 // pred_check
      _
    $region19: #{encoder_forward.3} parent=1 // pred_check_branch
      %29 = sbr.rel (0) target = $region21
    $region20: #{encoder_forward.3} parent=1 // pred_region
      %30 = dma.done [#allocation6], 8192
    $region21: #{encoder_forward.3} parent=1 // pred_fallthru
      _
    %p31 = scmp.eq.s32.totalorder 0, 0
    // Predicated region
    $region22: #{encoder_forward.3} parent=1 // pred_check
      %p32 = pneg %p31
    $region23: #{encoder_forward.3} parent=1 // pred_check_branch
      %34 = sbr.rel (%p32) target = $region25
    $region24: #{encoder_forward.3} parent=1 // pred_region
      %35 = vst [vmem:[#allocation2] sm:$0xff] 0.0
      %36 = vst [vmem:[#allocation3] sm:$0xff] 0.0
    $region25: #{encoder_forward.3} parent=1 // pred_fallthru
      _
    %v37 = vld [vmem:[%s0] sm:$0xff]
    %v38 = vld [vmem:[%s0 + $0x8] sm:$0xff]
    %v39 = vld [vmem:[%s0 + $0x10] sm:$0xff]
    %v40 = vld [vmem:[%s0 + $0x18] sm:$0xff]
    %v41 = vld [vmem:[%s0 + $0x20] sm:$0xff]
    %v42 = vld [vmem:[%s0 + $0x28] sm:$0xff]
    %v43 = vld [vmem:[%s0 + $0x30] sm:$0xff]
    %v44 = vld [vmem:[%s0 + $0x38] sm:$0xff]
    %v45 = vld [vmem:[%s1] sm:$0xff]
    %v46 = vld [vmem:[%s1 + $0x8] sm:$0xff]
    %v47 = vld [vmem:[%s1 + $0x10] sm:$0xff]
    %v48 = vld [vmem:[%s1 + $0x18] sm:$0xff]
    %v49 = vld [vmem:[%s1 + $0x20] sm:$0xff]
    %v50 = vld [vmem:[%s1 + $0x28] sm:$0xff]
    %v51 = vld [vmem:[%s1 + $0x30] sm:$0xff]
    %v52 = vld [vmem:[%s1 + $0x38] sm:$0xff]
    %v53 = vld [vmem:[%s1 + $0x40] sm:$0xff]
    %v54 = vld [vmem:[%s1 + $0x48] sm:$0xff]
    %v55 = vld [vmem:[%s1 + $0x50] sm:$0xff]
    %v56 = vld [vmem:[%s1 + $0x58] sm:$0xff]
    %v57 = vld [vmem:[%s1 + $0x60] sm:$0xff]
    %v58 = vld [vmem:[%s1 + $0x68] sm:$0xff]
    %v59 = vld [vmem:[%s1 + $0x70] sm:$0xff]
    %v60 = vld [vmem:[%s1 + $0x78] sm:$0xff]
    %v61 = vld [vmem:[%s1 + $0x80] sm:$0xff]
    %v62 = vld [vmem:[%s1 + $0x88] sm:$0xff]
    %v63 = vld [vmem:[%s1 + $0x90] sm:$0xff]
    %v64 = vld [vmem:[%s1 + $0x98] sm:$0xff]
    %v65 = vld [vmem:[%s1 + $0xa0] sm:$0xff]
    %v66 = vld [vmem:[%s1 + $0xa8] sm:$0xff]
    %v67 = vld [vmem:[%s1 + $0xb0] sm:$0xff]
    %v68 = vld [vmem:[%s1 + $0xb8] sm:$0xff]
    %v69 = vld [vmem:[%s1 + $0xc0] sm:$0xff]
    %v70 = vld [vmem:[%s1 + $0xc8] sm:$0xff]
    %v71 = vld [vmem:[%s1 + $0xd0] sm:$0xff]
    %v72 = vld [vmem:[%s1 + $0xd8] sm:$0xff]
    %v73 = vld [vmem:[%s1 + $0xe0] sm:$0xff]
    %v74 = vld [vmem:[%s1 + $0xe8] sm:$0xff]
    %v75 = vld [vmem:[%s1 + $0xf0] sm:$0xff]
    %v76 = vld [vmem:[%s1 + $0xf8] sm:$0xff]
    %v77 = vld [vmem:[%s1 + $0x100] sm:$0xff]
    %v78 = vld [vmem:[%s1 + $0x108] sm:$0xff]
    %v79 = vld [vmem:[%s1 + $0x110] sm:$0xff]
    %v80 = vld [vmem:[%s1 + $0x118] sm:$0xff]
    %v81 = vld [vmem:[%s1 + $0x120] sm:$0xff]
    %v82 = vld [vmem:[%s1 + $0x128] sm:$0xff]
    %v83 = vld [vmem:[%s1 + $0x130] sm:$0xff]
    %v84 = vld [vmem:[%s1 + $0x138] sm:$0xff]
    %v85 = vld [vmem:[%s1 + $0x140] sm:$0xff]
    %v86 = vld [vmem:[%s1 + $0x148] sm:$0xff]
    %v87 = vld [vmem:[%s1 + $0x150] sm:$0xff]
    %v88 = vld [vmem:[%s1 + $0x158] sm:$0xff]
    %v89 = vld [vmem:[%s1 + $0x160] sm:$0xff]
    %v90 = vld [vmem:[%s1 + $0x168] sm:$0xff]
    %v91 = vld [vmem:[%s1 + $0x170] sm:$0xff]
    %v92 = vld [vmem:[%s1 + $0x178] sm:$0xff]
    %v93 = vld [vmem:[%s1 + $0x180] sm:$0xff]
    %v94 = vld [vmem:[%s1 + $0x188] sm:$0xff]
    %v95 = vld [vmem:[%s1 + $0x190] sm:$0xff]
    %v96 = vld [vmem:[%s1 + $0x198] sm:$0xff]
    %v97 = vld [vmem:[%s1 + $0x1a0] sm:$0xff]
    %v98 = vld [vmem:[%s1 + $0x1a8] sm:$0xff]
    %v99 = vld [vmem:[%s1 + $0x1b0] sm:$0xff]
    %v100 = vld [vmem:[%s1 + $0x1b8] sm:$0xff]
    %v101 = vld [vmem:[%s1 + $0x1c0] sm:$0xff]
    %v102 = vld [vmem:[%s1 + $0x1c8] sm:$0xff]
    %v103 = vld [vmem:[%s1 + $0x1d0] sm:$0xff]
    %v104 = vld [vmem:[%s1 + $0x1d8] sm:$0xff]
    %v105 = vld [vmem:[%s1 + $0x1e0] sm:$0xff]
    %v106 = vld [vmem:[%s1 + $0x1e8] sm:$0xff]
    %v107 = vld [vmem:[%s1 + $0x1f0] sm:$0xff]
    %v108 = vld [vmem:[%s1 + $0x1f8] sm:$0xff]
    %v109 = vld [vmem:[%s3] sm:$0xf]
    %v111 = vlaneseq
    %v112 = vshrl.u32 %v111, 7
    %v113 = vsub.s32 0, %v112
    %v114 = vrot.slane %v109, %v113
    %v115 = vlaneseq
    %v116 = vshrl.u32 %v115, 7
    %v117 = vsub.s32 1, %v116
    %v118 = vrot.slane %v109, %v117
    %v119 = vlaneseq
    %v120 = vshrl.u32 %v119, 7
    %v121 = vsub.s32 2, %v120
    %v122 = vrot.slane %v109, %v121
    %v123 = vlaneseq
    %v124 = vshrl.u32 %v123, 7
    %v125 = vsub.s32 3, %v124
    %v126 = vrot.slane %v109, %v125
    %131 = vmatprep.subr.mxu0 %v46
    %132 = vmatpush1.msra.mxu0 %v45
    %133 = vmatprep.subr.mxu0 %v50
    %134 = vmatpush1.msra.mxu0 %v49
    %135 = vmatprep.subr.mxu0 %v54
    %136 = vmatpush1.msra.mxu0 %v53
    %137 = vmatprep.subr.mxu0 %v58
    %138 = vmatpush1.msra.mxu0 %v57
    %139 = vmatprep.subr.mxu0 %v62
    %140 = vmatpush1.msra.mxu0 %v61
    %141 = vmatprep.subr.mxu0 %v66
    %142 = vmatpush1.msra.mxu0 %v65
    %143 = vmatprep.subr.mxu0 %v70
    %144 = vmatpush1.msra.mxu0 %v69
    %145 = vmatprep.subr.mxu0 %v74
    %146 = vmatpush1.msra.mxu0 %v73
    %147 = vmatprep.subr.mxu0 %v78
    %148 = vmatpush1.msra.mxu0 %v77
    %149 = vmatprep.subr.mxu0 %v82
    %150 = vmatpush1.msra.mxu0 %v81
    %151 = vmatprep.subr.mxu0 %v86
    %152 = vmatpush1.msra.mxu0 %v85
    %153 = vmatprep.subr.mxu0 %v90
    %154 = vmatpush1.msra.mxu0 %v89
    %155 = vmatprep.subr.mxu0 %v94
    %156 = vmatpush1.msra.mxu0 %v93
    %157 = vmatprep.subr.mxu0 %v98
    %158 = vmatpush1.msra.mxu0 %v97
    %159 = vmatprep.subr.mxu0 %v102
    %160 = vmatpush1.msra.mxu0 %v101
    %161 = vmatprep.subr.mxu0 %v106
    %162 = vmatpush1.msra.mxu0 %v105
    %163 = vmatprep.subr.mxu0 0.0
    %164 = vmatpush1.msra.mxu0 0.0
    %165 = vmatprep.subr.mxu0 0.0
    %166 = vmatpush1.msra.mxu0 0.0
    %167 = vmatprep.subr.mxu0 0.0
    %168 = vmatpush1.msra.mxu0 0.0
    %169 = vmatprep.subr.mxu0 0.0
    %170 = vmatpush1.msra.mxu0 0.0
    %171 = vmatprep.subr.mxu0 0.0
    %172 = vmatpush1.msra.mxu0 0.0
    %173 = vmatprep.subr.mxu0 0.0
    %174 = vmatpush1.msra.mxu0 0.0
    %175 = vmatprep.subr.mxu0 0.0
    %176 = vmatpush1.msra.mxu0 0.0
    %177 = vmatprep.subr.mxu0 0.0
    %178 = vmatpush1.msra.mxu0 0.0
    %179 = vmatprep.subr.mxu0 0.0
    %180 = vmatpush1.msra.mxu0 0.0
    %181 = vmatprep.subr.mxu0 0.0
    %182 = vmatpush1.msra.mxu0 0.0
    %183 = vmatprep.subr.mxu0 0.0
    %184 = vmatpush1.msra.mxu0 0.0
    %185 = vmatprep.subr.mxu0 0.0
    %186 = vmatpush1.msra.mxu0 0.0
    %187 = vmatprep.subr.mxu0 0.0
    %188 = vmatpush1.msra.mxu0 0.0
    %189 = vmatprep.subr.mxu0 0.0
    %190 = vmatpush1.msra.mxu0 0.0
    %191 = vmatprep.subr.mxu0 0.0
    %192 = vmatpush1.msra.mxu0 0.0
    %193 = vmatprep.subr.mxu0 0.0
    %194 = vmatpush1.msra.mxu0 0.0
    %195 = vmatprep.mubr.f32.mxu0 0.0
    %196 = vmatmul.mubr.f32.gmra.mrb[0].mxu0 %v37
    %v197 = vpop.f32.mrb[0].mxu0
    %v198 = vadd.f32 %v114, %v197
    %v199 = vpop.f32.mrb[0].mxu0
    %v200 = vadd.f32 %v118, %v199
    %201 = vmatprep.mubr.f32.mxu0 0.0
    %202 = vmatmul.mubr.f32.gmra.mrb[0].mxu0 %v38
    %v203 = vpop.f32.mrb[0].mxu0
    %v204 = vadd.f32 %v114, %v203
    %v205 = vpop.f32.mrb[0].mxu0
    %v206 = vadd.f32 %v118, %v205
    %207 = vmatprep.mubr.f32.mxu0 0.0
    %208 = vmatmul.mubr.f32.gmra.mrb[0].mxu0 %v39
    %v209 = vpop.f32.mrb[0].mxu0
    %v210 = vadd.f32 %v114, %v209
    %v211 = vpop.f32.mrb[0].mxu0
    %v212 = vadd.f32 %v118, %v211
    %213 = vmatprep.mubr.f32.mxu0 0.0
    %214 = vmatmul.mubr.f32.gmra.mrb[0].mxu0 %v40
    %v215 = vpop.f32.mrb[0].mxu0
    %v216 = vadd.f32 %v114, %v215
    %v217 = vpop.f32.mrb[0].mxu0
    %v218 = vadd.f32 %v118, %v217
    %219 = vmatprep.mubr.f32.mxu0 0.0
    %220 = vmatmul.mubr.f32.gmra.mrb[0].mxu0 %v41
    %v221 = vpop.f32.mrb[0].mxu0
    %v222 = vadd.f32 %v114, %v221
    %v223 = vpop.f32.mrb[0].mxu0
    %v224 = vadd.f32 %v118, %v223
    %225 = vmatprep.mubr.f32.mxu0 0.0
    %226 = vmatmul.mubr.f32.gmra.mrb[0].mxu0 %v42
    %v227 = vpop.f32.mrb[0].mxu0
    %v228 = vadd.f32 %v114, %v227
    %v229 = vpop.f32.mrb[0].mxu0
    %v230 = vadd.f32 %v118, %v229
    %231 = vmatprep.mubr.f32.mxu0 0.0
    %232 = vmatmul.mubr.f32.gmra.mrb[0].mxu0 %v43
    %v233 = vpop.f32.mrb[0].mxu0
    %v234 = vadd.f32 %v114, %v233
    %v235 = vpop.f32.mrb[0].mxu0
    %v236 = vadd.f32 %v118, %v235
    %237 = vmatprep.mubr.f32.mxu0 0.0
    %238 = vmatmul.mubr.f32.gmra.mrb[0].mxu0 %v44
    %v239 = vpop.f32.mrb[0].mxu0
    %v240 = vadd.f32 %v114, %v239
    %v241 = vpop.f32.mrb[0].mxu0
    %v242 = vadd.f32 %v118, %v241
    %243 = vdwg.mxu0
    %244 = vmatprep.subr.mxu0 %v48
    %245 = vmatpush1.msra.mxu0 %v47
    %246 = vmatprep.subr.mxu0 %v52
    %247 = vmatpush1.msra.mxu0 %v51
    %248 = vmatprep.subr.mxu0 %v56
    %249 = vmatpush1.msra.mxu0 %v55
    %250 = vmatprep.subr.mxu0 %v60
    %251 = vmatpush1.msra.mxu0 %v59
    %252 = vmatprep.subr.mxu0 %v64
    %253 = vmatpush1.msra.mxu0 %v63
    %254 = vmatprep.subr.mxu0 %v68
    %255 = vmatpush1.msra.mxu0 %v67
    %256 = vmatprep.subr.mxu0 %v72
    %257 = vmatpush1.msra.mxu0 %v71
    %258 = vmatprep.subr.mxu0 %v76
    %259 = vmatpush1.msra.mxu0 %v75
    %260 = vmatprep.subr.mxu0 %v80
    %261 = vmatpush1.msra.mxu0 %v79
    %262 = vmatprep.subr.mxu0 %v84
    %263 = vmatpush1.msra.mxu0 %v83
    %264 = vmatprep.subr.mxu0 %v88
    %265 = vmatpush1.msra.mxu0 %v87
    %266 = vmatprep.subr.mxu0 %v92
    %267 = vmatpush1.msra.mxu0 %v91
    %268 = vmatprep.subr.mxu0 %v96
    %269 = vmatpush1.msra.mxu0 %v95
    %270 = vmatprep.subr.mxu0 %v100
    %271 = vmatpush1.msra.mxu0 %v99
    %272 = vmatprep.subr.mxu0 %v104
    %273 = vmatpush1.msra.mxu0 %v103
    %274 = vmatprep.subr.mxu0 %v108
    %275 = vmatpush1.msra.mxu0 %v107
    %276 = vmatprep.subr.mxu0 0.0
    %277 = vmatpush1.msra.mxu0 0.0
    %278 = vmatprep.subr.mxu0 0.0
    %279 = vmatpush1.msra.mxu0 0.0
    %280 = vmatprep.subr.mxu0 0.0
    %281 = vmatpush1.msra.mxu0 0.0
    %282 = vmatprep.subr.mxu0 0.0
    %283 = vmatpush1.msra.mxu0 0.0
    %284 = vmatprep.subr.mxu0 0.0
    %285 = vmatpush1.msra.mxu0 0.0
    %286 = vmatprep.subr.mxu0 0.0
    %287 = vmatpush1.msra.mxu0 0.0
    %288 = vmatprep.subr.mxu0 0.0
    %289 = vmatpush1.msra.mxu0 0.0
    %290 = vmatprep.subr.mxu0 0.0
    %291 = vmatpush1.msra.mxu0 0.0
    %292 = vmatprep.subr.mxu0 0.0
    %293 = vmatpush1.msra.mxu0 0.0
    %294 = vmatprep.subr.mxu0 0.0
    %295 = vmatpush1.msra.mxu0 0.0
    %296 = vmatprep.subr.mxu0 0.0
    %297 = vmatpush1.msra.mxu0 0.0
    %298 = vmatprep.subr.mxu0 0.0
    %299 = vmatpush1.msra.mxu0 0.0
    %300 = vmatprep.subr.mxu0 0.0
    %301 = vmatpush1.msra.mxu0 0.0
    %302 = vmatprep.subr.mxu0 0.0
    %303 = vmatpush1.msra.mxu0 0.0
    %304 = vmatprep.subr.mxu0 0.0
    %305 = vmatpush1.msra.mxu0 0.0
    %306 = vmatprep.subr.mxu0 0.0
    %307 = vmatpush1.msra.mxu0 0.0
    %308 = vmatprep.mubr.f32.mxu0 0.0
    %309 = vmatmul.mubr.f32.gmra.mrb[0].mxu0 %v37
    %v310 = vpop.f32.mrb[0].mxu0
    %v311 = vadd.f32 %v122, %v310
    %v312 = vpop.f32.mrb[0].mxu0
    %v313 = vadd.f32 %v126, %v312
    %314 = vmatprep.mubr.f32.mxu0 0.0
    %315 = vmatmul.mubr.f32.gmra.mrb[0].mxu0 %v38
    %v316 = vpop.f32.mrb[0].mxu0
    %v317 = vadd.f32 %v122, %v316
    %v318 = vpop.f32.mrb[0].mxu0
    %v319 = vadd.f32 %v126, %v318
    %320 = vmatprep.mubr.f32.mxu0 0.0
    %321 = vmatmul.mubr.f32.gmra.mrb[0].mxu0 %v39
    %v322 = vpop.f32.mrb[0].mxu0
    %v323 = vadd.f32 %v122, %v322
    %v324 = vpop.f32.mrb[0].mxu0
    %v325 = vadd.f32 %v126, %v324
    %326 = vmatprep.mubr.f32.mxu0 0.0
    %327 = vmatmul.mubr.f32.gmra.mrb[0].mxu0 %v40
    %v328 = vpop.f32.mrb[0].mxu0
    %v329 = vadd.f32 %v122, %v328
    %v330 = vpop.f32.mrb[0].mxu0
    %v331 = vadd.f32 %v126, %v330
    %332 = vmatprep.mubr.f32.mxu0 0.0
    %333 = vmatmul.mubr.f32.gmra.mrb[0].mxu0 %v41
    %v334 = vpop.f32.mrb[0].mxu0
    %v335 = vadd.f32 %v122, %v334
    %v336 = vpop.f32.mrb[0].mxu0
    %v337 = vadd.f32 %v126, %v336
    %338 = vmatprep.mubr.f32.mxu0 0.0
    %339 = vmatmul.mubr.f32.gmra.mrb[0].mxu0 %v42
    %v340 = vpop.f32.mrb[0].mxu0
    %v341 = vadd.f32 %v122, %v340
    %v342 = vpop.f32.mrb[0].mxu0
    %v343 = vadd.f32 %v126, %v342
    %344 = vmatprep.mubr.f32.mxu0 0.0
    %345 = vmatmul.mubr.f32.gmra.mrb[0].mxu0 %v43
    %v346 = vpop.f32.mrb[0].mxu0
    %v347 = vadd.f32 %v122, %v346
    %v348 = vpop.f32.mrb[0].mxu0
    %v349 = vadd.f32 %v126, %v348
    %350 = vmatprep.mubr.f32.mxu0 0.0
    %351 = vmatmul.mubr.f32.gmra.mrb[0].mxu0 %v44
    %v352 = vpop.f32.mrb[0].mxu0
    %v353 = vadd.f32 %v122, %v352
    %v354 = vpop.f32.mrb[0].mxu0
    %v355 = vadd.f32 %v126, %v354
    %356 = vdwg.mxu0
    %357 = vst [vmem:[#allocation4] sm:$0xff] %v198
    %358 = vst [vmem:[#allocation4 + $0x8] sm:$0xff] %v200
    %359 = vst [vmem:[#allocation4 + $0x10] sm:$0xff] %v311
    %360 = vst [vmem:[#allocation4 + $0x18] sm:$0xff] %v313
    %361 = vst [vmem:[#allocation4 + $0x20] sm:$0xff] %v204
    %362 = vst [vmem:[#allocation4 + $0x28] sm:$0xff] %v206
    %363 = vst [vmem:[#allocation4 + $0x30] sm:$0xff] %v317
    %364 = vst [vmem:[#allocation4 + $0x38] sm:$0xff] %v319
    %365 = vst [vmem:[#allocation4 + $0x40] sm:$0xff] %v210
    %366 = vst [vmem:[#allocation4 + $0x48] sm:$0xff] %v212
    %367 = vst [vmem:[#allocation4 + $0x50] sm:$0xff] %v323
    %368 = vst [vmem:[#allocation4 + $0x58] sm:$0xff] %v325
    %369 = vst [vmem:[#allocation4 + $0x60] sm:$0xff] %v216
    %370 = vst [vmem:[#allocation4 + $0x68] sm:$0xff] %v218
    %371 = vst [vmem:[#allocation4 + $0x70] sm:$0xff] %v329
    %372 = vst [vmem:[#allocation4 + $0x78] sm:$0xff] %v331
    %373 = vst [vmem:[#allocation4 + $0x80] sm:$0xff] %v222
    %374 = vst [vmem:[#allocation4 + $0x88] sm:$0xff] %v224
    %375 = vst [vmem:[#allocation4 + $0x90] sm:$0xff] %v335
    %376 = vst [vmem:[#allocation4 + $0x98] sm:$0xff] %v337
    %377 = vst [vmem:[#allocation4 + $0xa0] sm:$0xff] %v228
    %378 = vst [vmem:[#allocation4 + $0xa8] sm:$0xff] %v230
    %379 = vst [vmem:[#allocation4 + $0xb0] sm:$0xff] %v341
    %380 = vst [vmem:[#allocation4 + $0xb8] sm:$0xff] %v343
    %381 = vst [vmem:[#allocation4 + $0xc0] sm:$0xff] %v234
    %382 = vst [vmem:[#allocation4 + $0xc8] sm:$0xff] %v236
    %383 = vst [vmem:[#allocation4 + $0xd0] sm:$0xff] %v347
    %384 = vst [vmem:[#allocation4 + $0xd8] sm:$0xff] %v349
    %385 = vst [vmem:[#allocation4 + $0xe0] sm:$0xff] %v240
    %386 = vst [vmem:[#allocation4 + $0xe8] sm:$0xff] %v242
    %387 = vst [vmem:[#allocation4 + $0xf0] sm:$0xff] %v353
    %388 = vst [vmem:[#allocation4 + $0xf8] sm:$0xff] %v355
    %v389 = vld [vmem:[#allocation5] sm:$0xff]
    %v390 = vld [vmem:[#allocation5 + $0x8] sm:$0xff]
    %v391 = vld [vmem:[#allocation5 + $0x10] sm:$0xff]
    %v392 = vld [vmem:[#allocation5 + $0x18] sm:$0xff]
    %v393 = vld [vmem:[#allocation5 + $0x20] sm:$0xff]
    %v394 = vld [vmem:[#allocation5 + $0x28] sm:$0xff]
    %v395 = vld [vmem:[#allocation5 + $0x30] sm:$0xff]
    %v396 = vld [vmem:[#allocation5 + $0x38] sm:$0xff]
    %v397 = vld [vmem:[#allocation5 + $0x40] sm:$0xff]
    %v398 = vld [vmem:[#allocation5 + $0x48] sm:$0xff]
    %v399 = vld [vmem:[#allocation5 + $0x50] sm:$0xff]
    %v400 = vld [vmem:[#allocation5 + $0x58] sm:$0xff]
    %v401 = vld [vmem:[#allocation5 + $0x60] sm:$0xff]
    %v402 = vld [vmem:[#allocation5 + $0x68] sm:$0xff]
    %v403 = vld [vmem:[#allocation5 + $0x70] sm:$0xff]
    %v404 = vld [vmem:[#allocation5 + $0x78] sm:$0xff]
    %v405 = vld [vmem:[#allocation5 + $0x80] sm:$0xff]
    %v406 = vld [vmem:[#allocation5 + $0x88] sm:$0xff]
    %v407 = vld [vmem:[#allocation5 + $0x90] sm:$0xff]
    %v408 = vld [vmem:[#allocation5 + $0x98] sm:$0xff]
    %v409 = vld [vmem:[#allocation5 + $0xa0] sm:$0xff]
    %v410 = vld [vmem:[#allocation5 + $0xa8] sm:$0xff]
    %v411 = vld [vmem:[#allocation5 + $0xb0] sm:$0xff]
    %v412 = vld [vmem:[#allocation5 + $0xb8] sm:$0xff]
    %v413 = vld [vmem:[#allocation5 + $0xc0] sm:$0xff]
    %v414 = vld [vmem:[#allocation5 + $0xc8] sm:$0xff]
    %v415 = vld [vmem:[#allocation5 + $0xd0] sm:$0xff]
    %v416 = vld [vmem:[#allocation5 + $0xd8] sm:$0xff]
    %v417 = vld [vmem:[#allocation5 + $0xe0] sm:$0xff]
    %v418 = vld [vmem:[#allocation5 + $0xe8] sm:$0xff]
    %v419 = vld [vmem:[#allocation5 + $0xf0] sm:$0xff]
    %v420 = vld [vmem:[#allocation5 + $0xf8] sm:$0xff]
    %v421 = vld [vmem:[#allocation5 + $0x100] sm:$0xff]
    %v422 = vld [vmem:[#allocation5 + $0x108] sm:$0xff]
    %v423 = vld [vmem:[#allocation5 + $0x110] sm:$0xff]
    %v424 = vld [vmem:[#allocation5 + $0x118] sm:$0xff]
    %v425 = vld [vmem:[#allocation5 + $0x120] sm:$0xff]
    %v426 = vld [vmem:[#allocation5 + $0x128] sm:$0xff]
    %v427 = vld [vmem:[#allocation5 + $0x130] sm:$0xff]
    %v428 = vld [vmem:[#allocation5 + $0x138] sm:$0xff]
    %v429 = vld [vmem:[#allocation5 + $0x140] sm:$0xff]
    %v430 = vld [vmem:[#allocation5 + $0x148] sm:$0xff]
    %v431 = vld [vmem:[#allocation5 + $0x150] sm:$0xff]
    %v432 = vld [vmem:[#allocation5 + $0x158] sm:$0xff]
    %v433 = vld [vmem:[#allocation5 + $0x160] sm:$0xff]
    %v434 = vld [vmem:[#allocation5 + $0x168] sm:$0xff]
    %v435 = vld [vmem:[#allocation5 + $0x170] sm:$0xff]
    %v436 = vld [vmem:[#allocation5 + $0x178] sm:$0xff]
    %v437 = vld [vmem:[#allocation5 + $0x180] sm:$0xff]
    %v438 = vld [vmem:[#allocation5 + $0x188] sm:$0xff]
    %v439 = vld [vmem:[#allocation5 + $0x190] sm:$0xff]
    %v440 = vld [vmem:[#allocation5 + $0x198] sm:$0xff]
    %v441 = vld [vmem:[#allocation5 + $0x1a0] sm:$0xff]
    %v442 = vld [vmem:[#allocation5 + $0x1a8] sm:$0xff]
    %v443 = vld [vmem:[#allocation5 + $0x1b0] sm:$0xff]
    %v444 = vld [vmem:[#allocation5 + $0x1b8] sm:$0xff]
    %v445 = vld [vmem:[#allocation5 + $0x1c0] sm:$0xff]
    %v446 = vld [vmem:[#allocation5 + $0x1c8] sm:$0xff]
    %v447 = vld [vmem:[#allocation5 + $0x1d0] sm:$0xff]
    %v448 = vld [vmem:[#allocation5 + $0x1d8] sm:$0xff]
    %v449 = vld [vmem:[#allocation5 + $0x1e0] sm:$0xff]
    %v450 = vld [vmem:[#allocation5 + $0x1e8] sm:$0xff]
    %v451 = vld [vmem:[#allocation5 + $0x1f0] sm:$0xff]
    %v452 = vld [vmem:[#allocation5 + $0x1f8] sm:$0xff]
    %v453 = vld [vmem:[#allocation2] sm:$0xff]
    %v454 = vld [vmem:[#allocation3] sm:$0xff]
    %s455 = smul.u32 0, 4
    %s456 = smul.addr %s455, 8
    %s457 = scalar_lea.vmem [#allocation4], %s456
    %v458 = vld [vmem:[%s457] sm:$0xff]
    %v459 = vld [vmem:[%s457 + $0x8] sm:$0xff]
    %v460 = vld [vmem:[%s457 + $0x10] sm:$0xff]
    %v461 = vld [vmem:[%s457 + $0x18] sm:$0xff]
    %462 = vmatprep.subr.mxu0 %v390
    %463 = vmatpush1.msra.mxu0 %v389
    %464 = vmatprep.subr.mxu0 %v394
    %465 = vmatpush1.msra.mxu0 %v393
    %466 = vmatprep.subr.mxu0 %v398
    %467 = vmatpush1.msra.mxu0 %v397
    %468 = vmatprep.subr.mxu0 %v402
    %469 = vmatpush1.msra.mxu0 %v401
    %470 = vmatprep.subr.mxu0 %v406
    %471 = vmatpush1.msra.mxu0 %v405
    %472 = vmatprep.subr.mxu0 %v410
    %473 = vmatpush1.msra.mxu0 %v409
    %474 = vmatprep.subr.mxu0 %v414
    %475 = vmatpush1.msra.mxu0 %v413
    %476 = vmatprep.subr.mxu0 %v418
    %477 = vmatpush1.msra.mxu0 %v417
    %478 = vmatprep.subr.mxu0 %v422
    %479 = vmatpush1.msra.mxu0 %v421
    %480 = vmatprep.subr.mxu0 %v426
    %481 = vmatpush1.msra.mxu0 %v425
    %482 = vmatprep.subr.mxu0 %v430
    %483 = vmatpush1.msra.mxu0 %v429
    %484 = vmatprep.subr.mxu0 %v434
    %485 = vmatpush1.msra.mxu0 %v433
    %486 = vmatprep.subr.mxu0 %v438
    %487 = vmatpush1.msra.mxu0 %v437
    %488 = vmatprep.subr.mxu0 %v442
    %489 = vmatpush1.msra.mxu0 %v441
    %490 = vmatprep.subr.mxu0 %v446
    %491 = vmatpush1.msra.mxu0 %v445
    %492 = vmatprep.subr.mxu0 %v450
    %493 = vmatpush1.msra.mxu0 %v449
    %494 = vmatprep.subr.mxu0 0.0
    %495 = vmatpush1.msra.mxu0 0.0
    %496 = vmatprep.subr.mxu0 0.0
    %497 = vmatpush1.msra.mxu0 0.0
    %498 = vmatprep.subr.mxu0 0.0
    %499 = vmatpush1.msra.mxu0 0.0
    %500 = vmatprep.subr.mxu0 0.0
    %501 = vmatpush1.msra.mxu0 0.0
    %502 = vmatprep.subr.mxu0 0.0
    %503 = vmatpush1.msra.mxu0 0.0
    %504 = vmatprep.subr.mxu0 0.0
    %505 = vmatpush1.msra.mxu0 0.0
    %506 = vmatprep.subr.mxu0 0.0
    %507 = vmatpush1.msra.mxu0 0.0
    %508 = vmatprep.subr.mxu0 0.0
    %509 = vmatpush1.msra.mxu0 0.0
    %510 = vmatprep.subr.mxu0 0.0
    %511 = vmatpush1.msra.mxu0 0.0
    %512 = vmatprep.subr.mxu0 0.0
    %513 = vmatpush1.msra.mxu0 0.0
    %514 = vmatprep.subr.mxu0 0.0
    %515 = vmatpush1.msra.mxu0 0.0
    %516 = vmatprep.subr.mxu0 0.0
    %517 = vmatpush1.msra.mxu0 0.0
    %518 = vmatprep.subr.mxu0 0.0
    %519 = vmatpush1.msra.mxu0 0.0
    %520 = vmatprep.subr.mxu0 0.0
    %521 = vmatpush1.msra.mxu0 0.0
    %522 = vmatprep.subr.mxu0 0.0
    %523 = vmatpush1.msra.mxu0 0.0
    %524 = vmatprep.subr.mxu0 0.0
    %525 = vmatpush1.msra.mxu0 0.0
    %526 = vmatprep.mubr.f32.mxu0 0.0
    %527 = vmatmul.mubr.f32.gmra.mrb[0].mxu0 %v453
    %v528 = vpop.f32.mrb[0].mxu0
    %v529 = vadd.f32 0.0, %v528
    %v530 = vpop.f32.mrb[0].mxu0
    %v531 = vadd.f32 0.0, %v530
    %532 = vdwg.mxu0
    %533 = vmatprep.subr.mxu0 %v392
    %534 = vmatpush1.msra.mxu0 %v391
    %535 = vmatprep.subr.mxu0 %v396
    %536 = vmatpush1.msra.mxu0 %v395
    %537 = vmatprep.subr.mxu0 %v400
    %538 = vmatpush1.msra.mxu0 %v399
    %539 = vmatprep.subr.mxu0 %v404
    %540 = vmatpush1.msra.mxu0 %v403
    %541 = vmatprep.subr.mxu0 %v408
    %542 = vmatpush1.msra.mxu0 %v407
    %543 = vmatprep.subr.mxu0 %v412
    %544 = vmatpush1.msra.mxu0 %v411
    %545 = vmatprep.subr.mxu0 %v416
    %546 = vmatpush1.msra.mxu0 %v415
    %547 = vmatprep.subr.mxu0 %v420
    %548 = vmatpush1.msra.mxu0 %v419
    %549 = vmatprep.subr.mxu0 %v424
    %550 = vmatpush1.msra.mxu0 %v423
    %551 = vmatprep.subr.mxu0 %v428
    %552 = vmatpush1.msra.mxu0 %v427
    %553 = vmatprep.subr.mxu0 %v432
    %554 = vmatpush1.msra.mxu0 %v431
    %555 = vmatprep.subr.mxu0 %v436
    %556 = vmatpush1.msra.mxu0 %v435
    %557 = vmatprep.subr.mxu0 %v440
    %558 = vmatpush1.msra.mxu0 %v439
    %559 = vmatprep.subr.mxu0 %v444
    %560 = vmatpush1.msra.mxu0 %v443
    %561 = vmatprep.subr.mxu0 %v448
    %562 = vmatpush1.msra.mxu0 %v447
    %563 = vmatprep.subr.mxu0 %v452
    %564 = vmatpush1.msra.mxu0 %v451
    %565 = vmatprep.subr.mxu0 0.0
    %566 = vmatpush1.msra.mxu0 0.0
    %567 = vmatprep.subr.mxu0 0.0
    %568 = vmatpush1.msra.mxu0 0.0
    %569 = vmatprep.subr.mxu0 0.0
    %570 = vmatpush1.msra.mxu0 0.0
    %571 = vmatprep.subr.mxu0 0.0
    %572 = vmatpush1.msra.mxu0 0.0
    %573 = vmatprep.subr.mxu0 0.0
    %574 = vmatpush1.msra.mxu0 0.0
    %575 = vmatprep.subr.mxu0 0.0
    %576 = vmatpush1.msra.mxu0 0.0
    %577 = vmatprep.subr.mxu0 0.0
    %578 = vmatpush1.msra.mxu0 0.0
    %579 = vmatprep.subr.mxu0 0.0
    %580 = vmatpush1.msra.mxu0 0.0
    %581 = vmatprep.subr.mxu0 0.0
    %582 = vmatpush1.msra.mxu0 0.0
    %583 = vmatprep.subr.mxu0 0.0
    %584 = vmatpush1.msra.mxu0 0.0
    %585 = vmatprep.subr.mxu0 0.0
    %586 = vmatpush1.msra.mxu0 0.0
    %587 = vmatprep.subr.mxu0 0.0
    %588 = vmatpush1.msra.mxu0 0.0
    %589 = vmatprep.subr.mxu0 0.0
    %590 = vmatpush1.msra.mxu0 0.0
    %591 = vmatprep.subr.mxu0 0.0
    %592 = vmatpush1.msra.mxu0 0.0
    %593 = vmatprep.subr.mxu0 0.0
    %594 = vmatpush1.msra.mxu0 0.0
    %595 = vmatprep.subr.mxu0 0.0
    %596 = vmatpush1.msra.mxu0 0.0
    %597 = vmatprep.mubr.f32.mxu0 0.0
    %598 = vmatmul.mubr.f32.gmra.mrb[0].mxu0 %v453
    %v599 = vpop.f32.mrb[0].mxu0
    %v600 = vadd.f32 0.0, %v599
    %v601 = vpop.f32.mrb[0].mxu0
    %v602 = vadd.f32 0.0, %v601
    %603 = vdwg.mxu0
    %v604 = vadd.f32 %v458, %v529
    %v605 = vadd.f32 %v459, %v531
    %v606 = vadd.f32 %v460, %v600
    %v607 = vadd.f32 %v461, %v602
    %v608 = vxor.u32 %v604, 2147483648
    %v609 = vmul.f32 %v608, 1.442695
    %v610 = vpow.pop %v609
    %v611 = vadd.f32 %v610, 1.0
    %v612 = vrcp.pop %v611
    %v613 = vmul.f32 1.0, %v612
    %v614 = vxor.u32 %v605, 2147483648
    %v615 = vmul.f32 %v614, 1.442695
    %v616 = vpow.pop %v615
    %v617 = vadd.f32 %v616, 1.0
    %v618 = vrcp.pop %v617
    %v619 = vmul.f32 1.0, %v618
    %v620 = vtanh.pop %v606
    %v621 = vxor.u32 %v607, 2147483648
    %v622 = vmul.f32 %v621, 1.442695
    %v623 = vpow.pop %v622
    %v624 = vadd.f32 %v623, 1.0
    %v625 = vrcp.pop %v624
    %v626 = vmul.f32 1.0, %v625
    %v627 = vmul.f32 %v619, %v454
    %v628 = vmul.f32 %v613, %v620
    %v629 = vadd.f32 %v627, %v628
    %v630 = vtanh.pop %v629
    %v631 = vmul.f32 %v626, %v630
    %632 = vst [vmem:[%s4] sm:$0xff] %v631
    %s633 = smul.u32 1, 4
    %s634 = smul.addr %s633, 8
    %s635 = scalar_lea.vmem [#allocation4], %s634
    %v636 = vld [vmem:[%s635] sm:$0xff]
    %v637 = vld [vmem:[%s635 + $0x8] sm:$0xff]
    %v638 = vld [vmem:[%s635 + $0x10] sm:$0xff]
    %v639 = vld [vmem:[%s635 + $0x18] sm:$0xff]
    %640 = vmatprep.subr.mxu0 %v390
    %641 = vmatpush1.msra.mxu0 %v389
    %642 = vmatprep.subr.mxu0 %v394
    %643 = vmatpush1.msra.mxu0 %v393
    %644 = vmatprep.subr.mxu0 %v398
    %645 = vmatpush1.msra.mxu0 %v397
    %646 = vmatprep.subr.mxu0 %v402
    %647 = vmatpush1.msra.mxu0 %v401
    %648 = vmatprep.subr.mxu0 %v406
    %649 = vmatpush1.msra.mxu0 %v405
    %650 = vmatprep.subr.mxu0 %v410
    %651 = vmatpush1.msra.mxu0 %v409
    %652 = vmatprep.subr.mxu0 %v414
    %653 = vmatpush1.msra.mxu0 %v413
    %654 = vmatprep.subr.mxu0 %v418
    %655 = vmatpush1.msra.mxu0 %v417
    %656 = vmatprep.subr.mxu0 %v422
    %657 = vmatpush1.msra.mxu0 %v421
    %658 = vmatprep.subr.mxu0 %v426
    %659 = vmatpush1.msra.mxu0 %v425
    %660 = vmatprep.subr.mxu0 %v430
    %661 = vmatpush1.msra.mxu0 %v429
    %662 = vmatprep.subr.mxu0 %v434
    %663 = vmatpush1.msra.mxu0 %v433
    %664 = vmatprep.subr.mxu0 %v438
    %665 = vmatpush1.msra.mxu0 %v437
    %666 = vmatprep.subr.mxu0 %v442
    %667 = vmatpush1.msra.mxu0 %v441
    %668 = vmatprep.subr.mxu0 %v446
    %669 = vmatpush1.msra.mxu0 %v445
    %670 = vmatprep.subr.mxu0 %v450
    %671 = vmatpush1.msra.mxu0 %v449
    %672 = vmatprep.subr.mxu0 0.0
    %673 = vmatpush1.msra.mxu0 0.0
    %674 = vmatprep.subr.mxu0 0.0
    %675 = vmatpush1.msra.mxu0 0.0
    %676 = vmatprep.subr.mxu0 0.0
    %677 = vmatpush1.msra.mxu0 0.0
    %678 = vmatprep.subr.mxu0 0.0
    %679 = vmatpush1.msra.mxu0 0.0
    %680 = vmatprep.subr.mxu0 0.0
    %681 = vmatpush1.msra.mxu0 0.0
    %682 = vmatprep.subr.mxu0 0.0
    %683 = vmatpush1.msra.mxu0 0.0
    %684 = vmatprep.subr.mxu0 0.0
    %685 = vmatpush1.msra.mxu0 0.0
    %686 = vmatprep.subr.mxu0 0.0
    %687 = vmatpush1.msra.mxu0 0.0
    %688 = vmatprep.subr.mxu0 0.0
    %689 = vmatpush1.msra.mxu0 0.0
    %690 = vmatprep.subr.mxu0 0.0
    %691 = vmatpush1.msra.mxu0 0.0
    %692 = vmatprep.subr.mxu0 0.0
    %693 = vmatpush1.msra.mxu0 0.0
    %694 = vmatprep.subr.mxu0 0.0
    %695 = vmatpush1.msra.mxu0 0.0
    %696 = vmatprep.subr.mxu0 0.0
    %697 = vmatpush1.msra.mxu0 0.0
    %698 = vmatprep.subr.mxu0 0.0
    %699 = vmatpush1.msra.mxu0 0.0
    %700 = vmatprep.subr.mxu0 0.0
    %701 = vmatpush1.msra.mxu0 0.0
    %702 = vmatprep.subr.mxu0 0.0
    %703 = vmatpush1.msra.mxu0 0.0
    %704 = vmatprep.mubr.f32.mxu0 0.0
    %705 = vmatmul.mubr.f32.gmra.mrb[0].mxu0 %v631
    %v706 = vpop.f32.mrb[0].mxu0
    %v707 = vadd.f32 0.0, %v706
    %v708 = vpop.f32.mrb[0].mxu0
    %v709 = vadd.f32 0.0, %v708
    %710 = vdwg.mxu0
    %711 = vmatprep.subr.mxu0 %v392
    %712 = vmatpush1.msra.mxu0 %v391
    %713 = vmatprep.subr.mxu0 %v396
    %714 = vmatpush1.msra.mxu0 %v395
    %715 = vmatprep.subr.mxu0 %v400
    %716 = vmatpush1.msra.mxu0 %v399
    %717 = vmatprep.subr.mxu0 %v404
    %718 = vmatpush1.msra.mxu0 %v403
    %719 = vmatprep.subr.mxu0 %v408
    %720 = vmatpush1.msra.mxu0 %v407
    %721 = vmatprep.subr.mxu0 %v412
    %722 = vmatpush1.msra.mxu0 %v411
    %723 = vmatprep.subr.mxu0 %v416
    %724 = vmatpush1.msra.mxu0 %v415
    %725 = vmatprep.subr.mxu0 %v420
    %726 = vmatpush1.msra.mxu0 %v419
    %727 = vmatprep.subr.mxu0 %v424
    %728 = vmatpush1.msra.mxu0 %v423
    %729 = vmatprep.subr.mxu0 %v428
    %730 = vmatpush1.msra.mxu0 %v427
    %731 = vmatprep.subr.mxu0 %v432
    %732 = vmatpush1.msra.mxu0 %v431
    %733 = vmatprep.subr.mxu0 %v436
    %734 = vmatpush1.msra.mxu0 %v435
    %735 = vmatprep.subr.mxu0 %v440
    %736 = vmatpush1.msra.mxu0 %v439
    %737 = vmatprep.subr.mxu0 %v444
    %738 = vmatpush1.msra.mxu0 %v443
    %739 = vmatprep.subr.mxu0 %v448
    %740 = vmatpush1.msra.mxu0 %v447
    %741 = vmatprep.subr.mxu0 %v452
    %742 = vmatpush1.msra.mxu0 %v451
    %743 = vmatprep.subr.mxu0 0.0
    %744 = vmatpush1.msra.mxu0 0.0
    %745 = vmatprep.subr.mxu0 0.0
    %746 = vmatpush1.msra.mxu0 0.0
    %747 = vmatprep.subr.mxu0 0.0
    %748 = vmatpush1.msra.mxu0 0.0
    %749 = vmatprep.subr.mxu0 0.0
    %750 = vmatpush1.msra.mxu0 0.0
    %751 = vmatprep.subr.mxu0 0.0
    %752 = vmatpush1.msra.mxu0 0.0
    %753 = vmatprep.subr.mxu0 0.0
    %754 = vmatpush1.msra.mxu0 0.0
    %755 = vmatprep.subr.mxu0 0.0
    %756 = vmatpush1.msra.mxu0 0.0
    %757 = vmatprep.subr.mxu0 0.0
    %758 = vmatpush1.msra.mxu0 0.0
    %759 = vmatprep.subr.mxu0 0.0
    %760 = vmatpush1.msra.mxu0 0.0
    %761 = vmatprep.subr.mxu0 0.0
    %762 = vmatpush1.msra.mxu0 0.0
    %763 = vmatprep.subr.mxu0 0.0
    %764 = vmatpush1.msra.mxu0 0.0
    %765 = vmatprep.subr.mxu0 0.0
    %766 = vmatpush1.msra.mxu0 0.0
    %767 = vmatprep.subr.mxu0 0.0
    %768 = vmatpush1.msra.mxu0 0.0
    %769 = vmatprep.subr.mxu0 0.0
    %770 = vmatpush1.msra.mxu0 0.0
    %771 = vmatprep.subr.mxu0 0.0
    %772 = vmatpush1.msra.mxu0 0.0
    %773 = vmatprep.subr.mxu0 0.0
    %774 = vmatpush1.msra.mxu0 0.0
    %775 = vmatprep.mubr.f32.mxu0 0.0
    %776 = vmatmul.mubr.f32.gmra.mrb[0].mxu0 %v631
    %v777 = vpop.f32.mrb[0].mxu0
    %v778 = vadd.f32 0.0, %v777
    %v779 = vpop.f32.mrb[0].mxu0
    %v780 = vadd.f32 0.0, %v779
    %781 = vdwg.mxu0
    %v782 = vadd.f32 %v636, %v707
    %v783 = vadd.f32 %v637, %v709
    %v784 = vadd.f32 %v638, %v778
    %v785 = vadd.f32 %v639, %v780
    %v786 = vxor.u32 %v782, 2147483648
    %v787 = vmul.f32 %v786, 1.442695
    %v788 = vpow.pop %v787
    %v789 = vadd.f32 %v788, 1.0
    %v790 = vrcp.pop %v789
    %v791 = vmul.f32 1.0, %v790
    %v792 = vxor.u32 %v783, 2147483648
    %v793 = vmul.f32 %v792, 1.442695
    %v794 = vpow.pop %v793
    %v795 = vadd.f32 %v794, 1.0
    %v796 = vrcp.pop %v795
    %v797 = vmul.f32 1.0, %v796
    %v798 = vtanh.pop %v784
    %v799 = vxor.u32 %v785, 2147483648
    %v800 = vmul.f32 %v799, 1.442695
    %v801 = vpow.pop %v800
    %v802 = vadd.f32 %v801, 1.0
    %v803 = vrcp.pop %v802
    %v804 = vmul.f32 1.0, %v803
    %v805 = vmul.f32 %v797, %v629
    %v806 = vmul.f32 %v791, %v798
    %v807 = vadd.f32 %v805, %v806
    %v808 = vtanh.pop %v807
    %v809 = vmul.f32 %v804, %v808
    %s810 = scalar_lea.vmem %s4, 8
    %811 = vst [vmem:[%s810] sm:$0xff] %v809
    %s812 = smul.u32 2, 4
    %s813 = smul.addr %s812, 8
    %s814 = scalar_lea.vmem [#allocation4], %s813
    %v815 = vld [vmem:[%s814] sm:$0xff]
    %v816 = vld [vmem:[%s814 + $0x8] sm:$0xff]
    %v817 = vld [vmem:[%s814 + $0x10] sm:$0xff]
    %v818 = vld [vmem:[%s814 + $0x18] sm:$0xff]
    %819 = vmatprep.subr.mxu0 %v390
    %820 = vmatpush1.msra.mxu0 %v389
    %821 = vmatprep.subr.mxu0 %v394
    %822 = vmatpush1.msra.mxu0 %v393
    %823 = vmatprep.subr.mxu0 %v398
    %824 = vmatpush1.msra.mxu0 %v397
    %825 = vmatprep.subr.mxu0 %v402
    %826 = vmatpush1.msra.mxu0 %v401
    %827 = vmatprep.subr.mxu0 %v406
    %828 = vmatpush1.msra.mxu0 %v405
    %829 = vmatprep.subr.mxu0 %v410
    %830 = vmatpush1.msra.mxu0 %v409
    %831 = vmatprep.subr.mxu0 %v414
    %832 = vmatpush1.msra.mxu0 %v413
    %833 = vmatprep.subr.mxu0 %v418
    %834 = vmatpush1.msra.mxu0 %v417
    %835 = vmatprep.subr.mxu0 %v422
    %836 = vmatpush1.msra.mxu0 %v421
    %837 = vmatprep.subr.mxu0 %v426
    %838 = vmatpush1.msra.mxu0 %v425
    %839 = vmatprep.subr.mxu0 %v430
    %840 = vmatpush1.msra.mxu0 %v429
    %841 = vmatprep.subr.mxu0 %v434
    %842 = vmatpush1.msra.mxu0 %v433
    %843 = vmatprep.subr.mxu0 %v438
    %844 = vmatpush1.msra.mxu0 %v437
    %845 = vmatprep.subr.mxu0 %v442
    %846 = vmatpush1.msra.mxu0 %v441
    %847 = vmatprep.subr.mxu0 %v446
    %848 = vmatpush1.msra.mxu0 %v445
    %849 = vmatprep.subr.mxu0 %v450
    %850 = vmatpush1.msra.mxu0 %v449
    %851 = vmatprep.subr.mxu0 0.0
    %852 = vmatpush1.msra.mxu0 0.0
    %853 = vmatprep.subr.mxu0 0.0
    %854 = vmatpush1.msra.mxu0 0.0
    %855 = vmatprep.subr.mxu0 0.0
    %856 = vmatpush1.msra.mxu0 0.0
    %857 = vmatprep.subr.mxu0 0.0
    %858 = vmatpush1.msra.mxu0 0.0
    %859 = vmatprep.subr.mxu0 0.0
    %860 = vmatpush1.msra.mxu0 0.0
    %861 = vmatprep.subr.mxu0 0.0
    %862 = vmatpush1.msra.mxu0 0.0
    %863 = vmatprep.subr.mxu0 0.0
    %864 = vmatpush1.msra.mxu0 0.0
    %865 = vmatprep.subr.mxu0 0.0
    %866 = vmatpush1.msra.mxu0 0.0
    %867 = vmatprep.subr.mxu0 0.0
    %868 = vmatpush1.msra.mxu0 0.0
    %869 = vmatprep.subr.mxu0 0.0
    %870 = vmatpush1.msra.mxu0 0.0
    %871 = vmatprep.subr.mxu0 0.0
    %872 = vmatpush1.msra.mxu0 0.0
    %873 = vmatprep.subr.mxu0 0.0
    %874 = vmatpush1.msra.mxu0 0.0
    %875 = vmatprep.subr.mxu0 0.0
    %876 = vmatpush1.msra.mxu0 0.0
    %877 = vmatprep.subr.mxu0 0.0
    %878 = vmatpush1.msra.mxu0 0.0
    %879 = vmatprep.subr.mxu0 0.0
    %880 = vmatpush1.msra.mxu0 0.0
    %881 = vmatprep.subr.mxu0 0.0
    %882 = vmatpush1.msra.mxu0 0.0
    %883 = vmatprep.mubr.f32.mxu0 0.0
    %884 = vmatmul.mubr.f32.gmra.mrb[0].mxu0 %v809
    %v885 = vpop.f32.mrb[0].mxu0
    %v886 = vadd.f32 0.0, %v885
    %v887 = vpop.f32.mrb[0].mxu0
    %v888 = vadd.f32 0.0, %v887
    %889 = vdwg.mxu0
    %890 = vmatprep.subr.mxu0 %v392
    %891 = vmatpush1.msra.mxu0 %v391
    %892 = vmatprep.subr.mxu0 %v396
    %893 = vmatpush1.msra.mxu0 %v395
    %894 = vmatprep.subr.mxu0 %v400
    %895 = vmatpush1.msra.mxu0 %v399
    %896 = vmatprep.subr.mxu0 %v404
    %897 = vmatpush1.msra.mxu0 %v403
    %898 = vmatprep.subr.mxu0 %v408
    %899 = vmatpush1.msra.mxu0 %v407
    %900 = vmatprep.subr.mxu0 %v412
    %901 = vmatpush1.msra.mxu0 %v411
    %902 = vmatprep.subr.mxu0 %v416
    %903 = vmatpush1.msra.mxu0 %v415
    %904 = vmatprep.subr.mxu0 %v420
    %905 = vmatpush1.msra.mxu0 %v419
    %906 = vmatprep.subr.mxu0 %v424
    %907 = vmatpush1.msra.mxu0 %v423
    %908 = vmatprep.subr.mxu0 %v428
    %909 = vmatpush1.msra.mxu0 %v427
    %910 = vmatprep.subr.mxu0 %v432
    %911 = vmatpush1.msra.mxu0 %v431
    %912 = vmatprep.subr.mxu0 %v436
    %913 = vmatpush1.msra.mxu0 %v435
    %914 = vmatprep.subr.mxu0 %v440
    %915 = vmatpush1.msra.mxu0 %v439
    %916 = vmatprep.subr.mxu0 %v444
    %917 = vmatpush1.msra.mxu0 %v443
    %918 = vmatprep.subr.mxu0 %v448
    %919 = vmatpush1.msra.mxu0 %v447
    %920 = vmatprep.subr.mxu0 %v452
    %921 = vmatpush1.msra.mxu0 %v451
    %922 = vmatprep.subr.mxu0 0.0
    %923 = vmatpush1.msra.mxu0 0.0
    %924 = vmatprep.subr.mxu0 0.0
    %925 = vmatpush1.msra.mxu0 0.0
    %926 = vmatprep.subr.mxu0 0.0
    %927 = vmatpush1.msra.mxu0 0.0
    %928 = vmatprep.subr.mxu0 0.0
    %929 = vmatpush1.msra.mxu0 0.0
    %930 = vmatprep.subr.mxu0 0.0
    %931 = vmatpush1.msra.mxu0 0.0
    %932 = vmatprep.subr.mxu0 0.0
    %933 = vmatpush1.msra.mxu0 0.0
    %934 = vmatprep.subr.mxu0 0.0
    %935 = vmatpush1.msra.mxu0 0.0
    %936 = vmatprep.subr.mxu0 0.0
    %937 = vmatpush1.msra.mxu0 0.0
    %938 = vmatprep.subr.mxu0 0.0
    %939 = vmatpush1.msra.mxu0 0.0
    %940 = vmatprep.subr.mxu0 0.0
    %941 = vmatpush1.msra.mxu0 0.0
    %942 = vmatprep.subr.mxu0 0.0
    %943 = vmatpush1.msra.mxu0 0.0
    %944 = vmatprep.subr.mxu0 0.0
    %945 = vmatpush1.msra.mxu0 0.0
    %946 = vmatprep.subr.mxu0 0.0
    %947 = vmatpush1.msra.mxu0 0.0
    %948 = vmatprep.subr.mxu0 0.0
    %949 = vmatpush1.msra.mxu0 0.0
    %950 = vmatprep.subr.mxu0 0.0
    %951 = vmatpush1.msra.mxu0 0.0
    %952 = vmatprep.subr.mxu0 0.0
    %953 = vmatpush1.msra.mxu0 0.0
    %954 = vmatprep.mubr.f32.mxu0 0.0
    %955 = vmatmul.mubr.f32.gmra.mrb[0].mxu0 %v809
    %v956 = vpop.f32.mrb[0].mxu0
    %v957 = vadd.f32 0.0, %v956
    %v958 = vpop.f32.mrb[0].mxu0
    %v959 = vadd.f32 0.0, %v958
    %960 = vdwg.mxu0
    %v961 = vadd.f32 %v815, %v886
    %v962 = vadd.f32 %v816, %v888
    %v963 = vadd.f32 %v817, %v957
    %v964 = vadd.f32 %v818, %v959
    %v965 = vxor.u32 %v961, 2147483648
    %v966 = vmul.f32 %v965, 1.442695
    %v967 = vpow.pop %v966
    %v968 = vadd.f32 %v967, 1.0
    %v969 = vrcp.pop %v968
    %v970 = vmul.f32 1.0, %v969
    %v971 = vxor.u32 %v962, 2147483648
    %v972 = vmul.f32 %v971, 1.442695
    %v973 = vpow.pop %v972
    %v974 = vadd.f32 %v973, 1.0
    %v975 = vrcp.pop %v974
    %v976 = vmul.f32 1.0, %v975
    %v977 = vtanh.pop %v963
    %v978 = vxor.u32 %v964, 2147483648
    %v979 = vmul.f32 %v978, 1.442695
    %v980 = vpow.pop %v979
    %v981 = vadd.f32 %v980, 1.0
    %v982 = vrcp.pop %v981
    %v983 = vmul.f32 1.0, %v982
    %v984 = vmul.f32 %v976, %v807
    %v985 = vmul.f32 %v970, %v977
    %v986 = vadd.f32 %v984, %v985
    %v987 = vtanh.pop %v986
    %v988 = vmul.f32 %v983, %v987
    %s989 = scalar_lea.vmem %s4, 16
    %990 = vst [vmem:[%s989] sm:$0xff] %v988
    %s991 = smul.u32 3, 4
    %s992 = smul.addr %s991, 8
    %s993 = scalar_lea.vmem [#allocation4], %s992
    %v994 = vld [vmem:[%s993] sm:$0xff]
    %v995 = vld [vmem:[%s993 + $0x8] sm:$0xff]
    %v996 = vld [vmem:[%s993 + $0x10] sm:$0xff]
    %v997 = vld [vmem:[%s993 + $0x18] sm:$0xff]
    %998 = vmatprep.subr.mxu0 %v390
    %999 = vmatpush1.msra.mxu0 %v389
    %1000 = vmatprep.subr.mxu0 %v394
    %1001 = vmatpush1.msra.mxu0 %v393
    %1002 = vmatprep.subr.mxu0 %v398
    %1003 = vmatpush1.msra.mxu0 %v397
    %1004 = vmatprep.subr.mxu0 %v402
    %1005 = vmatpush1.msra.mxu0 %v401
    %1006 = vmatprep.subr.mxu0 %v406
    %1007 = vmatpush1.msra.mxu0 %v405
    %1008 = vmatprep.subr.mxu0 %v410
    %1009 = vmatpush1.msra.mxu0 %v409
    %1010 = vmatprep.subr.mxu0 %v414
    %1011 = vmatpush1.msra.mxu0 %v413
    %1012 = vmatprep.subr.mxu0 %v418
    %1013 = vmatpush1.msra.mxu0 %v417
    %1014 = vmatprep.subr.mxu0 %v422
    %1015 = vmatpush1.msra.mxu0 %v421
    %1016 = vmatprep.subr.mxu0 %v426
    %1017 = vmatpush1.msra.mxu0 %v425
    %1018 = vmatprep.subr.mxu0 %v430
    %1019 = vmatpush1.msra.mxu0 %v429
    %1020 = vmatprep.subr.mxu0 %v434
    %1021 = vmatpush1.msra.mxu0 %v433
    %1022 = vmatprep.subr.mxu0 %v438
    %1023 = vmatpush1.msra.mxu0 %v437
    %1024 = vmatprep.subr.mxu0 %v442
    %1025 = vmatpush1.msra.mxu0 %v441
    %1026 = vmatprep.subr.mxu0 %v446
    %1027 = vmatpush1.msra.mxu0 %v445
    %1028 = vmatprep.subr.mxu0 %v450
    %1029 = vmatpush1.msra.mxu0 %v449
    %1030 = vmatprep.subr.mxu0 0.0
    %1031 = vmatpush1.msra.mxu0 0.0
    %1032 = vmatprep.subr.mxu0 0.0
    %1033 = vmatpush1.msra.mxu0 0.0
    %1034 = vmatprep.subr.mxu0 0.0
    %1035 = vmatpush1.msra.mxu0 0.0
    %1036 = vmatprep.subr.mxu0 0.0
    %1037 = vmatpush1.msra.mxu0 0.0
    %1038 = vmatprep.subr.mxu0 0.0
    %1039 = vmatpush1.msra.mxu0 0.0
    %1040 = vmatprep.subr.mxu0 0.0
    %1041 = vmatpush1.msra.mxu0 0.0
    %1042 = vmatprep.subr.mxu0 0.0
    %1043 = vmatpush1.msra.mxu0 0.0
    %1044 = vmatprep.subr.mxu0 0.0
    %1045 = vmatpush1.msra.mxu0 0.0
    %1046 = vmatprep.subr.mxu0 0.0
    %1047 = vmatpush1.msra.mxu0 0.0
    %1048 = vmatprep.subr.mxu0 0.0
    %1049 = vmatpush1.msra.mxu0 0.0
    %1050 = vmatprep.subr.mxu0 0.0
    %1051 = vmatpush1.msra.mxu0 0.0
    %1052 = vmatprep.subr.mxu0 0.0
    %1053 = vmatpush1.msra.mxu0 0.0
    %1054 = vmatprep.subr.mxu0 0.0
    %1055 = vmatpush1.msra.mxu0 0.0
    %1056 = vmatprep.subr.mxu0 0.0
    %1057 = vmatpush1.msra.mxu0 0.0
    %1058 = vmatprep.subr.mxu0 0.0
    %1059 = vmatpush1.msra.mxu0 0.0
    %1060 = vmatprep.subr.mxu0 0.0
    %1061 = vmatpush1.msra.mxu0 0.0
    %1062 = vmatprep.mubr.f32.mxu0 0.0
    %1063 = vmatmul.mubr.f32.gmra.mrb[0].mxu0 %v988
    %v1064 = vpop.f32.mrb[0].mxu0
    %v1065 = vadd.f32 0.0, %v1064
    %v1066 = vpop.f32.mrb[0].mxu0
    %v1067 = vadd.f32 0.0, %v1066
    %1068 = vdwg.mxu0
    %1069 = vmatprep.subr.mxu0 %v392
    %1070 = vmatpush1.msra.mxu0 %v391
    %1071 = vmatprep.subr.mxu0 %v396
    %1072 = vmatpush1.msra.mxu0 %v395
    %1073 = vmatprep.subr.mxu0 %v400
    %1074 = vmatpush1.msra.mxu0 %v399
    %1075 = vmatprep.subr.mxu0 %v404
    %1076 = vmatpush1.msra.mxu0 %v403
    %1077 = vmatprep.subr.mxu0 %v408
    %1078 = vmatpush1.msra.mxu0 %v407
    %1079 = vmatprep.subr.mxu0 %v412
    %1080 = vmatpush1.msra.mxu0 %v411
    %1081 = vmatprep.subr.mxu0 %v416
    %1082 = vmatpush1.msra.mxu0 %v415
    %1083 = vmatprep.subr.mxu0 %v420
    %1084 = vmatpush1.msra.mxu0 %v419
    %1085 = vmatprep.subr.mxu0 %v424
    %1086 = vmatpush1.msra.mxu0 %v423
    %1087 = vmatprep.subr.mxu0 %v428
    %1088 = vmatpush1.msra.mxu0 %v427
    %1089 = vmatprep.subr.mxu0 %v432
    %1090 = vmatpush1.msra.mxu0 %v431
    %1091 = vmatprep.subr.mxu0 %v436
    %1092 = vmatpush1.msra.mxu0 %v435
    %1093 = vmatprep.subr.mxu0 %v440
    %1094 = vmatpush1.msra.mxu0 %v439
    %1095 = vmatprep.subr.mxu0 %v444
    %1096 = vmatpush1.msra.mxu0 %v443
    %1097 = vmatprep.subr.mxu0 %v448
    %1098 = vmatpush1.msra.mxu0 %v447
    %1099 = vmatprep.subr.mxu0 %v452
    %1100 = vmatpush1.msra.mxu0 %v451
    %1101 = vmatprep.subr.mxu0 0.0
    %1102 = vmatpush1.msra.mxu0 0.0
    %1103 = vmatprep.subr.mxu0 0.0
    %1104 = vmatpush1.msra.mxu0 0.0
    %1105 = vmatprep.subr.mxu0 0.0
    %1106 = vmatpush1.msra.mxu0 0.0
    %1107 = vmatprep.subr.mxu0 0.0
    %1108 = vmatpush1.msra.mxu0 0.0
    %1109 = vmatprep.subr.mxu0 0.0
    %1110 = vmatpush1.msra.mxu0 0.0
    %1111 = vmatprep.subr.mxu0 0.0
    %1112 = vmatpush1.msra.mxu0 0.0
    %1113 = vmatprep.subr.mxu0 0.0
    %1114 = vmatpush1.msra.mxu0 0.0
    %1115 = vmatprep.subr.mxu0 0.0
    %1116 = vmatpush1.msra.mxu0 0.0
    %1117 = vmatprep.subr.mxu0 0.0
    %1118 = vmatpush1.msra.mxu0 0.0
    %1119 = vmatprep.subr.mxu0 0.0
    %1120 = vmatpush1.msra.mxu0 0.0
    %1121 = vmatprep.subr.mxu0 0.0
    %1122 = vmatpush1.msra.mxu0 0.0
    %1123 = vmatprep.subr.mxu0 0.0
    %1124 = vmatpush1.msra.mxu0 0.0
    %1125 = vmatprep.subr.mxu0 0.0
    %1126 = vmatpush1.msra.mxu0 0.0
    %1127 = vmatprep.subr.mxu0 0.0
    %1128 = vmatpush1.msra.mxu0 0.0
    %1129 = vmatprep.subr.mxu0 0.0
    %1130 = vmatpush1.msra.mxu0 0.0
    %1131 = vmatprep.subr.mxu0 0.0
    %1132 = vmatpush1.msra.mxu0 0.0
    %1133 = vmatprep.mubr.f32.mxu0 0.0
    %1134 = vmatmul.mubr.f32.gmra.mrb[0].mxu0 %v988
    %v1135 = vpop.f32.mrb[0].mxu0
    %v1136 = vadd.f32 0.0, %v1135
    %v1137 = vpop.f32.mrb[0].mxu0
    %v1138 = vadd.f32 0.0, %v1137
    %1139 = vdwg.mxu0
    %v1140 = vadd.f32 %v994, %v1065
    %v1141 = vadd.f32 %v995, %v1067
    %v1142 = vadd.f32 %v996, %v1136
    %v1143 = vadd.f32 %v997, %v1138
    %v1144 = vxor.u32 %v1140, 2147483648
    %v1145 = vmul.f32 %v1144, 1.442695
    %v1146 = vpow.pop %v1145
    %v1147 = vadd.f32 %v1146, 1.0
    %v1148 = vrcp.pop %v1147
    %v1149 = vmul.f32 1.0, %v1148
    %v1150 = vxor.u32 %v1141, 2147483648
    %v1151 = vmul.f32 %v1150, 1.442695
    %v1152 = vpow.pop %v1151
    %v1153 = vadd.f32 %v1152, 1.0
    %v1154 = vrcp.pop %v1153
    %v1155 = vmul.f32 1.0, %v1154
    %v1156 = vtanh.pop %v1142
    %v1157 = vxor.u32 %v1143, 2147483648
    %v1158 = vmul.f32 %v1157, 1.442695
    %v1159 = vpow.pop %v1158
    %v1160 = vadd.f32 %v1159, 1.0
    %v1161 = vrcp.pop %v1160
    %v1162 = vmul.f32 1.0, %v1161
    %v1163 = vmul.f32 %v1155, %v986
    %v1164 = vmul.f32 %v1149, %v1156
    %v1165 = vadd.f32 %v1163, %v1164
    %v1166 = vtanh.pop %v1165
    %v1167 = vmul.f32 %v1162, %v1166
    %s1168 = scalar_lea.vmem %s4, 24
    %1169 = vst [vmem:[%s1168] sm:$0xff] %v1167
    %s1170 = smul.u32 4, 4
    %s1171 = smul.addr %s1170, 8
    %s1172 = scalar_lea.vmem [#allocation4], %s1171
    %v1173 = vld [vmem:[%s1172] sm:$0xff]
    %v1174 = vld [vmem:[%s1172 + $0x8] sm:$0xff]
    %v1175 = vld [vmem:[%s1172 + $0x10] sm:$0xff]
    %v1176 = vld [vmem:[%s1172 + $0x18] sm:$0xff]
    %1177 = vmatprep.subr.mxu0 %v390
    %1178 = vmatpush1.msra.mxu0 %v389
    %1179 = vmatprep.subr.mxu0 %v394
    %1180 = vmatpush1.msra.mxu0 %v393
    %1181 = vmatprep.subr.mxu0 %v398
    %1182 = vmatpush1.msra.mxu0 %v397
    %1183 = vmatprep.subr.mxu0 %v402
    %1184 = vmatpush1.msra.mxu0 %v401
    %1185 = vmatprep.subr.mxu0 %v406
    %1186 = vmatpush1.msra.mxu0 %v405
    %1187 = vmatprep.subr.mxu0 %v410
    %1188 = vmatpush1.msra.mxu0 %v409
    %1189 = vmatprep.subr.mxu0 %v414
    %1190 = vmatpush1.msra.mxu0 %v413
    %1191 = vmatprep.subr.mxu0 %v418
    %1192 = vmatpush1.msra.mxu0 %v417
    %1193 = vmatprep.subr.mxu0 %v422
    %1194 = vmatpush1.msra.mxu0 %v421
    %1195 = vmatprep.subr.mxu0 %v426
    %1196 = vmatpush1.msra.mxu0 %v425
    %1197 = vmatprep.subr.mxu0 %v430
    %1198 = vmatpush1.msra.mxu0 %v429
    %1199 = vmatprep.subr.mxu0 %v434
    %1200 = vmatpush1.msra.mxu0 %v433
    %1201 = vmatprep.subr.mxu0 %v438
    %1202 = vmatpush1.msra.mxu0 %v437
    %1203 = vmatprep.subr.mxu0 %v442
    %1204 = vmatpush1.msra.mxu0 %v441
    %1205 = vmatprep.subr.mxu0 %v446
    %1206 = vmatpush1.msra.mxu0 %v445
    %1207 = vmatprep.subr.mxu0 %v450
    %1208 = vmatpush1.msra.mxu0 %v449
    %1209 = vmatprep.subr.mxu0 0.0
    %1210 = vmatpush1.msra.mxu0 0.0
    %1211 = vmatprep.subr.mxu0 0.0
    %1212 = vmatpush1.msra.mxu0 0.0
    %1213 = vmatprep.subr.mxu0 0.0
    %1214 = vmatpush1.msra.mxu0 0.0
    %1215 = vmatprep.subr.mxu0 0.0
    %1216 = vmatpush1.msra.mxu0 0.0
    %1217 = vmatprep.subr.mxu0 0.0
    %1218 = vmatpush1.msra.mxu0 0.0
    %1219 = vmatprep.subr.mxu0 0.0
    %1220 = vmatpush1.msra.mxu0 0.0
    %1221 = vmatprep.subr.mxu0 0.0
    %1222 = vmatpush1.msra.mxu0 0.0
    %1223 = vmatprep.subr.mxu0 0.0
    %1224 = vmatpush1.msra.mxu0 0.0
    %1225 = vmatprep.subr.mxu0 0.0
    %1226 = vmatpush1.msra.mxu0 0.0
    %1227 = vmatprep.subr.mxu0 0.0
    %1228 = vmatpush1.msra.mxu0 0.0
    %1229 = vmatprep.subr.mxu0 0.0
    %1230 = vmatpush1.msra.mxu0 0.0
    %1231 = vmatprep.subr.mxu0 0.0
    %1232 = vmatpush1.msra.mxu0 0.0
    %1233 = vmatprep.subr.mxu0 0.0
    %1234 = vmatpush1.msra.mxu0 0.0
    %1235 = vmatprep.subr.mxu0 0.0
    %1236 = vmatpush1.msra.mxu0 0.0
    %1237 = vmatprep.subr.mxu0 0.0
    %1238 = vmatpush1.msra.mxu0 0.0
    %1239 = vmatprep.subr.mxu0 0.0
    %1240 = vmatpush1.msra.mxu0 0.0
    %1241 = vmatprep.mubr.f32.mxu0 0.0
    %1242 = vmatmul.mubr.f32.gmra.mrb[0].mxu0 %v1167
    %v1243 = vpop.f32.mrb[0].mxu0
    %v1244 = vadd.f32 0.0, %v1243
    %v1245 = vpop.f32.mrb[0].mxu0
    %v1246 = vadd.f32 0.0, %v1245
    %1247 = vdwg.mxu0
    %1248 = vmatprep.subr.mxu0 %v392
    %1249 = vmatpush1.msra.mxu0 %v391
    %1250 = vmatprep.subr.mxu0 %v396
    %1251 = vmatpush1.msra.mxu0 %v395
    %1252 = vmatprep.subr.mxu0 %v400
    %1253 = vmatpush1.msra.mxu0 %v399
    %1254 = vmatprep.subr.mxu0 %v404
    %1255 = vmatpush1.msra.mxu0 %v403
    %1256 = vmatprep.subr.mxu0 %v408
    %1257 = vmatpush1.msra.mxu0 %v407
    %1258 = vmatprep.subr.mxu0 %v412
    %1259 = vmatpush1.msra.mxu0 %v411
    %1260 = vmatprep.subr.mxu0 %v416
    %1261 = vmatpush1.msra.mxu0 %v415
    %1262 = vmatprep.subr.mxu0 %v420
    %1263 = vmatpush1.msra.mxu0 %v419
    %1264 = vmatprep.subr.mxu0 %v424
    %1265 = vmatpush1.msra.mxu0 %v423
    %1266 = vmatprep.subr.mxu0 %v428
    %1267 = vmatpush1.msra.mxu0 %v427
    %1268 = vmatprep.subr.mxu0 %v432
    %1269 = vmatpush1.msra.mxu0 %v431
    %1270 = vmatprep.subr.mxu0 %v436
    %1271 = vmatpush1.msra.mxu0 %v435
    %1272 = vmatprep.subr.mxu0 %v440
    %1273 = vmatpush1.msra.mxu0 %v439
    %1274 = vmatprep.subr.mxu0 %v444
    %1275 = vmatpush1.msra.mxu0 %v443
    %1276 = vmatprep.subr.mxu0 %v448
    %1277 = vmatpush1.msra.mxu0 %v447
    %1278 = vmatprep.subr.mxu0 %v452
    %1279 = vmatpush1.msra.mxu0 %v451
    %1280 = vmatprep.subr.mxu0 0.0
    %1281 = vmatpush1.msra.mxu0 0.0
    %1282 = vmatprep.subr.mxu0 0.0
    %1283 = vmatpush1.msra.mxu0 0.0
    %1284 = vmatprep.subr.mxu0 0.0
    %1285 = vmatpush1.msra.mxu0 0.0
    %1286 = vmatprep.subr.mxu0 0.0
    %1287 = vmatpush1.msra.mxu0 0.0
    %1288 = vmatprep.subr.mxu0 0.0
    %1289 = vmatpush1.msra.mxu0 0.0
    %1290 = vmatprep.subr.mxu0 0.0
    %1291 = vmatpush1.msra.mxu0 0.0
    %1292 = vmatprep.subr.mxu0 0.0
    %1293 = vmatpush1.msra.mxu0 0.0
    %1294 = vmatprep.subr.mxu0 0.0
    %1295 = vmatpush1.msra.mxu0 0.0
    %1296 = vmatprep.subr.mxu0 0.0
    %1297 = vmatpush1.msra.mxu0 0.0
    %1298 = vmatprep.subr.mxu0 0.0
    %1299 = vmatpush1.msra.mxu0 0.0
    %1300 = vmatprep.subr.mxu0 0.0
    %1301 = vmatpush1.msra.mxu0 0.0
    %1302 = vmatprep.subr.mxu0 0.0
    %1303 = vmatpush1.msra.mxu0 0.0
    %1304 = vmatprep.subr.mxu0 0.0
    %1305 = vmatpush1.msra.mxu0 0.0
    %1306 = vmatprep.subr.mxu0 0.0
    %1307 = vmatpush1.msra.mxu0 0.0
    %1308 = vmatprep.subr.mxu0 0.0
    %1309 = vmatpush1.msra.mxu0 0.0
    %1310 = vmatprep.subr.mxu0 0.0
    %1311 = vmatpush1.msra.mxu0 0.0
    %1312 = vmatprep.mubr.f32.mxu0 0.0
    %1313 = vmatmul.mubr.f32.gmra.mrb[0].mxu0 %v1167
    %v1314 = vpop.f32.mrb[0].mxu0
    %v1315 = vadd.f32 0.0, %v1314
    %v1316 = vpop.f32.mrb[0].mxu0
    %v1317 = vadd.f32 0.0, %v1316
    %1318 = vdwg.mxu0
    %v1319 = vadd.f32 %v1173, %v1244
    %v1320 = vadd.f32 %v1174, %v1246
    %v1321 = vadd.f32 %v1175, %v1315
    %v1322 = vadd.f32 %v1176, %v1317
    %v1323 = vxor.u32 %v1319, 2147483648
    %v1324 = vmul.f32 %v1323, 1.442695
    %v1325 = vpow.pop %v1324
    %v1326 = vadd.f32 %v1325, 1.0
    %v1327 = vrcp.pop %v1326
    %v1328 = vmul.f32 1.0, %v1327
    %v1329 = vxor.u32 %v1320, 2147483648
    %v1330 = vmul.f32 %v1329, 1.442695
    %v1331 = vpow.pop %v1330
    %v1332 = vadd.f32 %v1331, 1.0
    %v1333 = vrcp.pop %v1332
    %v1334 = vmul.f32 1.0, %v1333
    %v1335 = vtanh.pop %v1321
    %v1336 = vxor.u32 %v1322, 2147483648
    %v1337 = vmul.f32 %v1336, 1.442695
    %v1338 = vpow.pop %v1337
    %v1339 = vadd.f32 %v1338, 1.0
    %v1340 = vrcp.pop %v1339
    %v1341 = vmul.f32 1.0, %v1340
    %v1342 = vmul.f32 %v1334, %v1165
    %v1343 = vmul.f32 %v1328, %v1335
    %v1344 = vadd.f32 %v1342, %v1343
    %v1345 = vtanh.pop %v1344
    %v1346 = vmul.f32 %v1341, %v1345
    %s1347 = scalar_lea.vmem %s4, 32
    %1348 = vst [vmem:[%s1347] sm:$0xff] %v1346
    %s1349 = smul.u32 5, 4
    %s1350 = smul.addr %s1349, 8
    %s1351 = scalar_lea.vmem [#allocation4], %s1350
    %v1352 = vld [vmem:[%s1351] sm:$0xff]
    %v1353 = vld [vmem:[%s1351 + $0x8] sm:$0xff]
    %v1354 = vld [vmem:[%s1351 + $0x10] sm:$0xff]
    %v1355 = vld [vmem:[%s1351 + $0x18] sm:$0xff]
    %1356 = vmatprep.subr.mxu0 %v390
    %1357 = vmatpush1.msra.mxu0 %v389
    %1358 = vmatprep.subr.mxu0 %v394
    %1359 = vmatpush1.msra.mxu0 %v393
    %1360 = vmatprep.subr.mxu0 %v398
    %1361 = vmatpush1.msra.mxu0 %v397
    %1362 = vmatprep.subr.mxu0 %v402
    %1363 = vmatpush1.msra.mxu0 %v401
    %1364 = vmatprep.subr.mxu0 %v406
    %1365 = vmatpush1.msra.mxu0 %v405
    %1366 = vmatprep.subr.mxu0 %v410
    %1367 = vmatpush1.msra.mxu0 %v409
    %1368 = vmatprep.subr.mxu0 %v414
    %1369 = vmatpush1.msra.mxu0 %v413
    %1370 = vmatprep.subr.mxu0 %v418
    %1371 = vmatpush1.msra.mxu0 %v417
    %1372 = vmatprep.subr.mxu0 %v422
    %1373 = vmatpush1.msra.mxu0 %v421
    %1374 = vmatprep.subr.mxu0 %v426
    %1375 = vmatpush1.msra.mxu0 %v425
    %1376 = vmatprep.subr.mxu0 %v430
    %1377 = vmatpush1.msra.mxu0 %v429
    %1378 = vmatprep.subr.mxu0 %v434
    %1379 = vmatpush1.msra.mxu0 %v433
    %1380 = vmatprep.subr.mxu0 %v438
    %1381 = vmatpush1.msra.mxu0 %v437
    %1382 = vmatprep.subr.mxu0 %v442
    %1383 = vmatpush1.msra.mxu0 %v441
    %1384 = vmatprep.subr.mxu0 %v446
    %1385 = vmatpush1.msra.mxu0 %v445
    %1386 = vmatprep.subr.mxu0 %v450
    %1387 = vmatpush1.msra.mxu0 %v449
    %1388 = vmatprep.subr.mxu0 0.0
    %1389 = vmatpush1.msra.mxu0 0.0
    %1390 = vmatprep.subr.mxu0 0.0
    %1391 = vmatpush1.msra.mxu0 0.0
    %1392 = vmatprep.subr.mxu0 0.0
    %1393 = vmatpush1.msra.mxu0 0.0
    %1394 = vmatprep.subr.mxu0 0.0
    %1395 = vmatpush1.msra.mxu0 0.0
    %1396 = vmatprep.subr.mxu0 0.0
    %1397 = vmatpush1.msra.mxu0 0.0
    %1398 = vmatprep.subr.mxu0 0.0
    %1399 = vmatpush1.msra.mxu0 0.0
    %1400 = vmatprep.subr.mxu0 0.0
    %1401 = vmatpush1.msra.mxu0 0.0
    %1402 = vmatprep.subr.mxu0 0.0
    %1403 = vmatpush1.msra.mxu0 0.0
    %1404 = vmatprep.subr.mxu0 0.0
    %1405 = vmatpush1.msra.mxu0 0.0
    %1406 = vmatprep.subr.mxu0 0.0
    %1407 = vmatpush1.msra.mxu0 0.0
    %1408 = vmatprep.subr.mxu0 0.0
    %1409 = vmatpush1.msra.mxu0 0.0
    %1410 = vmatprep.subr.mxu0 0.0
    %1411 = vmatpush1.msra.mxu0 0.0
    %1412 = vmatprep.subr.mxu0 0.0
    %1413 = vmatpush1.msra.mxu0 0.0
    %1414 = vmatprep.subr.mxu0 0.0
    %1415 = vmatpush1.msra.mxu0 0.0
    %1416 = vmatprep.subr.mxu0 0.0
    %1417 = vmatpush1.msra.mxu0 0.0
    %1418 = vmatprep.subr.mxu0 0.0
    %1419 = vmatpush1.msra.mxu0 0.0
    %1420 = vmatprep.mubr.f32.mxu0 0.0
    %1421 = vmatmul.mubr.f32.gmra.mrb[0].mxu0 %v1346
    %v1422 = vpop.f32.mrb[0].mxu0
    %v1423 = vadd.f32 0.0, %v1422
    %v1424 = vpop.f32.mrb[0].mxu0
    %v1425 = vadd.f32 0.0, %v1424
    %1426 = vdwg.mxu0
    %1427 = vmatprep.subr.mxu0 %v392
    %1428 = vmatpush1.msra.mxu0 %v391
    %1429 = vmatprep.subr.mxu0 %v396
    %1430 = vmatpush1.msra.mxu0 %v395
    %1431 = vmatprep.subr.mxu0 %v400
    %1432 = vmatpush1.msra.mxu0 %v399
    %1433 = vmatprep.subr.mxu0 %v404
    %1434 = vmatpush1.msra.mxu0 %v403
    %1435 = vmatprep.subr.mxu0 %v408
    %1436 = vmatpush1.msra.mxu0 %v407
    %1437 = vmatprep.subr.mxu0 %v412
    %1438 = vmatpush1.msra.mxu0 %v411
    %1439 = vmatprep.subr.mxu0 %v416
    %1440 = vmatpush1.msra.mxu0 %v415
    %1441 = vmatprep.subr.mxu0 %v420
    %1442 = vmatpush1.msra.mxu0 %v419
    %1443 = vmatprep.subr.mxu0 %v424
    %1444 = vmatpush1.msra.mxu0 %v423
    %1445 = vmatprep.subr.mxu0 %v428
    %1446 = vmatpush1.msra.mxu0 %v427
    %1447 = vmatprep.subr.mxu0 %v432
    %1448 = vmatpush1.msra.mxu0 %v431
    %1449 = vmatprep.subr.mxu0 %v436
    %1450 = vmatpush1.msra.mxu0 %v435
    %1451 = vmatprep.subr.mxu0 %v440
    %1452 = vmatpush1.msra.mxu0 %v439
    %1453 = vmatprep.subr.mxu0 %v444
    %1454 = vmatpush1.msra.mxu0 %v443
    %1455 = vmatprep.subr.mxu0 %v448
    %1456 = vmatpush1.msra.mxu0 %v447
    %1457 = vmatprep.subr.mxu0 %v452
    %1458 = vmatpush1.msra.mxu0 %v451
    %1459 = vmatprep.subr.mxu0 0.0
    %1460 = vmatpush1.msra.mxu0 0.0
    %1461 = vmatprep.subr.mxu0 0.0
    %1462 = vmatpush1.msra.mxu0 0.0
    %1463 = vmatprep.subr.mxu0 0.0
    %1464 = vmatpush1.msra.mxu0 0.0
    %1465 = vmatprep.subr.mxu0 0.0
    %1466 = vmatpush1.msra.mxu0 0.0
    %1467 = vmatprep.subr.mxu0 0.0
    %1468 = vmatpush1.msra.mxu0 0.0
    %1469 = vmatprep.subr.mxu0 0.0
    %1470 = vmatpush1.msra.mxu0 0.0
    %1471 = vmatprep.subr.mxu0 0.0
    %1472 = vmatpush1.msra.mxu0 0.0
    %1473 = vmatprep.subr.mxu0 0.0
    %1474 = vmatpush1.msra.mxu0 0.0
    %1475 = vmatprep.subr.mxu0 0.0
    %1476 = vmatpush1.msra.mxu0 0.0
    %1477 = vmatprep.subr.mxu0 0.0
    %1478 = vmatpush1.msra.mxu0 0.0
    %1479 = vmatprep.subr.mxu0 0.0
    %1480 = vmatpush1.msra.mxu0 0.0
    %1481 = vmatprep.subr.mxu0 0.0
    %1482 = vmatpush1.msra.mxu0 0.0
    %1483 = vmatprep.subr.mxu0 0.0
    %1484 = vmatpush1.msra.mxu0 0.0
    %1485 = vmatprep.subr.mxu0 0.0
    %1486 = vmatpush1.msra.mxu0 0.0
    %1487 = vmatprep.subr.mxu0 0.0
    %1488 = vmatpush1.msra.mxu0 0.0
    %1489 = vmatprep.subr.mxu0 0.0
    %1490 = vmatpush1.msra.mxu0 0.0
    %1491 = vmatprep.mubr.f32.mxu0 0.0
    %1492 = vmatmul.mubr.f32.gmra.mrb[0].mxu0 %v1346
    %v1493 = vpop.f32.mrb[0].mxu0
    %v1494 = vadd.f32 0.0, %v1493
    %v1495 = vpop.f32.mrb[0].mxu0
    %v1496 = vadd.f32 0.0, %v1495
    %1497 = vdwg.mxu0
    %v1498 = vadd.f32 %v1352, %v1423
    %v1499 = vadd.f32 %v1353, %v1425
    %v1500 = vadd.f32 %v1354, %v1494
    %v1501 = vadd.f32 %v1355, %v1496
    %v1502 = vxor.u32 %v1498, 2147483648
    %v1503 = vmul.f32 %v1502, 1.442695
    %v1504 = vpow.pop %v1503
    %v1505 = vadd.f32 %v1504, 1.0
    %v1506 = vrcp.pop %v1505
    %v1507 = vmul.f32 1.0, %v1506
    %v1508 = vxor.u32 %v1499, 2147483648
    %v1509 = vmul.f32 %v1508, 1.442695
    %v1510 = vpow.pop %v1509
    %v1511 = vadd.f32 %v1510, 1.0
    %v1512 = vrcp.pop %v1511
    %v1513 = vmul.f32 1.0, %v1512
    %v1514 = vtanh.pop %v1500
    %v1515 = vxor.u32 %v1501, 2147483648
    %v1516 = vmul.f32 %v1515, 1.442695
    %v1517 = vpow.pop %v1516
    %v1518 = vadd.f32 %v1517, 1.0
    %v1519 = vrcp.pop %v1518
    %v1520 = vmul.f32 1.0, %v1519
    %v1521 = vmul.f32 %v1513, %v1344
    %v1522 = vmul.f32 %v1507, %v1514
    %v1523 = vadd.f32 %v1521, %v1522
    %v1524 = vtanh.pop %v1523
    %v1525 = vmul.f32 %v1520, %v1524
    %s1526 = scalar_lea.vmem %s4, 40
    %1527 = vst [vmem:[%s1526] sm:$0xff] %v1525
    %s1528 = smul.u32 6, 4
    %s1529 = smul.addr %s1528, 8
    %s1530 = scalar_lea.vmem [#allocation4], %s1529
    %v1531 = vld [vmem:[%s1530] sm:$0xff]
    %v1532 = vld [vmem:[%s1530 + $0x8] sm:$0xff]
    %v1533 = vld [vmem:[%s1530 + $0x10] sm:$0xff]
    %v1534 = vld [vmem:[%s1530 + $0x18] sm:$0xff]
    %1535 = vmatprep.subr.mxu0 %v390
    %1536 = vmatpush1.msra.mxu0 %v389
    %1537 = vmatprep.subr.mxu0 %v394
    %1538 = vmatpush1.msra.mxu0 %v393
    %1539 = vmatprep.subr.mxu0 %v398
    %1540 = vmatpush1.msra.mxu0 %v397
    %1541 = vmatprep.subr.mxu0 %v402
    %1542 = vmatpush1.msra.mxu0 %v401
    %1543 = vmatprep.subr.mxu0 %v406
    %1544 = vmatpush1.msra.mxu0 %v405
    %1545 = vmatprep.subr.mxu0 %v410
    %1546 = vmatpush1.msra.mxu0 %v409
    %1547 = vmatprep.subr.mxu0 %v414
    %1548 = vmatpush1.msra.mxu0 %v413
    %1549 = vmatprep.subr.mxu0 %v418
    %1550 = vmatpush1.msra.mxu0 %v417
    %1551 = vmatprep.subr.mxu0 %v422
    %1552 = vmatpush1.msra.mxu0 %v421
    %1553 = vmatprep.subr.mxu0 %v426
    %1554 = vmatpush1.msra.mxu0 %v425
    %1555 = vmatprep.subr.mxu0 %v430
    %1556 = vmatpush1.msra.mxu0 %v429
    %1557 = vmatprep.subr.mxu0 %v434
    %1558 = vmatpush1.msra.mxu0 %v433
    %1559 = vmatprep.subr.mxu0 %v438
    %1560 = vmatpush1.msra.mxu0 %v437
    %1561 = vmatprep.subr.mxu0 %v442
    %1562 = vmatpush1.msra.mxu0 %v441
    %1563 = vmatprep.subr.mxu0 %v446
    %1564 = vmatpush1.msra.mxu0 %v445
    %1565 = vmatprep.subr.mxu0 %v450
    %1566 = vmatpush1.msra.mxu0 %v449
    %1567 = vmatprep.subr.mxu0 0.0
    %1568 = vmatpush1.msra.mxu0 0.0
    %1569 = vmatprep.subr.mxu0 0.0
    %1570 = vmatpush1.msra.mxu0 0.0
    %1571 = vmatprep.subr.mxu0 0.0
    %1572 = vmatpush1.msra.mxu0 0.0
    %1573 = vmatprep.subr.mxu0 0.0
    %1574 = vmatpush1.msra.mxu0 0.0
    %1575 = vmatprep.subr.mxu0 0.0
    %1576 = vmatpush1.msra.mxu0 0.0
    %1577 = vmatprep.subr.mxu0 0.0
    %1578 = vmatpush1.msra.mxu0 0.0
    %1579 = vmatprep.subr.mxu0 0.0
    %1580 = vmatpush1.msra.mxu0 0.0
    %1581 = vmatprep.subr.mxu0 0.0
    %1582 = vmatpush1.msra.mxu0 0.0
    %1583 = vmatprep.subr.mxu0 0.0
    %1584 = vmatpush1.msra.mxu0 0.0
    %1585 = vmatprep.subr.mxu0 0.0
    %1586 = vmatpush1.msra.mxu0 0.0
    %1587 = vmatprep.subr.mxu0 0.0
    %1588 = vmatpush1.msra.mxu0 0.0
    %1589 = vmatprep.subr.mxu0 0.0
    %1590 = vmatpush1.msra.mxu0 0.0
    %1591 = vmatprep.subr.mxu0 0.0
    %1592 = vmatpush1.msra.mxu0 0.0
    %1593 = vmatprep.subr.mxu0 0.0
    %1594 = vmatpush1.msra.mxu0 0.0
    %1595 = vmatprep.subr.mxu0 0.0
    %1596 = vmatpush1.msra.mxu0 0.0
    %1597 = vmatprep.subr.mxu0 0.0
    %1598 = vmatpush1.msra.mxu0 0.0
    %1599 = vmatprep.mubr.f32.mxu0 0.0
    %1600 = vmatmul.mubr.f32.gmra.mrb[0].mxu0 %v1525
    %v1601 = vpop.f32.mrb[0].mxu0
    %v1602 = vadd.f32 0.0, %v1601
    %v1603 = vpop.f32.mrb[0].mxu0
    %v1604 = vadd.f32 0.0, %v1603
    %1605 = vdwg.mxu0
    %1606 = vmatprep.subr.mxu0 %v392
    %1607 = vmatpush1.msra.mxu0 %v391
    %1608 = vmatprep.subr.mxu0 %v396
    %1609 = vmatpush1.msra.mxu0 %v395
    %1610 = vmatprep.subr.mxu0 %v400
    %1611 = vmatpush1.msra.mxu0 %v399
    %1612 = vmatprep.subr.mxu0 %v404
    %1613 = vmatpush1.msra.mxu0 %v403
    %1614 = vmatprep.subr.mxu0 %v408
    %1615 = vmatpush1.msra.mxu0 %v407
    %1616 = vmatprep.subr.mxu0 %v412
    %1617 = vmatpush1.msra.mxu0 %v411
    %1618 = vmatprep.subr.mxu0 %v416
    %1619 = vmatpush1.msra.mxu0 %v415
    %1620 = vmatprep.subr.mxu0 %v420
    %1621 = vmatpush1.msra.mxu0 %v419
    %1622 = vmatprep.subr.mxu0 %v424
    %1623 = vmatpush1.msra.mxu0 %v423
    %1624 = vmatprep.subr.mxu0 %v428
    %1625 = vmatpush1.msra.mxu0 %v427
    %1626 = vmatprep.subr.mxu0 %v432
    %1627 = vmatpush1.msra.mxu0 %v431
    %1628 = vmatprep.subr.mxu0 %v436
    %1629 = vmatpush1.msra.mxu0 %v435
    %1630 = vmatprep.subr.mxu0 %v440
    %1631 = vmatpush1.msra.mxu0 %v439
    %1632 = vmatprep.subr.mxu0 %v444
    %1633 = vmatpush1.msra.mxu0 %v443
    %1634 = vmatprep.subr.mxu0 %v448
    %1635 = vmatpush1.msra.mxu0 %v447
    %1636 = vmatprep.subr.mxu0 %v452
    %1637 = vmatpush1.msra.mxu0 %v451
    %1638 = vmatprep.subr.mxu0 0.0
    %1639 = vmatpush1.msra.mxu0 0.0
    %1640 = vmatprep.subr.mxu0 0.0
    %1641 = vmatpush1.msra.mxu0 0.0
    %1642 = vmatprep.subr.mxu0 0.0
    %1643 = vmatpush1.msra.mxu0 0.0
    %1644 = vmatprep.subr.mxu0 0.0
    %1645 = vmatpush1.msra.mxu0 0.0
    %1646 = vmatprep.subr.mxu0 0.0
    %1647 = vmatpush1.msra.mxu0 0.0
    %1648 = vmatprep.subr.mxu0 0.0
    %1649 = vmatpush1.msra.mxu0 0.0
    %1650 = vmatprep.subr.mxu0 0.0
    %1651 = vmatpush1.msra.mxu0 0.0
    %1652 = vmatprep.subr.mxu0 0.0
    %1653 = vmatpush1.msra.mxu0 0.0
    %1654 = vmatprep.subr.mxu0 0.0
    %1655 = vmatpush1.msra.mxu0 0.0
    %1656 = vmatprep.subr.mxu0 0.0
    %1657 = vmatpush1.msra.mxu0 0.0
    %1658 = vmatprep.subr.mxu0 0.0
    %1659 = vmatpush1.msra.mxu0 0.0
    %1660 = vmatprep.subr.mxu0 0.0
    %1661 = vmatpush1.msra.mxu0 0.0
    %1662 = vmatprep.subr.mxu0 0.0
    %1663 = vmatpush1.msra.mxu0 0.0
    %1664 = vmatprep.subr.mxu0 0.0
    %1665 = vmatpush1.msra.mxu0 0.0
    %1666 = vmatprep.subr.mxu0 0.0
    %1667 = vmatpush1.msra.mxu0 0.0
    %1668 = vmatprep.subr.mxu0 0.0
    %1669 = vmatpush1.msra.mxu0 0.0
    %1670 = vmatprep.mubr.f32.mxu0 0.0
    %1671 = vmatmul.mubr.f32.gmra.mrb[0].mxu0 %v1525
    %v1672 = vpop.f32.mrb[0].mxu0
    %v1673 = vadd.f32 0.0, %v1672
    %v1674 = vpop.f32.mrb[0].mxu0
    %v1675 = vadd.f32 0.0, %v1674
    %1676 = vdwg.mxu0
    %v1677 = vadd.f32 %v1531, %v1602
    %v1678 = vadd.f32 %v1532, %v1604
    %v1679 = vadd.f32 %v1533, %v1673
    %v1680 = vadd.f32 %v1534, %v1675
    %v1681 = vxor.u32 %v1677, 2147483648
    %v1682 = vmul.f32 %v1681, 1.442695
    %v1683 = vpow.pop %v1682
    %v1684 = vadd.f32 %v1683, 1.0
    %v1685 = vrcp.pop %v1684
    %v1686 = vmul.f32 1.0, %v1685
    %v1687 = vxor.u32 %v1678, 2147483648
    %v1688 = vmul.f32 %v1687, 1.442695
    %v1689 = vpow.pop %v1688
    %v1690 = vadd.f32 %v1689, 1.0
    %v1691 = vrcp.pop %v1690
    %v1692 = vmul.f32 1.0, %v1691
    %v1693 = vtanh.pop %v1679
    %v1694 = vxor.u32 %v1680, 2147483648
    %v1695 = vmul.f32 %v1694, 1.442695
    %v1696 = vpow.pop %v1695
    %v1697 = vadd.f32 %v1696, 1.0
    %v1698 = vrcp.pop %v1697
    %v1699 = vmul.f32 1.0, %v1698
    %v1700 = vmul.f32 %v1692, %v1523
    %v1701 = vmul.f32 %v1686, %v1693
    %v1702 = vadd.f32 %v1700, %v1701
    %v1703 = vtanh.pop %v1702
    %v1704 = vmul.f32 %v1699, %v1703
    %s1705 = scalar_lea.vmem %s4, 48
    %1706 = vst [vmem:[%s1705] sm:$0xff] %v1704
    %s1707 = smul.u32 7, 4
    %s1708 = smul.addr %s1707, 8
    %s1709 = scalar_lea.vmem [#allocation4], %s1708
    %v1710 = vld [vmem:[%s1709] sm:$0xff]
    %v1711 = vld [vmem:[%s1709 + $0x8] sm:$0xff]
    %v1712 = vld [vmem:[%s1709 + $0x10] sm:$0xff]
    %v1713 = vld [vmem:[%s1709 + $0x18] sm:$0xff]
    %1714 = vmatprep.subr.mxu0 %v390
    %1715 = vmatpush1.msra.mxu0 %v389
    %1716 = vmatprep.subr.mxu0 %v394
    %1717 = vmatpush1.msra.mxu0 %v393
    %1718 = vmatprep.subr.mxu0 %v398
    %1719 = vmatpush1.msra.mxu0 %v397
    %1720 = vmatprep.subr.mxu0 %v402
    %1721 = vmatpush1.msra.mxu0 %v401
    %1722 = vmatprep.subr.mxu0 %v406
    %1723 = vmatpush1.msra.mxu0 %v405
    %1724 = vmatprep.subr.mxu0 %v410
    %1725 = vmatpush1.msra.mxu0 %v409
    %1726 = vmatprep.subr.mxu0 %v414
    %1727 = vmatpush1.msra.mxu0 %v413
    %1728 = vmatprep.subr.mxu0 %v418
    %1729 = vmatpush1.msra.mxu0 %v417
    %1730 = vmatprep.subr.mxu0 %v422
    %1731 = vmatpush1.msra.mxu0 %v421
    %1732 = vmatprep.subr.mxu0 %v426
    %1733 = vmatpush1.msra.mxu0 %v425
    %1734 = vmatprep.subr.mxu0 %v430
    %1735 = vmatpush1.msra.mxu0 %v429
    %1736 = vmatprep.subr.mxu0 %v434
    %1737 = vmatpush1.msra.mxu0 %v433
    %1738 = vmatprep.subr.mxu0 %v438
    %1739 = vmatpush1.msra.mxu0 %v437
    %1740 = vmatprep.subr.mxu0 %v442
    %1741 = vmatpush1.msra.mxu0 %v441
    %1742 = vmatprep.subr.mxu0 %v446
    %1743 = vmatpush1.msra.mxu0 %v445
    %1744 = vmatprep.subr.mxu0 %v450
    %1745 = vmatpush1.msra.mxu0 %v449
    %1746 = vmatprep.subr.mxu0 0.0
    %1747 = vmatpush1.msra.mxu0 0.0
    %1748 = vmatprep.subr.mxu0 0.0
    %1749 = vmatpush1.msra.mxu0 0.0
    %1750 = vmatprep.subr.mxu0 0.0
    %1751 = vmatpush1.msra.mxu0 0.0
    %1752 = vmatprep.subr.mxu0 0.0
    %1753 = vmatpush1.msra.mxu0 0.0
    %1754 = vmatprep.subr.mxu0 0.0
    %1755 = vmatpush1.msra.mxu0 0.0
    %1756 = vmatprep.subr.mxu0 0.0
    %1757 = vmatpush1.msra.mxu0 0.0
    %1758 = vmatprep.subr.mxu0 0.0
    %1759 = vmatpush1.msra.mxu0 0.0
    %1760 = vmatprep.subr.mxu0 0.0
    %1761 = vmatpush1.msra.mxu0 0.0
    %1762 = vmatprep.subr.mxu0 0.0
    %1763 = vmatpush1.msra.mxu0 0.0
    %1764 = vmatprep.subr.mxu0 0.0
    %1765 = vmatpush1.msra.mxu0 0.0
    %1766 = vmatprep.subr.mxu0 0.0
    %1767 = vmatpush1.msra.mxu0 0.0
    %1768 = vmatprep.subr.mxu0 0.0
    %1769 = vmatpush1.msra.mxu0 0.0
    %1770 = vmatprep.subr.mxu0 0.0
    %1771 = vmatpush1.msra.mxu0 0.0
    %1772 = vmatprep.subr.mxu0 0.0
    %1773 = vmatpush1.msra.mxu0 0.0
    %1774 = vmatprep.subr.mxu0 0.0
    %1775 = vmatpush1.msra.mxu0 0.0
    %1776 = vmatprep.subr.mxu0 0.0
    %1777 = vmatpush1.msra.mxu0 0.0
    %1778 = vmatprep.mubr.f32.mxu0 0.0
    %1779 = vmatmul.mubr.f32.gmra.mrb[0].mxu0 %v1704
    %v1780 = vpop.f32.mrb[0].mxu0
    %v1781 = vadd.f32 0.0, %v1780
    %v1782 = vpop.f32.mrb[0].mxu0
    %v1783 = vadd.f32 0.0, %v1782
    %1784 = vdwg.mxu0
    %1785 = vmatprep.subr.mxu0 %v392
    %1786 = vmatpush1.msra.mxu0 %v391
    %1787 = vmatprep.subr.mxu0 %v396
    %1788 = vmatpush1.msra.mxu0 %v395
    %1789 = vmatprep.subr.mxu0 %v400
    %1790 = vmatpush1.msra.mxu0 %v399
    %1791 = vmatprep.subr.mxu0 %v404
    %1792 = vmatpush1.msra.mxu0 %v403
    %1793 = vmatprep.subr.mxu0 %v408
    %1794 = vmatpush1.msra.mxu0 %v407
    %1795 = vmatprep.subr.mxu0 %v412
    %1796 = vmatpush1.msra.mxu0 %v411
    %1797 = vmatprep.subr.mxu0 %v416
    %1798 = vmatpush1.msra.mxu0 %v415
    %1799 = vmatprep.subr.mxu0 %v420
    %1800 = vmatpush1.msra.mxu0 %v419
    %1801 = vmatprep.subr.mxu0 %v424
    %1802 = vmatpush1.msra.mxu0 %v423
    %1803 = vmatprep.subr.mxu0 %v428
    %1804 = vmatpush1.msra.mxu0 %v427
    %1805 = vmatprep.subr.mxu0 %v432
    %1806 = vmatpush1.msra.mxu0 %v431
    %1807 = vmatprep.subr.mxu0 %v436
    %1808 = vmatpush1.msra.mxu0 %v435
    %1809 = vmatprep.subr.mxu0 %v440
    %1810 = vmatpush1.msra.mxu0 %v439
    %1811 = vmatprep.subr.mxu0 %v444
    %1812 = vmatpush1.msra.mxu0 %v443
    %1813 = vmatprep.subr.mxu0 %v448
    %1814 = vmatpush1.msra.mxu0 %v447
    %1815 = vmatprep.subr.mxu0 %v452
    %1816 = vmatpush1.msra.mxu0 %v451
    %1817 = vmatprep.subr.mxu0 0.0
    %1818 = vmatpush1.msra.mxu0 0.0
    %1819 = vmatprep.subr.mxu0 0.0
    %1820 = vmatpush1.msra.mxu0 0.0
    %1821 = vmatprep.subr.mxu0 0.0
    %1822 = vmatpush1.msra.mxu0 0.0
    %1823 = vmatprep.subr.mxu0 0.0
    %1824 = vmatpush1.msra.mxu0 0.0
    %1825 = vmatprep.subr.mxu0 0.0
    %1826 = vmatpush1.msra.mxu0 0.0
    %1827 = vmatprep.subr.mxu0 0.0
    %1828 = vmatpush1.msra.mxu0 0.0
    %1829 = vmatprep.subr.mxu0 0.0
    %1830 = vmatpush1.msra.mxu0 0.0
    %1831 = vmatprep.subr.mxu0 0.0
    %1832 = vmatpush1.msra.mxu0 0.0
    %1833 = vmatprep.subr.mxu0 0.0
    %1834 = vmatpush1.msra.mxu0 0.0
    %1835 = vmatprep.subr.mxu0 0.0
    %1836 = vmatpush1.msra.mxu0 0.0
    %1837 = vmatprep.subr.mxu0 0.0
    %1838 = vmatpush1.msra.mxu0 0.0
    %1839 = vmatprep.subr.mxu0 0.0
    %1840 = vmatpush1.msra.mxu0 0.0
    %1841 = vmatprep.subr.mxu0 0.0
    %1842 = vmatpush1.msra.mxu0 0.0
    %1843 = vmatprep.subr.mxu0 0.0
    %1844 = vmatpush1.msra.mxu0 0.0
    %1845 = vmatprep.subr.mxu0 0.0
    %1846 = vmatpush1.msra.mxu0 0.0
    %1847 = vmatprep.subr.mxu0 0.0
    %1848 = vmatpush1.msra.mxu0 0.0
    %1849 = vmatprep.mubr.f32.mxu0 0.0
    %1850 = vmatmul.mubr.f32.gmra.mrb[0].mxu0 %v1704
    %v1851 = vpop.f32.mrb[0].mxu0
    %v1852 = vadd.f32 0.0, %v1851
    %v1853 = vpop.f32.mrb[0].mxu0
    %v1854 = vadd.f32 0.0, %v1853
    %1855 = vdwg.mxu0
    %v1856 = vadd.f32 %v1710, %v1781
    %v1857 = vadd.f32 %v1711, %v1783
    %v1858 = vadd.f32 %v1712, %v1852
    %v1859 = vadd.f32 %v1713, %v1854
    %v1860 = vxor.u32 %v1856, 2147483648
    %v1861 = vmul.f32 %v1860, 1.442695
    %v1862 = vpow.pop %v1861
    %v1863 = vadd.f32 %v1862, 1.0
    %v1864 = vrcp.pop %v1863
    %v1865 = vmul.f32 1.0, %v1864
    %v1866 = vxor.u32 %v1857, 2147483648
    %v1867 = vmul.f32 %v1866, 1.442695
    %v1868 = vpow.pop %v1867
    %v1869 = vadd.f32 %v1868, 1.0
    %v1870 = vrcp.pop %v1869
    %v1871 = vmul.f32 1.0, %v1870
    %v1872 = vtanh.pop %v1858
    %v1873 = vxor.u32 %v1859, 2147483648
    %v1874 = vmul.f32 %v1873, 1.442695
    %v1875 = vpow.pop %v1874
    %v1876 = vadd.f32 %v1875, 1.0
    %v1877 = vrcp.pop %v1876
    %v1878 = vmul.f32 1.0, %v1877
    %v1879 = vmul.f32 %v1871, %v1702
    %v1880 = vmul.f32 %v1865, %v1872
    %v1881 = vadd.f32 %v1879, %v1880
    %v1882 = vtanh.pop %v1881
    %v1883 = vmul.f32 %v1878, %v1882
    %s1884 = scalar_lea.vmem %s4, 56
    %1885 = vst [vmem:[%s1884] sm:$0xff] %v1883
    %1886 = vst [vmem:[#allocation2] sm:$0xff] %v1883
    %1887 = vst [vmem:[#allocation3] sm:$0xff] %v1881
    // Predicated region
    $region26: #{encoder_forward.3} parent=1 // pred_check
      _
    $region27: #{encoder_forward.3} parent=1 // pred_check_branch
      %1889 = sbr.rel (0) target = $region29
    $region28: #{encoder_forward.3} parent=1 // pred_region
      _
    $region29: #{encoder_forward.3} parent=1 // pred_fallthru
      _
    // Predicated region
    $region30: #{encoder_forward.3} parent=1 // pred_check
      _
    $region31: #{encoder_forward.3} parent=1 // pred_check_branch
      %1891 = sbr.rel (0) target = $region33
    $region32: #{encoder_forward.3} parent=1 // pred_region
      _
    $region33: #{encoder_forward.3} parent=1 // pred_fallthru
      _
    %1892 = vsyncpa [#allocation6], 1

</llo_original>
